<compile_context>
chip_gen: v5e
topology: v5e:2x2
jax: 0.10.0
libtpu: 0.0.40
codegen_flags: <defaults>
</compile_context>

<pallas_src>
import functools

import jax
import jax.numpy as jnp
from jax import lax
from jax.experimental import pallas as pl
from jax.experimental.pallas import tpu as pltpu


# ---------------------------------------------------------------------------
# Kernel 1: fused Q | K^T | V projection (three 1x1 convs sharing one HBM read
# of x), bf16 outputs, K emitted directly in transposed [dk, HW] layout.
# ---------------------------------------------------------------------------

def _qkv_proj_kernel(x_ref, wq_ref, bq_ref, wkt_ref, bkt_ref, wv_ref, bv_ref,
                     q_ref, kt_ref, v_ref):
    x = x_ref[0]                                                   # [tm, C] f32
    q = jnp.dot(x, wq_ref[...], preferred_element_type=jnp.float32) + bq_ref[...]
    # K directly in [dk, tm] (transposed) layout: contract both last dims
    # (same dot_general pattern as a q @ k^T flash matmul).  Lane-dense store;
    # the attention kernel then consumes it as a canonical [M,K]@[K,N] rhs.
    kt = lax.dot_general(wkt_ref[...], x, (((1,), (1,)), ((), ())),
                         preferred_element_type=jnp.float32) + bkt_ref[...]
    v = jnp.dot(x, wv_ref[...], preferred_element_type=jnp.float32) + bv_ref[...]
    q_ref[0] = q.astype(q_ref.dtype)
    kt_ref[0] = kt.astype(kt_ref.dtype)
    v_ref[0] = v.astype(v_ref.dtype)


def _pick_row_tile(hw):
    # Largest 128-multiple tile dividing HW (lane-dense k^T stores and
    # (8,128)-aligned q/v stores); otherwise fall back to the full extent,
    # which always satisfies the block-shape constraint.
    for cand in (2048, 1024, 512, 256, 128):
        if hw % cand == 0:
            return cand
    return hw


def qkv_projection(x, wq, bq, wkt, bkt, wv, bv, *, out_dtype=jnp.bfloat16):
    """x: [B, HW, C] f32 -> (q [B,HW,dk], k_t [B,dk,HW], v [B,HW,C]) in bf16."""
    B, HW, C = x.shape
    dk = wq.shape[1]
    tm = _pick_row_tile(HW)
    grid = (B, HW // tm)
    return pl.pallas_call(
        _qkv_proj_kernel,
        out_shape=(
            jax.ShapeDtypeStruct((B, HW, dk), out_dtype),
            jax.ShapeDtypeStruct((B, dk, HW), out_dtype),
            jax.ShapeDtypeStruct((B, HW, C), out_dtype),
        ),
        grid=grid,
        in_specs=[
            pl.BlockSpec((1, tm, C), lambda b, i: (b, i, 0)),
            pl.BlockSpec((C, dk), lambda b, i: (0, 0)),
            pl.BlockSpec((1, dk), lambda b, i: (0, 0)),
            pl.BlockSpec((dk, C), lambda b, i: (0, 0)),
            pl.BlockSpec((dk, 1), lambda b, i: (0, 0)),
            pl.BlockSpec((C, C), lambda b, i: (0, 0)),
            pl.BlockSpec((1, C), lambda b, i: (0, 0)),
        ],
        out_specs=(
            pl.BlockSpec((1, tm, dk), lambda b, i: (b, i, 0)),
            pl.BlockSpec((1, dk, tm), lambda b, i: (b, 0, i)),
            pl.BlockSpec((1, tm, C), lambda b, i: (b, i, 0)),
        ),
        compiler_params=pltpu.CompilerParams(
            dimension_semantics=("parallel", "parallel")),
    )(x, wq, bq, wkt, bkt, wv, bv)


# ---------------------------------------------------------------------------
# Kernel 2: flash-style attention + fused residual (gamma * out + x).
# Online softmax; the f32 output block (resident across the kv axis) is the
# accumulator.  Key masking handles HW not divisible by the kv tile.
# ---------------------------------------------------------------------------

def _flash_attn_kernel(q_ref, kt_ref, v_ref, x_ref, gamma_ref, o_ref,
                       m_sc, l_sc, *, hw, mask_keys):
    kv = pl.program_id(2)

    @pl.when(kv == 0)
    def _():
        m_sc[...] = jnp.full_like(m_sc, -jnp.inf)
        l_sc[...] = jnp.zeros_like(l_sc)
        o_ref[...] = jnp.zeros_like(o_ref)          # stale VMEM -> must zero

    q = q_ref[0]                                     # [tq, dk] bf16
    kt = kt_ref[0]                                   # [dk, tk] bf16
    v = v_ref[0]                                     # [tk, C]  bf16

    # energy[i, j] = Q_i . K_j  (no 1/sqrt(dk) scaling -- matches the module)
    s = jnp.dot(q, kt, preferred_element_type=jnp.float32)        # [tq, tk] f32

    if mask_keys:                                    # static: only if HW % tk != 0
        tk = s.shape[-1]
        key_idx = kv * tk + lax.broadcasted_iota(jnp.int32, s.shape, 1)
        s = jnp.where(key_idx < hw, s, -1e30)
        row_idx = kv * tk + lax.broadcasted_iota(jnp.int32, v.shape, 0)
        v = jnp.where(row_idx < hw, v, jnp.zeros_like(v))

    m_prev = m_sc[...]
    m_new = jnp.maximum(m_prev, jnp.max(s, axis=-1, keepdims=True))
    alpha = jnp.exp(m_prev - m_new)
    p = jnp.exp(s - m_new)                                         # [tq, tk] f32
    l_sc[...] = alpha * l_sc[...] + jnp.sum(p, axis=-1, keepdims=True)
    # o_ref's block index is constant along the kv axis -> resident accumulator.
    o_ref[0] = alpha * o_ref[0] + jnp.dot(
        p.astype(v.dtype), v, preferred_element_type=jnp.float32)
    m_sc[...] = m_new

    @pl.when(kv == pl.num_programs(2) - 1)
    def _():
        inv_l = pl.reciprocal(l_sc[...], approx=True)              # EUP slot
        gamma = gamma_ref[0, 0]
        o_ref[0] = gamma * (o_ref[0] * inv_l) + x_ref[0]


def attention_core(q, kt, v, x, gamma, *, tq=256, tk=512):
    """q: [B,HW,dk] bf16; kt: [B,dk,HW] bf16; v: [B,HW,C] bf16; x: [B,HW,C] f32."""
    B, HW, dk = q.shape
    C = v.shape[-1]
    tq = min(tq, HW)
    tk = min(tk, HW)
    # (8,128) layout constraints: kt block's last dim (tk) must be a multiple
    # of 128 or the full extent; tq must be a multiple of 8 or the full extent.
    if tk != HW and tk % 128 != 0:
        tk = HW
    if tq != HW and tq % 8 != 0:
        tq = HW
    # Keep >= 2 "parallel" work items so both v7x TensorCores stay busy.
    if B * pl.cdiv(HW, tq) < 2 and tq % 16 == 0:
        tq //= 2
    grid = (B, pl.cdiv(HW, tq), pl.cdiv(HW, tk))
    needs_kv_mask = (HW % tk) != 0
    kernel = functools.partial(_flash_attn_kernel, hw=HW, mask_keys=needs_kv_mask)
    return pl.pallas_call(
        kernel,
        out_shape=jax.ShapeDtypeStruct((B, HW, C), jnp.float32),
        grid=grid,
        in_specs=[
            pl.BlockSpec((1, tq, dk), lambda b, qi, ki: (b, qi, 0)),
            pl.BlockSpec((1, dk, tk), lambda b, qi, ki: (b, 0, ki)),
            pl.BlockSpec((1, tk, C), lambda b, qi, ki: (b, ki, 0)),
            pl.BlockSpec((1, tq, C), lambda b, qi, ki: (b, qi, 0)),
            pl.BlockSpec((1, 1), lambda b, qi, ki: (0, 0),
                         memory_space=pltpu.MemorySpace.SMEM),
        ],
        out_specs=pl.BlockSpec((1, tq, C), lambda b, qi, ki: (b, qi, 0)),
        scratch_shapes=[
            pltpu.VMEM((tq, 1), jnp.float32),   # running max
            pltpu.VMEM((tq, 1), jnp.float32),   # running softmax denominator
        ],
        compiler_params=pltpu.CompilerParams(
            dimension_semantics=("parallel", "parallel", "arbitrary")),
    )(q, kt, v, x, gamma)


# ---------------------------------------------------------------------------
# Module forward (NCHW in / NCHW out, like the PyTorch module)
# ---------------------------------------------------------------------------

def self_attention_forward(params, x_nchw, *, tq=256, tk=512):
    B, C, H, W = x_nchw.shape
    HW = H * W
    # TODO(synk): the NCHW<->NHWC relayout is left to XLA; the Pallas kernels
    # operate on the pixel-major [B, HW, C] view.
    x_bhwc = jnp.transpose(x_nchw, (0, 2, 3, 1)).reshape(B, HW, C)
    q, kt, v = qkv_projection(x_bhwc,
                              params['w_q'], params['b_q'],
                              params['w_k_t'], params['b_k_t'],
                              params['w_v'], params['b_v'])
    out = attention_core(q, kt, v, x_bhwc, params['gamma'], tq=tq, tk=tk)
    return jnp.transpose(out.reshape(B, H, W, C), (0, 3, 1, 2))


# ---------------------------------------------------------------------------
# Pure-JAX reference (numerical validation of the Pallas path)
# ---------------------------------------------------------------------------

def self_attention_ref(params, x_nchw):
    B, C, H, W = x_nchw.shape
    HW = H * W
    flat = jnp.transpose(x_nchw, (0, 2, 3, 1)).reshape(B, HW, C)
    q = flat @ params['w_q'] + params['b_q']
    k = flat @ params['w_k_t'].T + params['b_k_t'][:, 0]
    v = flat @ params['w_v'] + params['b_v']
    energy = jnp.einsum('bqd,bkd->bqk', q, k)
    attn = jax.nn.softmax(energy, axis=-1)
    out = jnp.einsum('bqk,bkc->bqc', attn, v)
    out = params['gamma'][0, 0] * out + flat
    return jnp.transpose(out.reshape(B, H, W, C), (0, 3, 1, 2))


# ---------------------------------------------------------------------------
# Deterministic parameter init (shapes from SelfAttention.__init__)
# ---------------------------------------------------------------------------

def init_params(key, in_dim):
    dk = in_dim // 8
    kq, kk, kv, kb = jax.random.split(key, 4)
    kbq, kbk, kbv = jax.random.split(kb, 3)
    return {
        'w_q': 0.05 * jax.random.normal(kq, (in_dim, dk), jnp.float32),
        'b_q': 0.05 * jax.random.normal(kbq, (1, dk), jnp.float32),
        # key weight stored pre-transposed [dk, C] (wrapper-free, trace-time)
        'w_k_t': 0.05 * jax.random.normal(kk, (dk, in_dim), jnp.float32),
        'b_k_t': 0.05 * jax.random.normal(kbk, (dk, 1), jnp.float32),
        'w_v': 0.05 * jax.random.normal(kv, (in_dim, in_dim), jnp.float32),
        'b_v': 0.05 * jax.random.normal(kbv, (1, in_dim), jnp.float32),
        'gamma': jnp.zeros((1, 1), jnp.float32),   # nn.Parameter(torch.zeros(1))
    }


# ---------------------------------------------------------------------------

if __name__ == "__main__":
    key = jax.random.PRNGKey(0)
    pkey, xkey, xkey2 = jax.random.split(key, 3)
    B, C, H, W = 2, 64, 16, 16                     # C // 8 == 8
    params = init_params(pkey, in_dim=C)
    x = jax.random.normal(xkey, (B, C, H, W), jnp.float32)

    fwd = jax.jit(self_attention_forward)
    out = jax.block_until_ready(fwd(params, x))
    assert out.shape == (B, C, H, W), out.shape
    assert bool(jnp.all(jnp.isfinite(out)))

    # Non-zero gamma so the attention path actually contributes.
    params_nz = dict(params, gamma=jnp.full((1, 1), 0.5, jnp.float32))

    # 1) default tiles (HW=256 -> single kv step)
    got = jax.block_until_ready(fwd(params_nz, x))
    want = self_attention_ref(params_nz, x)
    assert bool(jnp.allclose(got, want, rtol=2e-2, atol=2e-2)), (
        float(jnp.max(jnp.abs(got - want))))

    # 2) small tiles -> multi-step online softmax on the kv reduction axis
    fwd_small = jax.jit(functools.partial(self_attention_forward, tq=64, tk=128))
    got2 = jax.block_until_ready(fwd_small(params_nz, x))
    assert bool(jnp.allclose(got2, want, rtol=2e-2, atol=2e-2)), (
        float(jnp.max(jnp.abs(got2 - want))))

    # 3) non-128-divisible feature map (12x12 -> HW=144): padded kv tiles with
    #    in-kernel key masking, padded q tiles clipped on store.
    x3 = jax.random.normal(xkey2, (B, C, 12, 12), jnp.float32)
    got3 = jax.block_until_ready(fwd_small(params_nz, x3))
    want3 = self_attention_ref(params_nz, x3)
    assert bool(jnp.allclose(got3, want3, rtol=2e-2, atol=2e-2)), (
        float(jnp.max(jnp.abs(got3 - want3))))

    print("KERNEL_OK")
</pallas_src>

<mosaic_0001>
module attributes {stable_mosaic.version = 11 : i64} {
  func.func @_flash_attn_kernel(%arg0: i32, %arg1: i32, %arg2: i32, %arg3: memref<1x256x8xbf16, #tpu.memory_space<vmem>>, %arg4: memref<1x8x256xbf16, #tpu.memory_space<vmem>>, %arg5: memref<1x256x64xbf16, #tpu.memory_space<vmem>>, %arg6: memref<1x256x64xf32, #tpu.memory_space<vmem>>, %arg7: memref<1x1xf32, #tpu.memory_space<smem>>, %arg8: memref<1x256x64xf32, #tpu.memory_space<vmem>>, %arg9: memref<256x1xf32, #tpu.memory_space<vmem>>, %arg10: memref<256x1xf32, #tpu.memory_space<vmem>>) attributes {dimension_semantics = [#tpu.dimension_semantics<parallel>, #tpu.dimension_semantics<parallel>, #tpu.dimension_semantics<arbitrary>], iteration_bounds = array<i64: 2, 1, 1>, scalar_prefetch = 0 : i64, scratch_operands = 2 : i64, tpu.core_type = #tpu.core_type<tc>, window_params = [{transform_indices = @transform_0, window_bounds = array<i64: 1, 256, 8>}, {transform_indices = @transform_1, window_bounds = array<i64: 1, 8, 256>}, {transform_indices = @transform_2, window_bounds = array<i64: 1, 256, 64>}, {transform_indices = @transform_3, window_bounds = array<i64: 1, 256, 64>}, {transform_indices = @transform_4, window_bounds = array<i64: 1, 1>}, {transform_indices = @transform_5, window_bounds = array<i64: 1, 256, 64>}]} {
    %c0_i32 = arith.constant 0 : i32
    %0 = arith.cmpi eq, %arg2, %c0_i32 : i32
    %1 = arith.extui %0 : i1 to i32
    %c0_i32_0 = arith.constant 0 : i32
    %2 = arith.cmpi ne, %1, %c0_i32_0 : i32
    scf.if %2 {
      %cst_28 = arith.constant 0xFF800000 : f32
      %39 = vector.broadcast %cst_28 : f32 to vector<256x1xf32>
      %c0_29 = arith.constant 0 : index
      %c0_30 = arith.constant 0 : index
      %40 = vector.load %arg9[%c0_29, %c0_30] : memref<256x1xf32, #tpu.memory_space<vmem>>, vector<256x1xf32>
      tpu.vector_store %arg9[%c0_29, %c0_30], %39 {strides = array<i32>} : memref<256x1xf32, #tpu.memory_space<vmem>>, vector<256x1xf32>,
      %cst_31 = arith.constant 0.000000e+00 : f32
      %41 = vector.broadcast %cst_31 : f32 to vector<256x1xf32>
      %c0_32 = arith.constant 0 : index
      %c0_33 = arith.constant 0 : index
      %42 = vector.load %arg10[%c0_32, %c0_33] : memref<256x1xf32, #tpu.memory_space<vmem>>, vector<256x1xf32>
      tpu.vector_store %arg10[%c0_32, %c0_33], %41 {strides = array<i32>} : memref<256x1xf32, #tpu.memory_space<vmem>>, vector<256x1xf32>,
      %cst_34 = arith.constant 0.000000e+00 : f32
      %43 = vector.broadcast %cst_34 : f32 to vector<1x256x64xf32>
      %c0_35 = arith.constant 0 : index
      %c0_36 = arith.constant 0 : index
      %c0_37 = arith.constant 0 : index
      %44 = vector.load %arg8[%c0_35, %c0_36, %c0_37] : memref<1x256x64xf32, #tpu.memory_space<vmem>>, vector<1x256x64xf32>
      tpu.vector_store %arg8[%c0_35, %c0_36, %c0_37], %43 {strides = array<i32>} : memref<1x256x64xf32, #tpu.memory_space<vmem>>, vector<1x256x64xf32>,
    } else {
    }
    %c0 = arith.constant 0 : index
    %c0_1 = arith.constant 0 : index
    %c0_2 = arith.constant 0 : index
    %3 = vector.load %arg3[%c0, %c0_1, %c0_2] : memref<1x256x8xbf16, #tpu.memory_space<vmem>>, vector<1x256x8xbf16>
    %4 = vector.shape_cast %3 : vector<1x256x8xbf16> to vector<256x8xbf16>
    %c0_3 = arith.constant 0 : index
    %c0_4 = arith.constant 0 : index
    %c0_5 = arith.constant 0 : index
    %5 = vector.load %arg4[%c0_3, %c0_4, %c0_5] : memref<1x8x256xbf16, #tpu.memory_space<vmem>>, vector<1x8x256xbf16>
    %6 = vector.shape_cast %5 : vector<1x8x256xbf16> to vector<8x256xbf16>
    %c0_6 = arith.constant 0 : index
    %c0_7 = arith.constant 0 : index
    %c0_8 = arith.constant 0 : index
    %7 = vector.load %arg5[%c0_6, %c0_7, %c0_8] : memref<1x256x64xbf16, #tpu.memory_space<vmem>>, vector<1x256x64xbf16>
    %8 = vector.shape_cast %7 : vector<1x256x64xbf16> to vector<256x64xbf16>
    %cst = arith.constant dense<0.000000e+00> : vector<256x256xf32>
    %9 = tpu.matmul %4, %6, %cst {dimension_numbers = #tpu.dot_dimension_numbers<[1], [0], [0], [1], [0, 0, 1, 1], [], []>} : vector<256x8xbf16>, vector<8x256xbf16>, vector<256x256xf32> -> vector<256x256xf32>
    %c0_9 = arith.constant 0 : index
    %c0_10 = arith.constant 0 : index
    %10 = vector.load %arg9[%c0_9, %c0_10] : memref<256x1xf32, #tpu.memory_space<vmem>>, vector<256x1xf32>
    %cst_11 = arith.constant dense<0xFF800000> : vector<256xf32>
    %11 = vector.multi_reduction <maximumf>, %9, %cst_11 [1] : vector<256x256xf32> to vector<256xf32>
    %12 = vector.shape_cast %11 : vector<256xf32> to vector<256x1xf32>
    %13 = arith.maximumf %10, %12 : vector<256x1xf32>
    %14 = arith.subf %10, %13 : vector<256x1xf32>
    %15 = math.exp %14 : vector<256x1xf32>
    %16 = vector.broadcast %13 : vector<256x1xf32> to vector<256x256xf32>
    %17 = arith.subf %9, %16 : vector<256x256xf32>
    %18 = math.exp %17 : vector<256x256xf32>
    %c0_12 = arith.constant 0 : index
    %c0_13 = arith.constant 0 : index
    %19 = vector.load %arg10[%c0_12, %c0_13] : memref<256x1xf32, #tpu.memory_space<vmem>>, vector<256x1xf32>
    %20 = arith.mulf %15, %19 : vector<256x1xf32>
    %cst_14 = arith.constant dense<0.000000e+00> : vector<256xf32>
    %21 = vector.multi_reduction <add>, %18, %cst_14 [1] : vector<256x256xf32> to vector<256xf32>
    %22 = vector.shape_cast %21 : vector<256xf32> to vector<256x1xf32>
    %23 = arith.addf %20, %22 : vector<256x1xf32>
    %c0_15 = arith.constant 0 : index
    %c0_16 = arith.constant 0 : index
    %24 = vector.load %arg10[%c0_15, %c0_16] : memref<256x1xf32, #tpu.memory_space<vmem>>, vector<256x1xf32>
    tpu.vector_store %arg10[%c0_15, %c0_16], %23 {strides = array<i32>} : memref<256x1xf32, #tpu.memory_space<vmem>>, vector<256x1xf32>,
    %c0_17 = arith.constant 0 : index
    %c0_18 = arith.constant 0 : index
    %c0_19 = arith.constant 0 : index
    %25 = vector.load %arg8[%c0_17, %c0_18, %c0_19] : memref<1x256x64xf32, #tpu.memory_space<vmem>>, vector<1x256x64xf32>
    %26 = vector.shape_cast %25 : vector<1x256x64xf32> to vector<256x64xf32>
    %27 = vector.broadcast %15 : vector<256x1xf32> to vector<256x64xf32>
    %28 = arith.mulf %27, %26 : vector<256x64xf32>
    %29 = arith.truncf %18 : vector<256x256xf32> to vector<256x256xbf16>
    %cst_20 = arith.constant dense<0.000000e+00> : vector<256x64xf32>
    %30 = tpu.matmul %29, %8, %cst_20 {dimension_numbers = #tpu.dot_dimension_numbers<[1], [0], [0], [1], [0, 0, 1, 1], [], []>} : vector<256x256xbf16>, vector<256x64xbf16>, vector<256x64xf32> -> vector<256x64xf32>
    %31 = arith.addf %28, %30 : vector<256x64xf32>
    %c0_21 = arith.constant 0 : index
    %c0_22 = arith.constant 0 : index
    %c0_23 = arith.constant 0 : index
    %32 = vector.load %arg8[%c0_21, %c0_22, %c0_23] : memref<1x256x64xf32, #tpu.memory_space<vmem>>, vector<1x256x64xf32>
    %33 = vector.shape_cast %32 : vector<1x256x64xf32> to vector<256x64xf32>
    %34 = vector.shape_cast %31 : vector<256x64xf32> to vector<1x256x64xf32>
    tpu.vector_store %arg8[%c0_21, %c0_22, %c0_23], %34 {strides = array<i32>} : memref<1x256x64xf32, #tpu.memory_space<vmem>>, vector<1x256x64xf32>,
    %c0_24 = arith.constant 0 : index
    %c0_25 = arith.constant 0 : index
    %35 = vector.load %arg9[%c0_24, %c0_25] : memref<256x1xf32, #tpu.memory_space<vmem>>, vector<256x1xf32>
    tpu.vector_store %arg9[%c0_24, %c0_25], %13 {strides = array<i32>} : memref<256x1xf32, #tpu.memory_space<vmem>>, vector<256x1xf32>,
    %c0_i32_26 = arith.constant 0 : i32
    %36 = arith.cmpi eq, %arg2, %c0_i32_26 : i32
    %37 = arith.extui %36 : i1 to i32
    %c0_i32_27 = arith.constant 0 : i32
    %38 = arith.cmpi ne, %37, %c0_i32_27 : i32
    scf.if %38 {
      %c0_28 = arith.constant 0 : index
      %c0_29 = arith.constant 0 : index
      %39 = vector.load %arg10[%c0_28, %c0_29] : memref<256x1xf32, #tpu.memory_space<vmem>>, vector<256x1xf32>
      %40 = tpu.reciprocal %39 {approx = true} : vector<256x1xf32> -> vector<256x1xf32>
      %c0_30 = arith.constant 0 : index
      %c0_31 = arith.constant 0 : index
      %41 = memref.load %arg7[%c0_30, %c0_31] : memref<1x1xf32, #tpu.memory_space<smem>>
      %c0_32 = arith.constant 0 : index
      %c0_33 = arith.constant 0 : index
      %c0_34 = arith.constant 0 : index
      %42 = vector.load %arg8[%c0_32, %c0_33, %c0_34] : memref<1x256x64xf32, #tpu.memory_space<vmem>>, vector<1x256x64xf32>
      %43 = vector.shape_cast %42 : vector<1x256x64xf32> to vector<256x64xf32>
      %44 = vector.broadcast %40 : vector<256x1xf32> to vector<256x64xf32>
      %45 = arith.mulf %43, %44 : vector<256x64xf32>
      %46 = vector.broadcast %41 : f32 to vector<256x64xf32>
      %47 = arith.mulf %46, %45 : vector<256x64xf32>
      %c0_35 = arith.constant 0 : index
      %c0_36 = arith.constant 0 : index
      %c0_37 = arith.constant 0 : index
      %48 = vector.load %arg6[%c0_35, %c0_36, %c0_37] : memref<1x256x64xf32, #tpu.memory_space<vmem>>, vector<1x256x64xf32>
      %49 = vector.shape_cast %48 : vector<1x256x64xf32> to vector<256x64xf32>
      %50 = arith.addf %47, %49 : vector<256x64xf32>
      %c0_38 = arith.constant 0 : index
      %c0_39 = arith.constant 0 : index
      %c0_40 = arith.constant 0 : index
      %51 = vector.load %arg8[%c0_38, %c0_39, %c0_40] : memref<1x256x64xf32, #tpu.memory_space<vmem>>, vector<1x256x64xf32>
      %52 = vector.shape_cast %51 : vector<1x256x64xf32> to vector<256x64xf32>
      %53 = vector.shape_cast %50 : vector<256x64xf32> to vector<1x256x64xf32>
      tpu.vector_store %arg8[%c0_38, %c0_39, %c0_40], %53 {strides = array<i32>} : memref<1x256x64xf32, #tpu.memory_space<vmem>>, vector<1x256x64xf32>,
    } else {
    }
    return
  }
  func.func @transform_0(%arg0: i32, %arg1: i32, %arg2: i32) -> (i32, i32, i32) {
    %c0_i32 = arith.constant 0 : i32
    %c0_i32_0 = arith.constant 0 : i32
    return %arg0, %arg1, %c0_i32 : i32, i32, i32
  }
  func.func @transform_1(%arg0: i32, %arg1: i32, %arg2: i32) -> (i32, i32, i32) {
    %c0_i32 = arith.constant 0 : i32
    %c0_i32_0 = arith.constant 0 : i32
    return %arg0, %c0_i32, %arg2 : i32, i32, i32
  }
  func.func @transform_2(%arg0: i32, %arg1: i32, %arg2: i32) -> (i32, i32, i32) {
    %c0_i32 = arith.constant 0 : i32
    %c0_i32_0 = arith.constant 0 : i32
    return %arg0, %arg2, %c0_i32 : i32, i32, i32
  }
  func.func @transform_3(%arg0: i32, %arg1: i32, %arg2: i32) -> (i32, i32, i32) {
    %c0_i32 = arith.constant 0 : i32
    %c0_i32_0 = arith.constant 0 : i32
    return %arg0, %arg1, %c0_i32 : i32, i32, i32
  }
  func.func @transform_4(%arg0: i32, %arg1: i32, %arg2: i32) -> (i32, i32) {
    %c0_i32 = arith.constant 0 : i32
    %c0_i32_0 = arith.constant 0 : i32
    %c0_i32_1 = arith.constant 0 : i32
    return %c0_i32, %c0_i32_0 : i32, i32
  }
  func.func @transform_5(%arg0: i32, %arg1: i32, %arg2: i32) -> (i32, i32, i32) {
    %c0_i32 = arith.constant 0 : i32
    %c0_i32_0 = arith.constant 0 : i32
    return %arg0, %arg1, %c0_i32 : i32, i32, i32
  }
}

module attributes {stable_mosaic.version = 11 : i64} {
  func.func @_qkv_proj_kernel(%arg0: i32, %arg1: i32, %arg2: memref<1x256x64xf32, #tpu.memory_space<vmem>>, %arg3: memref<64x8xf32, #tpu.memory_space<vmem>>, %arg4: memref<1x8xf32, #tpu.memory_space<vmem>>, %arg5: memref<8x64xf32, #tpu.memory_space<vmem>>, %arg6: memref<8x1xf32, #tpu.memory_space<vmem>>, %arg7: memref<64x64xf32, #tpu.memory_space<vmem>>, %arg8: memref<1x64xf32, #tpu.memory_space<vmem>>, %arg9: memref<1x256x8xbf16, #tpu.memory_space<vmem>>, %arg10: memref<1x8x256xbf16, #tpu.memory_space<vmem>>, %arg11: memref<1x256x64xbf16, #tpu.memory_space<vmem>>) attributes {dimension_semantics = [#tpu.dimension_semantics<parallel>, #tpu.dimension_semantics<parallel>], iteration_bounds = array<i64: 2, 1>, scalar_prefetch = 0 : i64, scratch_operands = 0 : i64, tpu.core_type = #tpu.core_type<tc>, window_params = [{transform_indices = @transform_0, window_bounds = array<i64: 1, 256, 64>}, {pipeline_mode = #tpu.pipeline_mode<synchronous>, transform_indices = @transform_1, window_bounds = array<i64: 64, 8>}, {pipeline_mode = #tpu.pipeline_mode<synchronous>, transform_indices = @transform_2, window_bounds = array<i64: 1, 8>}, {pipeline_mode = #tpu.pipeline_mode<synchronous>, transform_indices = @transform_3, window_bounds = array<i64: 8, 64>}, {pipeline_mode = #tpu.pipeline_mode<synchronous>, transform_indices = @transform_4, window_bounds = array<i64: 8, 1>}, {pipeline_mode = #tpu.pipeline_mode<synchronous>, transform_indices = @transform_5, window_bounds = array<i64: 64, 64>}, {pipeline_mode = #tpu.pipeline_mode<synchronous>, transform_indices = @transform_6, window_bounds = array<i64: 1, 64>}, {transform_indices = @transform_7, window_bounds = array<i64: 1, 256, 8>}, {transform_indices = @transform_8, window_bounds = array<i64: 1, 8, 256>}, {transform_indices = @transform_9, window_bounds = array<i64: 1, 256, 64>}]} {
    %c0 = arith.constant 0 : index
    %c0_0 = arith.constant 0 : index
    %c0_1 = arith.constant 0 : index
    %0 = vector.load %arg2[%c0, %c0_0, %c0_1] : memref<1x256x64xf32, #tpu.memory_space<vmem>>, vector<1x256x64xf32>
    %1 = vector.shape_cast %0 : vector<1x256x64xf32> to vector<256x64xf32>
    %c0_2 = arith.constant 0 : index
    %c0_3 = arith.constant 0 : index
    %2 = vector.load %arg3[%c0_2, %c0_3] : memref<64x8xf32, #tpu.memory_space<vmem>>, vector<64x8xf32>
    %cst = arith.constant dense<0.000000e+00> : vector<256x8xf32>
    %3 = tpu.matmul %1, %2, %cst {dimension_numbers = #tpu.dot_dimension_numbers<[1], [0], [0], [1], [0, 0, 1, 1], [], []>} : vector<256x64xf32>, vector<64x8xf32>, vector<256x8xf32> -> vector<256x8xf32>
    %c0_4 = arith.constant 0 : index
    %c0_5 = arith.constant 0 : index
    %4 = vector.load %arg4[%c0_4, %c0_5] : memref<1x8xf32, #tpu.memory_space<vmem>>, vector<1x8xf32>
    %5 = vector.broadcast %4 : vector<1x8xf32> to vector<256x8xf32>
    %6 = arith.addf %3, %5 : vector<256x8xf32>
    %c0_6 = arith.constant 0 : index
    %c0_7 = arith.constant 0 : index
    %7 = vector.load %arg5[%c0_6, %c0_7] : memref<8x64xf32, #tpu.memory_space<vmem>>, vector<8x64xf32>
    %cst_8 = arith.constant dense<0.000000e+00> : vector<8x256xf32>
    %8 = tpu.matmul %7, %1, %cst_8 {dimension_numbers = #tpu.dot_dimension_numbers<[1], [1], [0], [0], [0, 0, 1, 0], [], []>} : vector<8x64xf32>, vector<256x64xf32>, vector<8x256xf32> -> vector<8x256xf32>
    %c0_9 = arith.constant 0 : index
    %c0_10 = arith.constant 0 : index
    %9 = vector.load %arg6[%c0_9, %c0_10] : memref<8x1xf32, #tpu.memory_space<vmem>>, vector<8x1xf32>
    %10 = vector.broadcast %9 : vector<8x1xf32> to vector<8x256xf32>
    %11 = arith.addf %8, %10 : vector<8x256xf32>
    %c0_11 = arith.constant 0 : index
    %c0_12 = arith.constant 0 : index
    %12 = vector.load %arg7[%c0_11, %c0_12] : memref<64x64xf32, #tpu.memory_space<vmem>>, vector<64x64xf32>
    %cst_13 = arith.constant dense<0.000000e+00> : vector<256x64xf32>
    %13 = tpu.matmul %1, %12, %cst_13 {dimension_numbers = #tpu.dot_dimension_numbers<[1], [0], [0], [1], [0, 0, 1, 1], [], []>} : vector<256x64xf32>, vector<64x64xf32>, vector<256x64xf32> -> vector<256x64xf32>
    %c0_14 = arith.constant 0 : index
    %c0_15 = arith.constant 0 : index
    %14 = vector.load %arg8[%c0_14, %c0_15] : memref<1x64xf32, #tpu.memory_space<vmem>>, vector<1x64xf32>
    %15 = vector.broadcast %14 : vector<1x64xf32> to vector<256x64xf32>
    %16 = arith.addf %13, %15 : vector<256x64xf32>
    %17 = arith.truncf %6 : vector<256x8xf32> to vector<256x8xbf16>
    %c0_16 = arith.constant 0 : index
    %c0_17 = arith.constant 0 : index
    %c0_18 = arith.constant 0 : index
    %18 = vector.load %arg9[%c0_16, %c0_17, %c0_18] : memref<1x256x8xbf16, #tpu.memory_space<vmem>>, vector<1x256x8xbf16>
    %19 = vector.shape_cast %18 : vector<1x256x8xbf16> to vector<256x8xbf16>
    %20 = vector.shape_cast %17 : vector<256x8xbf16> to vector<1x256x8xbf16>
    tpu.vector_store %arg9[%c0_16, %c0_17, %c0_18], %20 {strides = array<i32>} : memref<1x256x8xbf16, #tpu.memory_space<vmem>>, vector<1x256x8xbf16>,
    %21 = arith.truncf %11 : vector<8x256xf32> to vector<8x256xbf16>
    %c0_19 = arith.constant 0 : index
    %c0_20 = arith.constant 0 : index
    %c0_21 = arith.constant 0 : index
    %22 = vector.load %arg10[%c0_19, %c0_20, %c0_21] : memref<1x8x256xbf16, #tpu.memory_space<vmem>>, vector<1x8x256xbf16>
    %23 = vector.shape_cast %22 : vector<1x8x256xbf16> to vector<8x256xbf16>
    %24 = vector.shape_cast %21 : vector<8x256xbf16> to vector<1x8x256xbf16>
    tpu.vector_store %arg10[%c0_19, %c0_20, %c0_21], %24 {strides = array<i32>} : memref<1x8x256xbf16, #tpu.memory_space<vmem>>, vector<1x8x256xbf16>,
    %25 = arith.truncf %16 : vector<256x64xf32> to vector<256x64xbf16>
    %c0_22 = arith.constant 0 : index
    %c0_23 = arith.constant 0 : index
    %c0_24 = arith.constant 0 : index
    %26 = vector.load %arg11[%c0_22, %c0_23, %c0_24] : memref<1x256x64xbf16, #tpu.memory_space<vmem>>, vector<1x256x64xbf16>
    %27 = vector.shape_cast %26 : vector<1x256x64xbf16> to vector<256x64xbf16>
    %28 = vector.shape_cast %25 : vector<256x64xbf16> to vector<1x256x64xbf16>
    tpu.vector_store %arg11[%c0_22, %c0_23, %c0_24], %28 {strides = array<i32>} : memref<1x256x64xbf16, #tpu.memory_space<vmem>>, vector<1x256x64xbf16>,
    return
  }
  func.func @transform_0(%arg0: i32, %arg1: i32) -> (i32, i32, i32) {
    %c0_i32 = arith.constant 0 : i32
    %c0_i32_0 = arith.constant 0 : i32
    return %arg0, %arg1, %c0_i32 : i32, i32, i32
  }
  func.func @transform_1(%arg0: i32, %arg1: i32) -> (i32, i32) {
    %c0_i32 = arith.constant 0 : i32
    %c0_i32_0 = arith.constant 0 : i32
    %c0_i32_1 = arith.constant 0 : i32
    return %c0_i32, %c0_i32_0 : i32, i32
  }
  func.func @transform_2(%arg0: i32, %arg1: i32) -> (i32, i32) {
    %c0_i32 = arith.constant 0 : i32
    %c0_i32_0 = arith.constant 0 : i32
    %c0_i32_1 = arith.constant 0 : i32
    return %c0_i32, %c0_i32_0 : i32, i32
  }
  func.func @transform_3(%arg0: i32, %arg1: i32) -> (i32, i32) {
    %c0_i32 = arith.constant 0 : i32
    %c0_i32_0 = arith.constant 0 : i32
    %c0_i32_1 = arith.constant 0 : i32
    return %c0_i32, %c0_i32_0 : i32, i32
  }
  func.func @transform_4(%arg0: i32, %arg1: i32) -> (i32, i32) {
    %c0_i32 = arith.constant 0 : i32
    %c0_i32_0 = arith.constant 0 : i32
    %c0_i32_1 = arith.constant 0 : i32
    return %c0_i32, %c0_i32_0 : i32, i32
  }
  func.func @transform_5(%arg0: i32, %arg1: i32) -> (i32, i32) {
    %c0_i32 = arith.constant 0 : i32
    %c0_i32_0 = arith.constant 0 : i32
    %c0_i32_1 = arith.constant 0 : i32
    return %c0_i32, %c0_i32_0 : i32, i32
  }
  func.func @transform_6(%arg0: i32, %arg1: i32) -> (i32, i32) {
    %c0_i32 = arith.constant 0 : i32
    %c0_i32_0 = arith.constant 0 : i32
    %c0_i32_1 = arith.constant 0 : i32
    return %c0_i32, %c0_i32_0 : i32, i32
  }
  func.func @transform_7(%arg0: i32, %arg1: i32) -> (i32, i32, i32) {
    %c0_i32 = arith.constant 0 : i32
    %c0_i32_0 = arith.constant 0 : i32
    return %arg0, %arg1, %c0_i32 : i32, i32, i32
  }
  func.func @transform_8(%arg0: i32, %arg1: i32) -> (i32, i32, i32) {
    %c0_i32 = arith.constant 0 : i32
    %c0_i32_0 = arith.constant 0 : i32
    return %arg0, %c0_i32, %arg1 : i32, i32, i32
  }
  func.func @transform_9(%arg0: i32, %arg1: i32) -> (i32, i32, i32) {
    %c0_i32 = arith.constant 0 : i32
    %c0_i32_0 = arith.constant 0 : i32
    return %arg0, %arg1, %c0_i32 : i32, i32, i32
  }
}

</mosaic_0001>

<llo_original>
// kernel: self_attention_forward.2
$region0: #{self_attention_forward.2}
  #allocation0 [shape = 'u32[]', space=smem, size = 0x4, offset = 0x4, fixed_abs, tag = 'smem constant byte address 0x4 - core index']
  #allocation1 [shape = 'u32[72,128]{1,0:T(1,128)}', space=vmem, size = 0x9000, scoped, tag = 'internal scratch']
  %s0 = inlined_call_operand.hbm [shape: f32[2,256,64], index: 0, kind: input, shape index: {}]
  %s1 = inlined_call_operand.vmem [shape: f32[64,8], index: 1, kind: input, shape index: {}]
  %s2 = inlined_call_operand.vmem [shape: f32[1,8], index: 2, kind: input, shape index: {}]
  %s3 = inlined_call_operand.vmem [shape: f32[8,64], index: 3, kind: input, shape index: {}]
  %s4 = inlined_call_operand.vmem [shape: f32[8,1], index: 4, kind: input, shape index: {}]
  %s5 = inlined_call_operand.vmem [shape: f32[64,64], index: 5, kind: input, shape index: {}]
  %s6 = inlined_call_operand.vmem [shape: f32[1,64], index: 6, kind: input, shape index: {}]
  %s7 = inlined_call_operand.vmem [shape: bf16[2,256,8], index: 7, kind: output, shape index: {0}]
  %s8 = inlined_call_operand.vmem [shape: bf16[2,8,256], index: 8, kind: output, shape index: {1}]
  %s9 = inlined_call_operand.vmem [shape: bf16[2,256,64], index: 9, kind: output, shape index: {2}]
  %10 = xla_tuple %s7, %s8, %s9
  %s11 = sld [smem:[#allocation0]]
  $region81: #{self_attention_forward.2} parent=0
    _
  %s13 = ssub.s32 1, %s11
  %s14 = scalar_select 0, %s13, %s11
  $region1: #{self_attention_forward.2} parent=0
    #allocation2 [shape = 'u8[262144]{0}', space=vmem, size = 0x40000, scoped, tag = 'input window, operand 0']
    #allocation3 [shape = 's32[2]{0}', space=sflag, size = 0x8, scoped, tag = 'scoped memory for self_attention_forward.2']
    %15 = vsyncpa [#allocation3], 0
    %s16 = scalar_lea.sflag [#allocation3], 1
    %17 = vsyncpa %s16, 0
    loop: start=0, step=1, limit=4
    $region2: #{self_attention_forward.2} parent=1 // loop_pre_header
      _
    $region3: #{self_attention_forward.2} parent=1 // loop_header
      %s19 = sphi 0, %s23
      %p20 = scmp.ge.s32.totalorder %s19, 4
      %s26 = sphi 0, %s38
      %s27 = sphi 0, %s34
      %s28 = sphi 0, %s26
      %s29 = sphi 0, %s27
      %s30 = sphi 0, %s28
      %s31 = sphi 0, %s29
      %s43 = sphi 0, %s45
      %s46 = sphi 0, %s43
      %s47 = sphi 0, %s46
      %s63 = sphi 0, %s47
      %s67 = sphi 0, %s67
      %s69 = sphi 0, %s67
      %s70 = sphi 0, %s69
      %s84 = sphi 0, %s70
      %s88 = sphi 0, %s88
      %s90 = sphi 0, %s88
      %s91 = sphi 0, %s90
      %s105 = sphi 0, %s91
      %s109 = sphi 0, %s109
      %s111 = sphi 0, %s109
      %s112 = sphi 0, %s111
      %s126 = sphi 0, %s112
      %s130 = sphi 0, %s130
      %s132 = sphi 0, %s130
      %s133 = sphi 0, %s132
      %s147 = sphi 0, %s133
      %s151 = sphi 0, %s151
      %s153 = sphi 0, %s151
      %s154 = sphi 0, %s153
      %s168 = sphi 0, %s154
      %s172 = sphi 0, %s172
      %s174 = sphi 0, %s172
      %s175 = sphi 0, %s174
      %s189 = sphi 0, %s175
      %s197 = sphi 0, %s199
      %s200 = sphi 0, %s197
      %s201 = sphi 0, %s200
      %s217 = sphi 0, %s201
      %s225 = sphi 0, %s227
      %s228 = sphi 0, %s225
      %s229 = sphi 0, %s228
      %s245 = sphi 0, %s229
      %s253 = sphi 0, %s255
      %s256 = sphi 0, %s253
      %s257 = sphi 0, %s256
      %s273 = sphi 0, %s257
    $region4: #{self_attention_forward.2} parent=1 // loop_header_branch
      %22 = sbr.rel (%p20) target = $region8
    $region5: #{self_attention_forward.2} parent=1 // loop_body
      %s24 = ssub.s32 %s19, 1
      %s25 = ssub.s32 %s19, 2
      %s32 = sadd.s32 1, %s27
      %p33 = scmp.ge.s32.totalorder %s32, 1
      %s34 = scalar_select %p33, 0, %s32
      %s35 = sadd.s32 1, %s26
      %s36 = scalar_select %p33, %s35, %s26
      %p37 = scmp.ge.s32.totalorder %s36, 2
      %s38 = scalar_select %p37, 0, %s36
      %s39 = ssub.s32 %s26, %s38
      %s40 = ssub.s32 %s27, %s34
      %s41 = sor.u32 %s39, %s40
      %p42 = scmp.eq.s32.totalorder %s41, 0
      %s44 = sadd.s32 %s43, 1
      %s45 = scalar_select %p42, %s43, %s44
      %p48 = pneg %p42
      %p49 = scmp.eq.s32.totalorder %s19, 1
      %p50 = por %p48, %p49
      %p51 = scmp.ne.s32.totalorder %s43, %s46
      %p52 = scmp.eq.s32.totalorder %s19, 0
      %p53 = por %p51, %p52
      %p54 = scmp.ne.s32.totalorder %s43, %s46
      %p55 = scmp.eq.s32.totalorder %s24, 1
      %p56 = por %p54, %p55
      %p57 = scmp.ne.s32.totalorder %s46, %s47
      %p58 = scmp.eq.s32.totalorder %s24, 0
      %p59 = por %p57, %p58
      %p60 = scmp.ne.s32.totalorder %s46, %s47
      %p61 = scmp.eq.s32.totalorder %s25, 1
      %p62 = por %p60, %p61
      %p64 = scmp.ne.s32.totalorder %s47, %s63
      %p65 = scmp.eq.s32.totalorder %s25, 0
      %p66 = por %p64, %p65
      %s68 = sadd.s32 %s67, 1
      %p71 = scmp.eq.s32.totalorder %s19, 1
      %p72 = scmp.ne.s32.totalorder %s67, %s69
      %p73 = scmp.eq.s32.totalorder %s19, 0
      %p74 = por %p72, %p73
      %p75 = scmp.ne.s32.totalorder %s67, %s69
      %p76 = scmp.eq.s32.totalorder %s24, 1
      %p77 = por %p75, %p76
      %p78 = scmp.ne.s32.totalorder %s69, %s70
      %p79 = scmp.eq.s32.totalorder %s24, 0
      %p80 = por %p78, %p79
      %p81 = scmp.ne.s32.totalorder %s69, %s70
      %p82 = scmp.eq.s32.totalorder %s25, 1
      %p83 = por %p81, %p82
      %p85 = scmp.ne.s32.totalorder %s70, %s84
      %p86 = scmp.eq.s32.totalorder %s25, 0
      %p87 = por %p85, %p86
      %s89 = sadd.s32 %s88, 1
      %p92 = scmp.eq.s32.totalorder %s19, 1
      %p93 = scmp.ne.s32.totalorder %s88, %s90
      %p94 = scmp.eq.s32.totalorder %s19, 0
      %p95 = por %p93, %p94
      %p96 = scmp.ne.s32.totalorder %s88, %s90
      %p97 = scmp.eq.s32.totalorder %s24, 1
      %p98 = por %p96, %p97
      %p99 = scmp.ne.s32.totalorder %s90, %s91
      %p100 = scmp.eq.s32.totalorder %s24, 0
      %p101 = por %p99, %p100
      %p102 = scmp.ne.s32.totalorder %s90, %s91
      %p103 = scmp.eq.s32.totalorder %s25, 1
      %p104 = por %p102, %p103
      %p106 = scmp.ne.s32.totalorder %s91, %s105
      %p107 = scmp.eq.s32.totalorder %s25, 0
      %p108 = por %p106, %p107
      %s110 = sadd.s32 %s109, 1
      %p113 = scmp.eq.s32.totalorder %s19, 1
      %p114 = scmp.ne.s32.totalorder %s109, %s111
      %p115 = scmp.eq.s32.totalorder %s19, 0
      %p116 = por %p114, %p115
      %p117 = scmp.ne.s32.totalorder %s109, %s111
      %p118 = scmp.eq.s32.totalorder %s24, 1
      %p119 = por %p117, %p118
      %p120 = scmp.ne.s32.totalorder %s111, %s112
      %p121 = scmp.eq.s32.totalorder %s24, 0
      %p122 = por %p120, %p121
      %p123 = scmp.ne.s32.totalorder %s111, %s112
      %p124 = scmp.eq.s32.totalorder %s25, 1
      %p125 = por %p123, %p124
      %p127 = scmp.ne.s32.totalorder %s112, %s126
      %p128 = scmp.eq.s32.totalorder %s25, 0
      %p129 = por %p127, %p128
      %s131 = sadd.s32 %s130, 1
      %p134 = scmp.eq.s32.totalorder %s19, 1
      %p135 = scmp.ne.s32.totalorder %s130, %s132
      %p136 = scmp.eq.s32.totalorder %s19, 0
      %p137 = por %p135, %p136
      %p138 = scmp.ne.s32.totalorder %s130, %s132
      %p139 = scmp.eq.s32.totalorder %s24, 1
      %p140 = por %p138, %p139
      %p141 = scmp.ne.s32.totalorder %s132, %s133
      %p142 = scmp.eq.s32.totalorder %s24, 0
      %p143 = por %p141, %p142
      %p144 = scmp.ne.s32.totalorder %s132, %s133
      %p145 = scmp.eq.s32.totalorder %s25, 1
      %p146 = por %p144, %p145
      %p148 = scmp.ne.s32.totalorder %s133, %s147
      %p149 = scmp.eq.s32.totalorder %s25, 0
      %p150 = por %p148, %p149
      %s152 = sadd.s32 %s151, 1
      %p155 = scmp.eq.s32.totalorder %s19, 1
      %p156 = scmp.ne.s32.totalorder %s151, %s153
      %p157 = scmp.eq.s32.totalorder %s19, 0
      %p158 = por %p156, %p157
      %p159 = scmp.ne.s32.totalorder %s151, %s153
      %p160 = scmp.eq.s32.totalorder %s24, 1
      %p161 = por %p159, %p160
      %p162 = scmp.ne.s32.totalorder %s153, %s154
      %p163 = scmp.eq.s32.totalorder %s24, 0
      %p164 = por %p162, %p163
      %p165 = scmp.ne.s32.totalorder %s153, %s154
      %p166 = scmp.eq.s32.totalorder %s25, 1
      %p167 = por %p165, %p166
      %p169 = scmp.ne.s32.totalorder %s154, %s168
      %p170 = scmp.eq.s32.totalorder %s25, 0
      %p171 = por %p169, %p170
      %s173 = sadd.s32 %s172, 1
      %p176 = scmp.eq.s32.totalorder %s19, 1
      %p177 = scmp.ne.s32.totalorder %s172, %s174
      %p178 = scmp.eq.s32.totalorder %s19, 0
      %p179 = por %p177, %p178
      %p180 = scmp.ne.s32.totalorder %s172, %s174
      %p181 = scmp.eq.s32.totalorder %s24, 1
      %p182 = por %p180, %p181
      %p183 = scmp.ne.s32.totalorder %s174, %s175
      %p184 = scmp.eq.s32.totalorder %s24, 0
      %p185 = por %p183, %p184
      %p186 = scmp.ne.s32.totalorder %s174, %s175
      %p187 = scmp.eq.s32.totalorder %s25, 1
      %p188 = por %p186, %p187
      %p190 = scmp.ne.s32.totalorder %s175, %s189
      %p191 = scmp.eq.s32.totalorder %s25, 0
      %p192 = por %p190, %p191
      %s193 = ssub.s32 %s26, %s38
      %s194 = ssub.s32 %s27, %s34
      %s195 = sor.u32 %s193, %s194
      %p196 = scmp.eq.s32.totalorder %s195, 0
      %s198 = sadd.s32 %s197, 1
      %s199 = scalar_select %p196, %s197, %s198
      %p202 = pneg %p196
      %p203 = scmp.eq.s32.totalorder %s19, 1
      %p204 = por %p202, %p203
      %p205 = scmp.ne.s32.totalorder %s197, %s200
      %p206 = scmp.eq.s32.totalorder %s19, 0
      %p207 = por %p205, %p206
      %p208 = scmp.ne.s32.totalorder %s197, %s200
      %p209 = scmp.eq.s32.totalorder %s24, 1
      %p210 = por %p208, %p209
      %p211 = scmp.ne.s32.totalorder %s200, %s201
      %p212 = scmp.eq.s32.totalorder %s24, 0
      %p213 = por %p211, %p212
      %p214 = scmp.ne.s32.totalorder %s200, %s201
      %p215 = scmp.eq.s32.totalorder %s25, 1
      %p216 = por %p214, %p215
      %p218 = scmp.ne.s32.totalorder %s201, %s217
      %p219 = scmp.eq.s32.totalorder %s25, 0
      %p220 = por %p218, %p219
      %s221 = ssub.s32 %s26, %s38
      %s222 = ssub.s32 %s27, %s34
      %s223 = sor.u32 %s221, %s222
      %p224 = scmp.eq.s32.totalorder %s223, 0
      %s226 = sadd.s32 %s225, 1
      %s227 = scalar_select %p224, %s225, %s226
      %p230 = pneg %p224
      %p231 = scmp.eq.s32.totalorder %s19, 1
      %p232 = por %p230, %p231
      %p233 = scmp.ne.s32.totalorder %s225, %s228
      %p234 = scmp.eq.s32.totalorder %s19, 0
      %p235 = por %p233, %p234
      %p236 = scmp.ne.s32.totalorder %s225, %s228
      %p237 = scmp.eq.s32.totalorder %s24, 1
      %p238 = por %p236, %p237
      %p239 = scmp.ne.s32.totalorder %s228, %s229
      %p240 = scmp.eq.s32.totalorder %s24, 0
      %p241 = por %p239, %p240
      %p242 = scmp.ne.s32.totalorder %s228, %s229
      %p243 = scmp.eq.s32.totalorder %s25, 1
      %p244 = por %p242, %p243
      %p246 = scmp.ne.s32.totalorder %s229, %s245
      %p247 = scmp.eq.s32.totalorder %s25, 0
      %p248 = por %p246, %p247
      %s249 = ssub.s32 %s26, %s38
      %s250 = ssub.s32 %s27, %s34
      %s251 = sor.u32 %s249, %s250
      %p252 = scmp.eq.s32.totalorder %s251, 0
      %s254 = sadd.s32 %s253, 1
      %s255 = scalar_select %p252, %s253, %s254
      %p258 = pneg %p252
      %p259 = scmp.eq.s32.totalorder %s19, 1
      %p260 = por %p258, %p259
      %p261 = scmp.ne.s32.totalorder %s253, %s256
      %p262 = scmp.eq.s32.totalorder %s19, 0
      %p263 = por %p261, %p262
      %p264 = scmp.ne.s32.totalorder %s253, %s256
      %p265 = scmp.eq.s32.totalorder %s24, 1
      %p266 = por %p264, %p265
      %p267 = scmp.ne.s32.totalorder %s256, %s257
      %p268 = scmp.eq.s32.totalorder %s24, 0
      %p269 = por %p267, %p268
      %p270 = scmp.ne.s32.totalorder %s256, %s257
      %p271 = scmp.eq.s32.totalorder %s25, 1
      %p272 = por %p270, %p271
      %p274 = scmp.ne.s32.totalorder %s257, %s273
      %p275 = scmp.eq.s32.totalorder %s25, 0
      %p276 = por %p274, %p275
      %p277 = scmp.le.s32.totalorder 1, %s19
      %p278 = scmp.lt.s32.totalorder %s19, 3
      %p279 = pnand %p277, %p278
      %p280 = pneg %p279
      // Predicated region
      $region9: #{self_attention_forward.2} parent=5 // pred_check
        _
      $region10: #{self_attention_forward.2} parent=5 // pred_check_branch
        %282 = sbr.rel (%p279) target = $region12
      $region11: #{self_attention_forward.2} parent=5 // pred_region
        %s283 = ssub.s32 %s19, 1
        // Predicated region
        $region13: #{self_attention_forward.2} parent=11 // pred_check
          %p284 = pneg %p80
        $region14: #{self_attention_forward.2} parent=11 // pred_check_branch
          %286 = sbr.rel (%p284) target = $region16
        $region15: #{self_attention_forward.2} parent=11 // pred_region
          _
        $region16: #{self_attention_forward.2} parent=11 // pred_fallthru
          _
        // Predicated region
        $region17: #{self_attention_forward.2} parent=11 // pred_check
          %p287 = pneg %p101
        $region18: #{self_attention_forward.2} parent=11 // pred_check_branch
          %289 = sbr.rel (%p287) target = $region20
        $region19: #{self_attention_forward.2} parent=11 // pred_region
          _
        $region20: #{self_attention_forward.2} parent=11 // pred_fallthru
          _
        // Predicated region
        $region21: #{self_attention_forward.2} parent=11 // pred_check
          %p290 = pneg %p122
        $region22: #{self_attention_forward.2} parent=11 // pred_check_branch
          %292 = sbr.rel (%p290) target = $region24
        $region23: #{self_attention_forward.2} parent=11 // pred_region
          _
        $region24: #{self_attention_forward.2} parent=11 // pred_fallthru
          _
        // Predicated region
        $region25: #{self_attention_forward.2} parent=11 // pred_check
          %p293 = pneg %p143
        $region26: #{self_attention_forward.2} parent=11 // pred_check_branch
          %295 = sbr.rel (%p293) target = $region28
        $region27: #{self_attention_forward.2} parent=11 // pred_region
          _
        $region28: #{self_attention_forward.2} parent=11 // pred_fallthru
          _
        // Predicated region
        $region29: #{self_attention_forward.2} parent=11 // pred_check
          %p296 = pneg %p164
        $region30: #{self_attention_forward.2} parent=11 // pred_check_branch
          %298 = sbr.rel (%p296) target = $region32
        $region31: #{self_attention_forward.2} parent=11 // pred_region
          _
        $region32: #{self_attention_forward.2} parent=11 // pred_fallthru
          _
        // Predicated region
        $region33: #{self_attention_forward.2} parent=11 // pred_check
          %p299 = pneg %p185
        $region34: #{self_attention_forward.2} parent=11 // pred_check_branch
          %301 = sbr.rel (%p299) target = $region36
        $region35: #{self_attention_forward.2} parent=11 // pred_region
          _
        $region36: #{self_attention_forward.2} parent=11 // pred_fallthru
          _
      $region12: #{self_attention_forward.2} parent=5 // pred_fallthru
        _
      %p302 = scmp.lt.s32.totalorder %s19, 2
      // Predicated region
      $region37: #{self_attention_forward.2} parent=5 // pred_check
        %p303 = pneg %p302
      $region38: #{self_attention_forward.2} parent=5 // pred_check_branch
        %305 = sbr.rel (%p303) target = $region40
      $region39: #{self_attention_forward.2} parent=5 // pred_region
        // Predicated region
        $region41: #{self_attention_forward.2} parent=39 // pred_check
          %p306 = pneg %p53
        $region42: #{self_attention_forward.2} parent=39 // pred_check_branch
          %308 = sbr.rel (%p306) target = $region44
        $region43: #{self_attention_forward.2} parent=39 // pred_region
          %s309 = sand.u32 %s43, 1
          %s310 = scalar_lea.sflag [#allocation3], %s309
          %s311 = sand.u32 %s43, 1
          %s312 = smul.addr %s311, 256
          %s313 = scalar_lea.vmem [#allocation2], %s312
          %s314 = smul.u32 32, %s27
          %316 = vsyncadd %s310, 0
          %s317 = smul.addr %s26, 32
          %s318 = sadd.s32 %s314, %s317
          %s319 = smul.addr %s318, 8
          %s320 = scalar_lea.hbm %s0, %s319
          %s321 = sshll.u32 %s320, 4
          %s322 = int_to_ptr.hbm [resolvable:$true] %s321
          %s323 = sshll.u32 %s313, 4
          %s324 = int_to_ptr.vmem [resolvable:$true] %s323
          %329 = dma.hbm_to_vmem [thread:$0]  %s322, 4096, %s324, %s310, 128, 128, 8
        $region44: #{self_attention_forward.2} parent=39 // pred_fallthru
          _
      $region40: #{self_attention_forward.2} parent=5 // pred_fallthru
        _
      %p330 = scmp.le.s32.totalorder 1, %s19
      %p331 = scmp.lt.s32.totalorder %s19, 3
      %p332 = pnand %p330, %p331
      %p333 = pneg %p332
      // Predicated region
      $region45: #{self_attention_forward.2} parent=5 // pred_check
        _
      $region46: #{self_attention_forward.2} parent=5 // pred_check_branch
        %335 = sbr.rel (%p332) target = $region48
      $region47: #{self_attention_forward.2} parent=5 // pred_region
        %s336 = ssub.s32 %s19, 1
        %s337 = sand.u32 %s46, 1
        %s338 = scalar_lea.sflag [#allocation3], %s337
        %s339 = sand.u32 %s46, 1
        %s340 = smul.addr %s339, 256
        %s341 = scalar_lea.vmem [#allocation2], %s340
        // Predicated region
        $region49: #{self_attention_forward.2} parent=47 // pred_check
          %p342 = pneg %p59
        $region50: #{self_attention_forward.2} parent=47 // pred_check_branch
          %344 = sbr.rel (%p342) target = $region52
        $region51: #{self_attention_forward.2} parent=47 // pred_region
          %346 = dma.done %s338, 4096
        $region52: #{self_attention_forward.2} parent=47 // pred_fallthru
          _
        %s347 = sand.u32 %s46, 1
        %s348 = scalar_lea.sflag [#allocation3], %s347
        %s349 = sand.u32 %s46, 1
        %s350 = smul.addr %s349, 256
        %s351 = scalar_lea.vmem [#allocation2], %s350
        %p352 = pneg %p59
        %p353 = pneg %p56
        %p354 = pneg %p80
        %p355 = pneg %p77
        %p356 = pneg %p101
        %p357 = pneg %p98
        %p358 = pneg %p122
        %p359 = pneg %p119
        %p360 = pneg %p143
        %p361 = pneg %p140
        %p362 = pneg %p164
        %p363 = pneg %p161
        %p364 = pneg %p185
        %p365 = pneg %p182
        %p366 = pneg %p213
        %p367 = pneg %p210
        %s368 = smul.u32 32, %s29
        %p369 = scmp.lt.s32.totalorder %s28, 1
        %s370 = scalar_select %p369, %s28, 1
        %p371 = scmp.lt.s32.totalorder %s368, 31
        %s372 = scalar_select %p371, %s368, 31
        %s373 = smul.addr %s370, 32
        %s374 = sadd.s32 %s372, %s373
        %s375 = smul.addr %s374, 4
        %s376 = scalar_lea.vmem %s7, %s375
        %p377 = pneg %p241
        %p378 = pneg %p238
        %s379 = smul.u32 2, %s29
        %p380 = scmp.lt.s32.totalorder %s28, 1
        %s381 = scalar_select %p380, %s28, 1
        %p382 = scmp.lt.s32.totalorder %s379, 1
        %s383 = scalar_select %p382, %s379, 1
        %s384 = smul.addr %s381, 2
        %s385 = sadd.s32 %s383, %s384
        %s386 = smul.addr %s385, 4
        %s387 = scalar_lea.vmem %s8, %s386
        %p388 = pneg %p269
        %p389 = pneg %p266
        %s390 = smul.u32 32, %s29
        %p391 = scmp.lt.s32.totalorder %s28, 1
        %s392 = scalar_select %p391, %s28, 1
        %p393 = scmp.lt.s32.totalorder %s390, 31
        %s394 = scalar_select %p393, %s390, 31
        %s395 = smul.addr %s392, 32
        %s396 = sadd.s32 %s394, %s395
        %s397 = smul.addr %s396, 4
        %s398 = scalar_lea.vmem %s9, %s397
        %s399 = smul.u32 32, %s29
        %s400 = smul.u32 32, %s29
        %p401 = scmp.lt.s32.totalorder %s28, 1
        %s402 = scalar_select %p401, %s28, 1
        %p403 = scmp.lt.s32.totalorder %s400, 31
        %s404 = scalar_select %p403, %s400, 31
        %s405 = smul.addr %s402, 32
        %s406 = sadd.s32 %s404, %s405
        %s407 = smul.addr %s406, 4
        %s408 = scalar_lea.vmem %s7, %s407
        %s409 = smul.u32 32, %s29
        %s410 = smul.u32 2, %s29
        %p411 = scmp.lt.s32.totalorder %s28, 1
        %s412 = scalar_select %p411, %s28, 1
        %p413 = scmp.lt.s32.totalorder %s410, 1
        %s414 = scalar_select %p413, %s410, 1
        %s415 = smul.addr %s412, 2
        %s416 = sadd.s32 %s414, %s415
        %s417 = smul.addr %s416, 4
        %s418 = scalar_lea.vmem %s8, %s417
        %s419 = smul.u32 2, %s29
        %s420 = smul.u32 32, %s29
        %p421 = scmp.lt.s32.totalorder %s28, 1
        %s422 = scalar_select %p421, %s28, 1
        %p423 = scmp.lt.s32.totalorder %s420, 31
        %s424 = scalar_select %p423, %s420, 31
        %s425 = smul.addr %s422, 32
        %s426 = sadd.s32 %s424, %s425
        %s427 = smul.addr %s426, 4
        %s428 = scalar_lea.vmem %s9, %s427
        %s429 = smul.u32 32, %s29
        %v430 = vld [vmem:[%s341] sm:$0xff]
        %v431 = vld [vmem:[%s341 + $0x8] sm:$0xff]
        %v432 = vld [vmem:[%s341 + $0x10] sm:$0xff]
        %v433 = vld [vmem:[%s341 + $0x18] sm:$0xff]
        %v434 = vld [vmem:[%s341 + $0x20] sm:$0xff]
        %v435 = vld [vmem:[%s341 + $0x28] sm:$0xff]
        %v436 = vld [vmem:[%s341 + $0x30] sm:$0xff]
        %v437 = vld [vmem:[%s341 + $0x38] sm:$0xff]
        %v438 = vld [vmem:[%s341 + $0x40] sm:$0xff]
        %v439 = vld [vmem:[%s341 + $0x48] sm:$0xff]
        %v440 = vld [vmem:[%s341 + $0x50] sm:$0xff]
        %v441 = vld [vmem:[%s341 + $0x58] sm:$0xff]
        %v442 = vld [vmem:[%s341 + $0x60] sm:$0xff]
        %v443 = vld [vmem:[%s341 + $0x68] sm:$0xff]
        %v444 = vld [vmem:[%s341 + $0x70] sm:$0xff]
        %v445 = vld [vmem:[%s341 + $0x78] sm:$0xff]
        %v446 = vld [vmem:[%s341 + $0x80] sm:$0xff]
        %v447 = vld [vmem:[%s341 + $0x88] sm:$0xff]
        %v448 = vld [vmem:[%s341 + $0x90] sm:$0xff]
        %v449 = vld [vmem:[%s341 + $0x98] sm:$0xff]
        %v450 = vld [vmem:[%s341 + $0xa0] sm:$0xff]
        %v451 = vld [vmem:[%s341 + $0xa8] sm:$0xff]
        %v452 = vld [vmem:[%s341 + $0xb0] sm:$0xff]
        %v453 = vld [vmem:[%s341 + $0xb8] sm:$0xff]
        %v454 = vld [vmem:[%s341 + $0xc0] sm:$0xff]
        %v455 = vld [vmem:[%s341 + $0xc8] sm:$0xff]
        %v456 = vld [vmem:[%s341 + $0xd0] sm:$0xff]
        %v457 = vld [vmem:[%s341 + $0xd8] sm:$0xff]
        %v458 = vld [vmem:[%s341 + $0xe0] sm:$0xff]
        %v459 = vld [vmem:[%s341 + $0xe8] sm:$0xff]
        %v460 = vld [vmem:[%s341 + $0xf0] sm:$0xff]
        %v461 = vld [vmem:[%s341 + $0xf8] sm:$0xff]
        %v462 = vld [vmem:[%s1] sm:$0xff]
        %v463 = vld [vmem:[%s1 + $0x8] sm:$0xff]
        %v464 = vld [vmem:[%s1 + $0x10] sm:$0xff]
        %v465 = vld [vmem:[%s1 + $0x18] sm:$0xff]
        %v466 = vld [vmem:[%s1 + $0x20] sm:$0xff]
        %v467 = vld [vmem:[%s1 + $0x28] sm:$0xff]
        %v468 = vld [vmem:[%s1 + $0x30] sm:$0xff]
        %v469 = vld [vmem:[%s1 + $0x38] sm:$0xff]
        %v470 = vld [vmem:[%s2] sm:$0x1]
        %v472 = vperm.slane %v470, 0
        %vm474 = vcmask 523264
        %v476 = vsel %vm474, %v430, 0
        %v479 = vsel %vm474, %v431, 0
        %v482 = vsel %vm474, %v432, 0
        %v485 = vsel %vm474, %v433, 0
        %v488 = vsel %vm474, %v434, 0
        %v491 = vsel %vm474, %v435, 0
        %v494 = vsel %vm474, %v436, 0
        %v497 = vsel %vm474, %v437, 0
        %v500 = vsel %vm474, %v438, 0
        %v503 = vsel %vm474, %v439, 0
        %v506 = vsel %vm474, %v440, 0
        %v509 = vsel %vm474, %v441, 0
        %v512 = vsel %vm474, %v442, 0
        %v515 = vsel %vm474, %v443, 0
        %v518 = vsel %vm474, %v444, 0
        %v521 = vsel %vm474, %v445, 0
        %v524 = vsel %vm474, %v446, 0
        %v527 = vsel %vm474, %v447, 0
        %v530 = vsel %vm474, %v448, 0
        %v533 = vsel %vm474, %v449, 0
        %v536 = vsel %vm474, %v450, 0
        %v539 = vsel %vm474, %v451, 0
        %v542 = vsel %vm474, %v452, 0
        %v545 = vsel %vm474, %v453, 0
        %v548 = vsel %vm474, %v454, 0
        %v551 = vsel %vm474, %v455, 0
        %v554 = vsel %vm474, %v456, 0
        %v557 = vsel %vm474, %v457, 0
        %v560 = vsel %vm474, %v458, 0
        %v563 = vsel %vm474, %v459, 0
        %v566 = vsel %vm474, %v460, 0
        %v569 = vsel %vm474, %v461, 0
        %571 = vmatpush.msra.mxu0 0.0
        %572 = vmatpush.msra.mxu0 0.0
        %573 = vmatpush.msra.mxu0 0.0
        %574 = vmatpush.msra.mxu0 0.0
        %575 = vmatpush.msra.mxu0 0.0
        %576 = vmatpush.msra.mxu0 0.0
        %577 = vmatpush.msra.mxu0 0.0
        %578 = vmatpush.msra.mxu0 0.0
        %579 = vmatpush.msra.mxu0 %v469
        %580 = vmatpush.msra.mxu0 %v468
        %581 = vmatpush.msra.mxu0 %v467
        %582 = vmatpush.msra.mxu0 %v466
        %583 = vmatpush.msra.mxu0 %v465
        %584 = vmatpush.msra.mxu0 %v464
        %585 = vmatpush.msra.mxu0 %v463
        %586 = vmatpush.msra.mxu0 %v462
        %587 = vmatmul.f32.gmra.mxu0 %v476
        %v588 = vpop.f32.mrf.mxu0
        %v589 = vadd.f32 %v472, %v588
        %590 = vmatmul.f32.gmra.mxu0 %v479
        %v591 = vpop.f32.mrf.mxu0
        %v592 = vadd.f32 %v472, %v591
        %593 = vmatmul.f32.gmra.mxu0 %v482
        %v594 = vpop.f32.mrf.mxu0
        %v595 = vadd.f32 %v472, %v594
        %596 = vmatmul.f32.gmra.mxu0 %v485
        %v597 = vpop.f32.mrf.mxu0
        %v598 = vadd.f32 %v472, %v597
        %599 = vmatmul.f32.gmra.mxu0 %v488
        %v600 = vpop.f32.mrf.mxu0
        %v601 = vadd.f32 %v472, %v600
        %602 = vmatmul.f32.gmra.mxu0 %v491
        %v603 = vpop.f32.mrf.mxu0
        %v604 = vadd.f32 %v472, %v603
        %605 = vmatmul.f32.gmra.mxu0 %v494
        %v606 = vpop.f32.mrf.mxu0
        %v607 = vadd.f32 %v472, %v606
        %608 = vmatmul.f32.gmra.mxu0 %v497
        %v609 = vpop.f32.mrf.mxu0
        %v610 = vadd.f32 %v472, %v609
        %611 = vmatmul.f32.gmra.mxu0 %v500
        %v612 = vpop.f32.mrf.mxu0
        %v613 = vadd.f32 %v472, %v612
        %614 = vmatmul.f32.gmra.mxu0 %v503
        %v615 = vpop.f32.mrf.mxu0
        %v616 = vadd.f32 %v472, %v615
        %617 = vmatmul.f32.gmra.mxu0 %v506
        %v618 = vpop.f32.mrf.mxu0
        %v619 = vadd.f32 %v472, %v618
        %620 = vmatmul.f32.gmra.mxu0 %v509
        %v621 = vpop.f32.mrf.mxu0
        %v622 = vadd.f32 %v472, %v621
        %623 = vmatmul.f32.gmra.mxu0 %v512
        %v624 = vpop.f32.mrf.mxu0
        %v625 = vadd.f32 %v472, %v624
        %626 = vmatmul.f32.gmra.mxu0 %v515
        %v627 = vpop.f32.mrf.mxu0
        %v628 = vadd.f32 %v472, %v627
        %629 = vmatmul.f32.gmra.mxu0 %v518
        %v630 = vpop.f32.mrf.mxu0
        %v631 = vadd.f32 %v472, %v630
        %632 = vmatmul.f32.gmra.mxu0 %v521
        %v633 = vpop.f32.mrf.mxu0
        %v634 = vadd.f32 %v472, %v633
        %635 = vmatmul.f32.gmra.mxu0 %v524
        %v636 = vpop.f32.mrf.mxu0
        %v637 = vadd.f32 %v472, %v636
        %638 = vmatmul.f32.gmra.mxu0 %v527
        %v639 = vpop.f32.mrf.mxu0
        %v640 = vadd.f32 %v472, %v639
        %641 = vmatmul.f32.gmra.mxu0 %v530
        %v642 = vpop.f32.mrf.mxu0
        %v643 = vadd.f32 %v472, %v642
        %644 = vmatmul.f32.gmra.mxu0 %v533
        %v645 = vpop.f32.mrf.mxu0
        %v646 = vadd.f32 %v472, %v645
        %647 = vmatmul.f32.gmra.mxu0 %v536
        %v648 = vpop.f32.mrf.mxu0
        %v649 = vadd.f32 %v472, %v648
        %650 = vmatmul.f32.gmra.mxu0 %v539
        %v651 = vpop.f32.mrf.mxu0
        %v652 = vadd.f32 %v472, %v651
        %653 = vmatmul.f32.gmra.mxu0 %v542
        %v654 = vpop.f32.mrf.mxu0
        %v655 = vadd.f32 %v472, %v654
        %656 = vmatmul.f32.gmra.mxu0 %v545
        %v657 = vpop.f32.mrf.mxu0
        %v658 = vadd.f32 %v472, %v657
        %659 = vmatmul.f32.gmra.mxu0 %v548
        %v660 = vpop.f32.mrf.mxu0
        %v661 = vadd.f32 %v472, %v660
        %662 = vmatmul.f32.gmra.mxu0 %v551
        %v663 = vpop.f32.mrf.mxu0
        %v664 = vadd.f32 %v472, %v663
        %665 = vmatmul.f32.gmra.mxu0 %v554
        %v666 = vpop.f32.mrf.mxu0
        %v667 = vadd.f32 %v472, %v666
        %668 = vmatmul.f32.gmra.mxu0 %v557
        %v669 = vpop.f32.mrf.mxu0
        %v670 = vadd.f32 %v472, %v669
        %671 = vmatmul.f32.gmra.mxu0 %v560
        %v672 = vpop.f32.mrf.mxu0
        %v673 = vadd.f32 %v472, %v672
        %674 = vmatmul.f32.gmra.mxu0 %v563
        %v675 = vpop.f32.mrf.mxu0
        %v676 = vadd.f32 %v472, %v675
        %677 = vmatmul.f32.gmra.mxu0 %v566
        %v678 = vpop.f32.mrf.mxu0
        %v679 = vadd.f32 %v472, %v678
        %680 = vmatmul.f32.gmra.mxu0 %v569
        %v681 = vpop.f32.mrf.mxu0
        %v682 = vadd.f32 %v472, %v681
        %683 = vdwg.mxu0
        %v684 = vld [vmem:[%s3] sm:$0xff]
        %v685 = vld [vmem:[%s4] sm:$0xff]
        %687 = vset.pattern.permute.xlu0 0
        %688 = vperm.xlu0 %687, %v685
        %v689 = vpop.permute.xlu0 %688
        %v692 = vsel %vm474, %v684, 0
        %694 = vmatpush.xpose.msra.mxu0 %v521
        %695 = vmatpush.xpose.msra.mxu0 %v518
        %696 = vmatpush.xpose.msra.mxu0 %v515
        %697 = vmatpush.xpose.msra.mxu0 %v512
        %698 = vmatpush.xpose.msra.mxu0 %v509
        %699 = vmatpush.xpose.msra.mxu0 %v506
        %700 = vmatpush.xpose.msra.mxu0 %v503
        %701 = vmatpush.xpose.msra.mxu0 %v500
        %702 = vmatpush.xpose.msra.mxu0 %v497
        %703 = vmatpush.xpose.msra.mxu0 %v494
        %704 = vmatpush.xpose.msra.mxu0 %v491
        %705 = vmatpush.xpose.msra.mxu0 %v488
        %706 = vmatpush.xpose.msra.mxu0 %v485
        %707 = vmatpush.xpose.msra.mxu0 %v482
        %708 = vmatpush.xpose.msra.mxu0 %v479
        %709 = vmatpush.xpose.msra.mxu0 %v476
        %710 = vmatmul.f32.gmra.mxu0 %v692
        %v711 = vpop.f32.mrf.mxu0
        %v712 = vadd.f32 %v689, %v711
        %713 = vdwg.mxu0
        %714 = vmatpush.xpose.msra.mxu0 %v569
        %715 = vmatpush.xpose.msra.mxu0 %v566
        %716 = vmatpush.xpose.msra.mxu0 %v563
        %717 = vmatpush.xpose.msra.mxu0 %v560
        %718 = vmatpush.xpose.msra.mxu0 %v557
        %719 = vmatpush.xpose.msra.mxu0 %v554
        %720 = vmatpush.xpose.msra.mxu0 %v551
        %721 = vmatpush.xpose.msra.mxu0 %v548
        %722 = vmatpush.xpose.msra.mxu0 %v545
        %723 = vmatpush.xpose.msra.mxu0 %v542
        %724 = vmatpush.xpose.msra.mxu0 %v539
        %725 = vmatpush.xpose.msra.mxu0 %v536
        %726 = vmatpush.xpose.msra.mxu0 %v533
        %727 = vmatpush.xpose.msra.mxu0 %v530
        %728 = vmatpush.xpose.msra.mxu0 %v527
        %729 = vmatpush.xpose.msra.mxu0 %v524
        %730 = vmatmul.f32.gmra.mxu0 %v692
        %v731 = vpop.f32.mrf.mxu0
        %v732 = vadd.f32 %v689, %v731
        %733 = vdwg.mxu0
        %v734 = vld [vmem:[%s5] sm:$0xff]
        %v735 = vld [vmem:[%s5 + $0x8] sm:$0xff]
        %v736 = vld [vmem:[%s5 + $0x10] sm:$0xff]
        %v737 = vld [vmem:[%s5 + $0x18] sm:$0xff]
        %v738 = vld [vmem:[%s5 + $0x20] sm:$0xff]
        %v739 = vld [vmem:[%s5 + $0x28] sm:$0xff]
        %v740 = vld [vmem:[%s5 + $0x30] sm:$0xff]
        %v741 = vld [vmem:[%s5 + $0x38] sm:$0xff]
        %v742 = vld [vmem:[%s6] sm:$0x1]
        %v744 = vperm.slane %v742, 0
        %746 = vmatpush.msra.mxu0 0.0
        %747 = vmatpush.msra.mxu0 0.0
        %748 = vmatpush.msra.mxu0 0.0
        %749 = vmatpush.msra.mxu0 0.0
        %750 = vmatpush.msra.mxu0 0.0
        %751 = vmatpush.msra.mxu0 0.0
        %752 = vmatpush.msra.mxu0 0.0
        %753 = vmatpush.msra.mxu0 0.0
        %754 = vmatpush.msra.mxu0 %v741
        %755 = vmatpush.msra.mxu0 %v740
        %756 = vmatpush.msra.mxu0 %v739
        %757 = vmatpush.msra.mxu0 %v738
        %758 = vmatpush.msra.mxu0 %v737
        %759 = vmatpush.msra.mxu0 %v736
        %760 = vmatpush.msra.mxu0 %v735
        %761 = vmatpush.msra.mxu0 %v734
        %762 = vmatmul.f32.gmra.mxu0 %v476
        %v763 = vpop.f32.mrf.mxu0
        %v764 = vadd.f32 %v744, %v763
        %765 = vmatmul.f32.gmra.mxu0 %v479
        %v766 = vpop.f32.mrf.mxu0
        %v767 = vadd.f32 %v744, %v766
        %768 = vmatmul.f32.gmra.mxu0 %v482
        %v769 = vpop.f32.mrf.mxu0
        %v770 = vadd.f32 %v744, %v769
        %771 = vmatmul.f32.gmra.mxu0 %v485
        %v772 = vpop.f32.mrf.mxu0
        %v773 = vadd.f32 %v744, %v772
        %774 = vmatmul.f32.gmra.mxu0 %v488
        %v775 = vpop.f32.mrf.mxu0
        %v776 = vadd.f32 %v744, %v775
        %777 = vmatmul.f32.gmra.mxu0 %v491
        %v778 = vpop.f32.mrf.mxu0
        %v779 = vadd.f32 %v744, %v778
        %780 = vmatmul.f32.gmra.mxu0 %v494
        %v781 = vpop.f32.mrf.mxu0
        %v782 = vadd.f32 %v744, %v781
        %783 = vmatmul.f32.gmra.mxu0 %v497
        %v784 = vpop.f32.mrf.mxu0
        %v785 = vadd.f32 %v744, %v784
        %786 = vmatmul.f32.gmra.mxu0 %v500
        %v787 = vpop.f32.mrf.mxu0
        %v788 = vadd.f32 %v744, %v787
        %789 = vmatmul.f32.gmra.mxu0 %v503
        %v790 = vpop.f32.mrf.mxu0
        %v791 = vadd.f32 %v744, %v790
        %792 = vmatmul.f32.gmra.mxu0 %v506
        %v793 = vpop.f32.mrf.mxu0
        %v794 = vadd.f32 %v744, %v793
        %795 = vmatmul.f32.gmra.mxu0 %v509
        %v796 = vpop.f32.mrf.mxu0
        %v797 = vadd.f32 %v744, %v796
        %798 = vmatmul.f32.gmra.mxu0 %v512
        %v799 = vpop.f32.mrf.mxu0
        %v800 = vadd.f32 %v744, %v799
        %801 = vmatmul.f32.gmra.mxu0 %v515
        %v802 = vpop.f32.mrf.mxu0
        %v803 = vadd.f32 %v744, %v802
        %804 = vmatmul.f32.gmra.mxu0 %v518
        %v805 = vpop.f32.mrf.mxu0
        %v806 = vadd.f32 %v744, %v805
        %807 = vmatmul.f32.gmra.mxu0 %v521
        %v808 = vpop.f32.mrf.mxu0
        %v809 = vadd.f32 %v744, %v808
        %810 = vmatmul.f32.gmra.mxu0 %v524
        %v811 = vpop.f32.mrf.mxu0
        %v812 = vadd.f32 %v744, %v811
        %813 = vmatmul.f32.gmra.mxu0 %v527
        %v814 = vpop.f32.mrf.mxu0
        %v815 = vadd.f32 %v744, %v814
        %816 = vmatmul.f32.gmra.mxu0 %v530
        %v817 = vpop.f32.mrf.mxu0
        %v818 = vadd.f32 %v744, %v817
        %819 = vmatmul.f32.gmra.mxu0 %v533
        %v820 = vpop.f32.mrf.mxu0
        %v821 = vadd.f32 %v744, %v820
        %822 = vmatmul.f32.gmra.mxu0 %v536
        %v823 = vpop.f32.mrf.mxu0
        %v824 = vadd.f32 %v744, %v823
        %825 = vmatmul.f32.gmra.mxu0 %v539
        %v826 = vpop.f32.mrf.mxu0
        %v827 = vadd.f32 %v744, %v826
        %828 = vmatmul.f32.gmra.mxu0 %v542
        %v829 = vpop.f32.mrf.mxu0
        %v830 = vadd.f32 %v744, %v829
        %831 = vmatmul.f32.gmra.mxu0 %v545
        %v832 = vpop.f32.mrf.mxu0
        %v833 = vadd.f32 %v744, %v832
        %834 = vmatmul.f32.gmra.mxu0 %v548
        %v835 = vpop.f32.mrf.mxu0
        %v836 = vadd.f32 %v744, %v835
        %837 = vmatmul.f32.gmra.mxu0 %v551
        %v838 = vpop.f32.mrf.mxu0
        %v839 = vadd.f32 %v744, %v838
        %840 = vmatmul.f32.gmra.mxu0 %v554
        %v841 = vpop.f32.mrf.mxu0
        %v842 = vadd.f32 %v744, %v841
        %843 = vmatmul.f32.gmra.mxu0 %v557
        %v844 = vpop.f32.mrf.mxu0
        %v845 = vadd.f32 %v744, %v844
        %846 = vmatmul.f32.gmra.mxu0 %v560
        %v847 = vpop.f32.mrf.mxu0
        %v848 = vadd.f32 %v744, %v847
        %849 = vmatmul.f32.gmra.mxu0 %v563
        %v850 = vpop.f32.mrf.mxu0
        %v851 = vadd.f32 %v744, %v850
        %852 = vmatmul.f32.gmra.mxu0 %v566
        %v853 = vpop.f32.mrf.mxu0
        %v854 = vadd.f32 %v744, %v853
        %855 = vmatmul.f32.gmra.mxu0 %v569
        %v856 = vpop.f32.mrf.mxu0
        %v857 = vadd.f32 %v744, %v856
        %858 = vdwg.mxu0
        %v859 = vpack.c.bf16 %v589, %v589
        %v860 = vpack.c.bf16 %v592, %v592
        %v861 = vpack.c.bf16 %v595, %v595
        %v862 = vpack.c.bf16 %v598, %v598
        %v863 = vpack.c.bf16 %v601, %v601
        %v864 = vpack.c.bf16 %v604, %v604
        %v865 = vpack.c.bf16 %v607, %v607
        %v866 = vpack.c.bf16 %v610, %v610
        %v867 = vpack.c.bf16 %v613, %v613
        %v868 = vpack.c.bf16 %v616, %v616
        %v869 = vpack.c.bf16 %v619, %v619
        %v870 = vpack.c.bf16 %v622, %v622
        %v871 = vpack.c.bf16 %v625, %v625
        %v872 = vpack.c.bf16 %v628, %v628
        %v873 = vpack.c.bf16 %v631, %v631
        %v874 = vpack.c.bf16 %v634, %v634
        %v875 = vpack.c.bf16 %v637, %v637
        %v876 = vpack.c.bf16 %v640, %v640
        %v877 = vpack.c.bf16 %v643, %v643
        %v878 = vpack.c.bf16 %v646, %v646
        %v879 = vpack.c.bf16 %v649, %v649
        %v880 = vpack.c.bf16 %v652, %v652
        %v881 = vpack.c.bf16 %v655, %v655
        %v882 = vpack.c.bf16 %v658, %v658
        %v883 = vpack.c.bf16 %v661, %v661
        %v884 = vpack.c.bf16 %v664, %v664
        %v885 = vpack.c.bf16 %v667, %v667
        %v886 = vpack.c.bf16 %v670, %v670
        %v887 = vpack.c.bf16 %v673, %v673
        %v888 = vpack.c.bf16 %v676, %v676
        %v889 = vpack.c.bf16 %v679, %v679
        %v890 = vpack.c.bf16 %v682, %v682
        %vm891 = vcmask 60416
        %892 = vst.msk [vmem:[%s408] sm:$0xf] %vm891, %v859
        %893 = vst.msk [vmem:[%s408 + $0x4] sm:$0xf] %vm891, %v860
        %894 = vst.msk [vmem:[%s408 + $0x8] sm:$0xf] %vm891, %v861
        %895 = vst.msk [vmem:[%s408 + $0xc] sm:$0xf] %vm891, %v862
        %896 = vst.msk [vmem:[%s408 + $0x10] sm:$0xf] %vm891, %v863
        %897 = vst.msk [vmem:[%s408 + $0x14] sm:$0xf] %vm891, %v864
        %898 = vst.msk [vmem:[%s408 + $0x18] sm:$0xf] %vm891, %v865
        %899 = vst.msk [vmem:[%s408 + $0x1c] sm:$0xf] %vm891, %v866
        %900 = vst.msk [vmem:[%s408 + $0x20] sm:$0xf] %vm891, %v867
        %901 = vst.msk [vmem:[%s408 + $0x24] sm:$0xf] %vm891, %v868
        %902 = vst.msk [vmem:[%s408 + $0x28] sm:$0xf] %vm891, %v869
        %903 = vst.msk [vmem:[%s408 + $0x2c] sm:$0xf] %vm891, %v870
        %904 = vst.msk [vmem:[%s408 + $0x30] sm:$0xf] %vm891, %v871
        %905 = vst.msk [vmem:[%s408 + $0x34] sm:$0xf] %vm891, %v872
        %906 = vst.msk [vmem:[%s408 + $0x38] sm:$0xf] %vm891, %v873
        %907 = vst.msk [vmem:[%s408 + $0x3c] sm:$0xf] %vm891, %v874
        %908 = vst.msk [vmem:[%s408 + $0x40] sm:$0xf] %vm891, %v875
        %909 = vst.msk [vmem:[%s408 + $0x44] sm:$0xf] %vm891, %v876
        %910 = vst.msk [vmem:[%s408 + $0x48] sm:$0xf] %vm891, %v877
        %911 = vst.msk [vmem:[%s408 + $0x4c] sm:$0xf] %vm891, %v878
        %912 = vst.msk [vmem:[%s408 + $0x50] sm:$0xf] %vm891, %v879
        %913 = vst.msk [vmem:[%s408 + $0x54] sm:$0xf] %vm891, %v880
        %914 = vst.msk [vmem:[%s408 + $0x58] sm:$0xf] %vm891, %v881
        %915 = vst.msk [vmem:[%s408 + $0x5c] sm:$0xf] %vm891, %v882
        %916 = vst.msk [vmem:[%s408 + $0x60] sm:$0xf] %vm891, %v883
        %917 = vst.msk [vmem:[%s408 + $0x64] sm:$0xf] %vm891, %v884
        %918 = vst.msk [vmem:[%s408 + $0x68] sm:$0xf] %vm891, %v885
        %919 = vst.msk [vmem:[%s408 + $0x6c] sm:$0xf] %vm891, %v886
        %920 = vst.msk [vmem:[%s408 + $0x70] sm:$0xf] %vm891, %v887
        %921 = vst.msk [vmem:[%s408 + $0x74] sm:$0xf] %vm891, %v888
        %922 = vst.msk [vmem:[%s408 + $0x78] sm:$0xf] %vm891, %v889
        %923 = vst.msk [vmem:[%s408 + $0x7c] sm:$0xf] %vm891, %v890
        %v924 = vpack.c.bf16 %v732, %v712
        %925 = vst [vmem:[%s418] sm:$0xff] %v924
        %v926 = vpack.c.bf16 %v764, %v764
        %v927 = vpack.c.bf16 %v767, %v767
        %v928 = vpack.c.bf16 %v770, %v770
        %v929 = vpack.c.bf16 %v773, %v773
        %v930 = vpack.c.bf16 %v776, %v776
        %v931 = vpack.c.bf16 %v779, %v779
        %v932 = vpack.c.bf16 %v782, %v782
        %v933 = vpack.c.bf16 %v785, %v785
        %v934 = vpack.c.bf16 %v788, %v788
        %v935 = vpack.c.bf16 %v791, %v791
        %v936 = vpack.c.bf16 %v794, %v794
        %v937 = vpack.c.bf16 %v797, %v797
        %v938 = vpack.c.bf16 %v800, %v800
        %v939 = vpack.c.bf16 %v803, %v803
        %v940 = vpack.c.bf16 %v806, %v806
        %v941 = vpack.c.bf16 %v809, %v809
        %v942 = vpack.c.bf16 %v812, %v812
        %v943 = vpack.c.bf16 %v815, %v815
        %v944 = vpack.c.bf16 %v818, %v818
        %v945 = vpack.c.bf16 %v821, %v821
        %v946 = vpack.c.bf16 %v824, %v824
        %v947 = vpack.c.bf16 %v827, %v827
        %v948 = vpack.c.bf16 %v830, %v830
        %v949 = vpack.c.bf16 %v833, %v833
        %v950 = vpack.c.bf16 %v836, %v836
        %v951 = vpack.c.bf16 %v839, %v839
        %v952 = vpack.c.bf16 %v842, %v842
        %v953 = vpack.c.bf16 %v845, %v845
        %v954 = vpack.c.bf16 %v848, %v848
        %v955 = vpack.c.bf16 %v851, %v851
        %v956 = vpack.c.bf16 %v854, %v854
        %v957 = vpack.c.bf16 %v857, %v857
        %vm958 = vcmask 519168
        %959 = vst.msk [vmem:[%s428] sm:$0xf] %vm958, %v926
        %960 = vst.msk [vmem:[%s428 + $0x4] sm:$0xf] %vm958, %v927
        %961 = vst.msk [vmem:[%s428 + $0x8] sm:$0xf] %vm958, %v928
        %962 = vst.msk [vmem:[%s428 + $0xc] sm:$0xf] %vm958, %v929
        %963 = vst.msk [vmem:[%s428 + $0x10] sm:$0xf] %vm958, %v930
        %964 = vst.msk [vmem:[%s428 + $0x14] sm:$0xf] %vm958, %v931
        %965 = vst.msk [vmem:[%s428 + $0x18] sm:$0xf] %vm958, %v932
        %966 = vst.msk [vmem:[%s428 + $0x1c] sm:$0xf] %vm958, %v933
        %967 = vst.msk [vmem:[%s428 + $0x20] sm:$0xf] %vm958, %v934
        %968 = vst.msk [vmem:[%s428 + $0x24] sm:$0xf] %vm958, %v935
        %969 = vst.msk [vmem:[%s428 + $0x28] sm:$0xf] %vm958, %v936
        %970 = vst.msk [vmem:[%s428 + $0x2c] sm:$0xf] %vm958, %v937
        %971 = vst.msk [vmem:[%s428 + $0x30] sm:$0xf] %vm958, %v938
        %972 = vst.msk [vmem:[%s428 + $0x34] sm:$0xf] %vm958, %v939
        %973 = vst.msk [vmem:[%s428 + $0x38] sm:$0xf] %vm958, %v940
        %974 = vst.msk [vmem:[%s428 + $0x3c] sm:$0xf] %vm958, %v941
        %975 = vst.msk [vmem:[%s428 + $0x40] sm:$0xf] %vm958, %v942
        %976 = vst.msk [vmem:[%s428 + $0x44] sm:$0xf] %vm958, %v943
        %977 = vst.msk [vmem:[%s428 + $0x48] sm:$0xf] %vm958, %v944
        %978 = vst.msk [vmem:[%s428 + $0x4c] sm:$0xf] %vm958, %v945
        %979 = vst.msk [vmem:[%s428 + $0x50] sm:$0xf] %vm958, %v946
        %980 = vst.msk [vmem:[%s428 + $0x54] sm:$0xf] %vm958, %v947
        %981 = vst.msk [vmem:[%s428 + $0x58] sm:$0xf] %vm958, %v948
        %982 = vst.msk [vmem:[%s428 + $0x5c] sm:$0xf] %vm958, %v949
        %983 = vst.msk [vmem:[%s428 + $0x60] sm:$0xf] %vm958, %v950
        %984 = vst.msk [vmem:[%s428 + $0x64] sm:$0xf] %vm958, %v951
        %985 = vst.msk [vmem:[%s428 + $0x68] sm:$0xf] %vm958, %v952
        %986 = vst.msk [vmem:[%s428 + $0x6c] sm:$0xf] %vm958, %v953
        %987 = vst.msk [vmem:[%s428 + $0x70] sm:$0xf] %vm958, %v954
        %988 = vst.msk [vmem:[%s428 + $0x74] sm:$0xf] %vm958, %v955
        %989 = vst.msk [vmem:[%s428 + $0x78] sm:$0xf] %vm958, %v956
        %990 = vst.msk [vmem:[%s428 + $0x7c] sm:$0xf] %vm958, %v957
        %s991 = smul.u32 32, %s29
        %p992 = scmp.lt.s32.totalorder %s28, 1
        %s993 = scalar_select %p992, %s28, 1
        %p994 = scmp.lt.s32.totalorder %s991, 31
        %s995 = scalar_select %p994, %s991, 31
        %s996 = smul.addr %s993, 32
        %s997 = sadd.s32 %s995, %s996
        %s998 = smul.addr %s997, 4
        %s999 = scalar_lea.vmem %s7, %s998
        %s1000 = smul.u32 2, %s29
        %p1001 = scmp.lt.s32.totalorder %s28, 1
        %s1002 = scalar_select %p1001, %s28, 1
        %p1003 = scmp.lt.s32.totalorder %s1000, 1
        %s1004 = scalar_select %p1003, %s1000, 1
        %s1005 = smul.addr %s1002, 2
        %s1006 = sadd.s32 %s1004, %s1005
        %s1007 = smul.addr %s1006, 4
        %s1008 = scalar_lea.vmem %s8, %s1007
        %s1009 = smul.u32 32, %s29
        %p1010 = scmp.lt.s32.totalorder %s28, 1
        %s1011 = scalar_select %p1010, %s28, 1
        %p1012 = scmp.lt.s32.totalorder %s1009, 31
        %s1013 = scalar_select %p1012, %s1009, 31
        %s1014 = smul.addr %s1011, 32
        %s1015 = sadd.s32 %s1013, %s1014
        %s1016 = smul.addr %s1015, 4
        %s1017 = scalar_lea.vmem %s9, %s1016
        // Predicated region
        $region53: #{self_attention_forward.2} parent=47 // pred_check
          %p1018 = pneg %p210
        $region54: #{self_attention_forward.2} parent=47 // pred_check_branch
          %1020 = sbr.rel (%p1018) target = $region56
        $region55: #{self_attention_forward.2} parent=47 // pred_region
          %s1021 = smul.u32 32, %s29
        $region56: #{self_attention_forward.2} parent=47 // pred_fallthru
          _
        // Predicated region
        $region57: #{self_attention_forward.2} parent=47 // pred_check
          %p1022 = pneg %p238
        $region58: #{self_attention_forward.2} parent=47 // pred_check_branch
          %1024 = sbr.rel (%p1022) target = $region60
        $region59: #{self_attention_forward.2} parent=47 // pred_region
          %s1025 = smul.u32 2, %s29
        $region60: #{self_attention_forward.2} parent=47 // pred_fallthru
          _
        // Predicated region
        $region61: #{self_attention_forward.2} parent=47 // pred_check
          %p1026 = pneg %p266
        $region62: #{self_attention_forward.2} parent=47 // pred_check_branch
          %1028 = sbr.rel (%p1026) target = $region64
        $region63: #{self_attention_forward.2} parent=47 // pred_region
          %s1029 = smul.u32 32, %s29
        $region64: #{self_attention_forward.2} parent=47 // pred_fallthru
          _
      $region48: #{self_attention_forward.2} parent=5 // pred_fallthru
        _
      %p1030 = scmp.le.s32.totalorder 2, %s19
      // Predicated region
      $region65: #{self_attention_forward.2} parent=5 // pred_check
        %p1031 = pneg %p1030
      $region66: #{self_attention_forward.2} parent=5 // pred_check_branch
        %1033 = sbr.rel (%p1031) target = $region68
      $region67: #{self_attention_forward.2} parent=5 // pred_region
        %s1034 = ssub.s32 %s19, 2
        // Predicated region
        $region69: #{self_attention_forward.2} parent=67 // pred_check
          %p1035 = pneg %p216
        $region70: #{self_attention_forward.2} parent=67 // pred_check_branch
          %1037 = sbr.rel (%p1035) target = $region72
        $region71: #{self_attention_forward.2} parent=67 // pred_region
          %s1038 = smul.u32 32, %s31
          %p1039 = scmp.lt.s32.totalorder %s30, 1
          %s1040 = scalar_select %p1039, %s30, 1
          %p1041 = scmp.lt.s32.totalorder %s1038, 31
          %s1042 = scalar_select %p1041, %s1038, 31
          %s1043 = smul.addr %s1040, 32
          %s1044 = sadd.s32 %s1042, %s1043
          %s1045 = smul.addr %s1044, 4
          %s1046 = scalar_lea.vmem %s7, %s1045
        $region72: #{self_attention_forward.2} parent=67 // pred_fallthru
          _
        // Predicated region
        $region73: #{self_attention_forward.2} parent=67 // pred_check
          %p1047 = pneg %p244
        $region74: #{self_attention_forward.2} parent=67 // pred_check_branch
          %1049 = sbr.rel (%p1047) target = $region76
        $region75: #{self_attention_forward.2} parent=67 // pred_region
          %s1050 = smul.u32 2, %s31
          %p1051 = scmp.lt.s32.totalorder %s30, 1
          %s1052 = scalar_select %p1051, %s30, 1
          %p1053 = scmp.lt.s32.totalorder %s1050, 1
          %s1054 = scalar_select %p1053, %s1050, 1
          %s1055 = smul.addr %s1052, 2
          %s1056 = sadd.s32 %s1054, %s1055
          %s1057 = smul.addr %s1056, 4
          %s1058 = scalar_lea.vmem %s8, %s1057
        $region76: #{self_attention_forward.2} parent=67 // pred_fallthru
          _
        // Predicated region
        $region77: #{self_attention_forward.2} parent=67 // pred_check
          %p1059 = pneg %p272
        $region78: #{self_attention_forward.2} parent=67 // pred_check_branch
          %1061 = sbr.rel (%p1059) target = $region80
        $region79: #{self_attention_forward.2} parent=67 // pred_region
          %s1062 = smul.u32 32, %s31
          %p1063 = scmp.lt.s32.totalorder %s30, 1
          %s1064 = scalar_select %p1063, %s30, 1
          %p1065 = scmp.lt.s32.totalorder %s1062, 31
          %s1066 = scalar_select %p1065, %s1062, 31
          %s1067 = smul.addr %s1064, 32
          %s1068 = sadd.s32 %s1066, %s1067
          %s1069 = smul.addr %s1068, 4
          %s1070 = scalar_lea.vmem %s9, %s1069
        $region80: #{self_attention_forward.2} parent=67 // pred_fallthru
          _
      $region68: #{self_attention_forward.2} parent=5 // pred_fallthru
        _
    $region6: #{self_attention_forward.2} parent=1 // loop_footer
      %s23 = sadd.s32 1, %s19
    $region7: #{self_attention_forward.2} parent=1 // loop_footer_branch
      %18 = sbr.rel target = $region3
    $region8: #{self_attention_forward.2} parent=1 // loop_exit
      _
    %1071 = vsyncpa [#allocation3], 1
    %s1072 = scalar_lea.sflag [#allocation3], 1
    %1073 = vsyncpa %s1072, 1

// kernel: self_attention_forward.3
$region0: #{self_attention_forward.3}
  #allocation0 [shape = 'u32[]', space=smem, size = 0x4, offset = 0x4, fixed_abs, tag = 'smem constant byte address 0x4 - core index']
  #allocation1 [shape = 'u32[72,128]{1,0:T(1,128)}', space=vmem, size = 0x9000, scoped, tag = 'internal scratch']
  #allocation2 [shape = 'f32[256,1]{1,0:T(8,128)}', space=vmem, size = 0x20000, scoped, tag = 'scratch operand']
  #allocation3 [shape = 'f32[256,1]{1,0:T(8,128)}', space=vmem, size = 0x20000, scoped, tag = 'scratch operand']
  #allocation4 [shape = 'f32[1,1]{1,0:T(1,128)S(6)}', space=smem, size = 0x200, scoped, tag = 'scoped memory for self_attention_forward.3']
  %s0 = inlined_call_operand.vmem [shape: bf16[2,256,8], index: 0, kind: input, shape index: {}]
  %s1 = inlined_call_operand.vmem [shape: bf16[2,8,256], index: 1, kind: input, shape index: {}]
  %s2 = inlined_call_operand.vmem [shape: bf16[2,256,64], index: 2, kind: input, shape index: {}]
  %s3 = inlined_call_operand.hbm [shape: f32[2,256,64], index: 3, kind: input, shape index: {}]
  %s4 = inlined_call_operand.<no memory space> [shape: f32[1,1], index: 4, kind: input, shape index: {}]
  %s5 = inlined_call_operand.hbm [shape: f32[2,256,64], index: 5, kind: output, shape index: {}]
  %s6 = sld [smem:[#allocation0]]
  $region65: #{self_attention_forward.3} parent=0
    _
  %s8 = ssub.s32 1, %s6
  %s9 = scalar_select 0, %s8, %s6
  %10 = sst [smem:[#allocation4]] %s4
  $region1: #{self_attention_forward.3} parent=0
    #allocation5 [shape = 'u8[262144]{0}', space=vmem, size = 0x40000, scoped, tag = 'input window, operand 3']
    #allocation6 [shape = 's32[2]{0}', space=sflag, size = 0x8, scoped, tag = 'scoped memory for self_attention_forward.3']
    #allocation7 [shape = 's32[2]{0}', space=sflag, size = 0x8, scoped, tag = 'scoped memory for self_attention_forward.3']
    #allocation8 [shape = 'u8[262144]{0}', space=vmem, size = 0x40000, scoped, tag = 'output window, operand 0']
    %11 = vsyncpa [#allocation6], 0
    %s12 = scalar_lea.sflag [#allocation6], 1
    %13 = vsyncpa %s12, 0
    %14 = vsyncpa [#allocation7], 0
    %s15 = scalar_lea.sflag [#allocation7], 1
    %16 = vsyncpa %s15, 0
    loop: start=0, step=1, limit=4
    $region2: #{self_attention_forward.3} parent=1 // loop_pre_header
      _
    $region3: #{self_attention_forward.3} parent=1 // loop_header
      %s18 = sphi 0, %s22
      %p19 = scmp.ge.s32.totalorder %s18, 4
      %s25 = sphi 0, %s44
      %s26 = sphi 0, %s40
      %s27 = sphi 0, %s36
      %s28 = sphi 0, %s25
      %s29 = sphi 0, %s26
      %s30 = sphi 0, %s27
      %s31 = sphi 0, %s28
      %s32 = sphi 0, %s29
      %s33 = sphi 0, %s30
      %s49 = sphi 0, %s51
      %s52 = sphi 0, %s49
      %s53 = sphi 0, %s52
      %s69 = sphi 0, %s53
      %s77 = sphi 0, %s79
      %s80 = sphi 0, %s77
      %s81 = sphi 0, %s80
      %s97 = sphi 0, %s81
      %s105 = sphi 0, %s107
      %s108 = sphi 0, %s105
      %s109 = sphi 0, %s108
      %s125 = sphi 0, %s109
      %s133 = sphi 0, %s135
      %s136 = sphi 0, %s133
      %s137 = sphi 0, %s136
      %s153 = sphi 0, %s137
      %s157 = sphi 0, %s157
      %s159 = sphi 0, %s157
      %s160 = sphi 0, %s159
      %s174 = sphi 0, %s160
      %s182 = sphi 0, %s184
      %s185 = sphi 0, %s182
      %s186 = sphi 0, %s185
      %s202 = sphi 0, %s186
    $region4: #{self_attention_forward.3} parent=1 // loop_header_branch
      %21 = sbr.rel (%p19) target = $region8
    $region5: #{self_attention_forward.3} parent=1 // loop_body
      %s23 = ssub.s32 %s18, 1
      %s24 = ssub.s32 %s18, 2
      %s34 = sadd.s32 1, %s27
      %p35 = scmp.ge.s32.totalorder %s34, 1
      %s36 = scalar_select %p35, 0, %s34
      %s37 = sadd.s32 1, %s26
      %s38 = scalar_select %p35, %s37, %s26
      %p39 = scmp.ge.s32.totalorder %s38, 1
      %s40 = scalar_select %p39, 0, %s38
      %s41 = sadd.s32 1, %s25
      %s42 = scalar_select %p39, %s41, %s25
      %p43 = scmp.ge.s32.totalorder %s42, 2
      %s44 = scalar_select %p43, 0, %s42
      %s45 = ssub.s32 %s25, %s44
      %s46 = ssub.s32 %s26, %s40
      %s47 = sor.u32 %s45, %s46
      %p48 = scmp.eq.s32.totalorder %s47, 0
      %s50 = sadd.s32 %s49, 1
      %s51 = scalar_select %p48, %s49, %s50
      %p54 = pneg %p48
      %p55 = scmp.eq.s32.totalorder %s18, 1
      %p56 = por %p54, %p55
      %p57 = scmp.ne.s32.totalorder %s49, %s52
      %p58 = scmp.eq.s32.totalorder %s18, 0
      %p59 = por %p57, %p58
      %p60 = scmp.ne.s32.totalorder %s49, %s52
      %p61 = scmp.eq.s32.totalorder %s23, 1
      %p62 = por %p60, %p61
      %p63 = scmp.ne.s32.totalorder %s52, %s53
      %p64 = scmp.eq.s32.totalorder %s23, 0
      %p65 = por %p63, %p64
      %p66 = scmp.ne.s32.totalorder %s52, %s53
      %p67 = scmp.eq.s32.totalorder %s24, 1
      %p68 = por %p66, %p67
      %p70 = scmp.ne.s32.totalorder %s53, %s69
      %p71 = scmp.eq.s32.totalorder %s24, 0
      %p72 = por %p70, %p71
      %s73 = ssub.s32 %s25, %s44
      %s74 = ssub.s32 %s27, %s36
      %s75 = sor.u32 %s73, %s74
      %p76 = scmp.eq.s32.totalorder %s75, 0
      %s78 = sadd.s32 %s77, 1
      %s79 = scalar_select %p76, %s77, %s78
      %p82 = pneg %p76
      %p83 = scmp.eq.s32.totalorder %s18, 1
      %p84 = por %p82, %p83
      %p85 = scmp.ne.s32.totalorder %s77, %s80
      %p86 = scmp.eq.s32.totalorder %s18, 0
      %p87 = por %p85, %p86
      %p88 = scmp.ne.s32.totalorder %s77, %s80
      %p89 = scmp.eq.s32.totalorder %s23, 1
      %p90 = por %p88, %p89
      %p91 = scmp.ne.s32.totalorder %s80, %s81
      %p92 = scmp.eq.s32.totalorder %s23, 0
      %p93 = por %p91, %p92
      %p94 = scmp.ne.s32.totalorder %s80, %s81
      %p95 = scmp.eq.s32.totalorder %s24, 1
      %p96 = por %p94, %p95
      %p98 = scmp.ne.s32.totalorder %s81, %s97
      %p99 = scmp.eq.s32.totalorder %s24, 0
      %p100 = por %p98, %p99
      %s101 = ssub.s32 %s25, %s44
      %s102 = ssub.s32 %s27, %s36
      %s103 = sor.u32 %s101, %s102
      %p104 = scmp.eq.s32.totalorder %s103, 0
      %s106 = sadd.s32 %s105, 1
      %s107 = scalar_select %p104, %s105, %s106
      %p110 = pneg %p104
      %p111 = scmp.eq.s32.totalorder %s18, 1
      %p112 = por %p110, %p111
      %p113 = scmp.ne.s32.totalorder %s105, %s108
      %p114 = scmp.eq.s32.totalorder %s18, 0
      %p115 = por %p113, %p114
      %p116 = scmp.ne.s32.totalorder %s105, %s108
      %p117 = scmp.eq.s32.totalorder %s23, 1
      %p118 = por %p116, %p117
      %p119 = scmp.ne.s32.totalorder %s108, %s109
      %p120 = scmp.eq.s32.totalorder %s23, 0
      %p121 = por %p119, %p120
      %p122 = scmp.ne.s32.totalorder %s108, %s109
      %p123 = scmp.eq.s32.totalorder %s24, 1
      %p124 = por %p122, %p123
      %p126 = scmp.ne.s32.totalorder %s109, %s125
      %p127 = scmp.eq.s32.totalorder %s24, 0
      %p128 = por %p126, %p127
      %s129 = ssub.s32 %s25, %s44
      %s130 = ssub.s32 %s26, %s40
      %s131 = sor.u32 %s129, %s130
      %p132 = scmp.eq.s32.totalorder %s131, 0
      %s134 = sadd.s32 %s133, 1
      %s135 = scalar_select %p132, %s133, %s134
      %p138 = pneg %p132
      %p139 = scmp.eq.s32.totalorder %s18, 1
      %p140 = por %p138, %p139
      %p141 = scmp.ne.s32.totalorder %s133, %s136
      %p142 = scmp.eq.s32.totalorder %s18, 0
      %p143 = por %p141, %p142
      %p144 = scmp.ne.s32.totalorder %s133, %s136
      %p145 = scmp.eq.s32.totalorder %s23, 1
      %p146 = por %p144, %p145
      %p147 = scmp.ne.s32.totalorder %s136, %s137
      %p148 = scmp.eq.s32.totalorder %s23, 0
      %p149 = por %p147, %p148
      %p150 = scmp.ne.s32.totalorder %s136, %s137
      %p151 = scmp.eq.s32.totalorder %s24, 1
      %p152 = por %p150, %p151
      %p154 = scmp.ne.s32.totalorder %s137, %s153
      %p155 = scmp.eq.s32.totalorder %s24, 0
      %p156 = por %p154, %p155
      %s158 = sadd.s32 %s157, 1
      %p161 = scmp.eq.s32.totalorder %s18, 1
      %p162 = scmp.ne.s32.totalorder %s157, %s159
      %p163 = scmp.eq.s32.totalorder %s18, 0
      %p164 = por %p162, %p163
      %p165 = scmp.ne.s32.totalorder %s157, %s159
      %p166 = scmp.eq.s32.totalorder %s23, 1
      %p167 = por %p165, %p166
      %p168 = scmp.ne.s32.totalorder %s159, %s160
      %p169 = scmp.eq.s32.totalorder %s23, 0
      %p170 = por %p168, %p169
      %p171 = scmp.ne.s32.totalorder %s159, %s160
      %p172 = scmp.eq.s32.totalorder %s24, 1
      %p173 = por %p171, %p172
      %p175 = scmp.ne.s32.totalorder %s160, %s174
      %p176 = scmp.eq.s32.totalorder %s24, 0
      %p177 = por %p175, %p176
      %s178 = ssub.s32 %s25, %s44
      %s179 = ssub.s32 %s26, %s40
      %s180 = sor.u32 %s178, %s179
      %p181 = scmp.eq.s32.totalorder %s180, 0
      %s183 = sadd.s32 %s182, 1
      %s184 = scalar_select %p181, %s182, %s183
      %p187 = pneg %p181
      %p188 = scmp.eq.s32.totalorder %s18, 1
      %p189 = por %p187, %p188
      %p190 = scmp.ne.s32.totalorder %s182, %s185
      %p191 = scmp.eq.s32.totalorder %s18, 0
      %p192 = por %p190, %p191
      %p193 = scmp.ne.s32.totalorder %s182, %s185
      %p194 = scmp.eq.s32.totalorder %s23, 1
      %p195 = por %p193, %p194
      %p196 = scmp.ne.s32.totalorder %s185, %s186
      %p197 = scmp.eq.s32.totalorder %s23, 0
      %p198 = por %p196, %p197
      %p199 = scmp.ne.s32.totalorder %s185, %s186
      %p200 = scmp.eq.s32.totalorder %s24, 1
      %p201 = por %p199, %p200
      %p203 = scmp.ne.s32.totalorder %s186, %s202
      %p204 = scmp.eq.s32.totalorder %s24, 0
      %p205 = por %p203, %p204
      %p206 = scmp.le.s32.totalorder 1, %s18
      %p207 = scmp.lt.s32.totalorder %s18, 3
      %p208 = pnand %p206, %p207
      %p209 = pneg %p208
      // Predicated region
      $region9: #{self_attention_forward.3} parent=5 // pred_check
        _
      $region10: #{self_attention_forward.3} parent=5 // pred_check_branch
        %211 = sbr.rel (%p208) target = $region12
      $region11: #{self_attention_forward.3} parent=5 // pred_region
        %s212 = ssub.s32 %s18, 1
        // Predicated region
        $region13: #{self_attention_forward.3} parent=11 // pred_check
          %p213 = pneg %p170
        $region14: #{self_attention_forward.3} parent=11 // pred_check_branch
          %215 = sbr.rel (%p213) target = $region16
        $region15: #{self_attention_forward.3} parent=11 // pred_region
          _
        $region16: #{self_attention_forward.3} parent=11 // pred_fallthru
          _
      $region12: #{self_attention_forward.3} parent=5 // pred_fallthru
        _
      %p216 = scmp.lt.s32.totalorder %s18, 2
      // Predicated region
      $region17: #{self_attention_forward.3} parent=5 // pred_check
        %p217 = pneg %p216
      $region18: #{self_attention_forward.3} parent=5 // pred_check_branch
        %219 = sbr.rel (%p217) target = $region20
      $region19: #{self_attention_forward.3} parent=5 // pred_region
        // Predicated region
        $region21: #{self_attention_forward.3} parent=19 // pred_check
          %p220 = pneg %p59
        $region22: #{self_attention_forward.3} parent=19 // pred_check_branch
          %222 = sbr.rel (%p220) target = $region24
        $region23: #{self_attention_forward.3} parent=19 // pred_region
          %s223 = smul.u32 32, %s26
          %p224 = scmp.lt.s32.totalorder %s25, 1
          %s225 = scalar_select %p224, %s25, 1
          %p226 = scmp.lt.s32.totalorder %s223, 31
          %s227 = scalar_select %p226, %s223, 31
          %s228 = smul.addr %s225, 32
          %s229 = sadd.s32 %s227, %s228
          %s230 = smul.addr %s229, 4
          %s231 = scalar_lea.vmem %s0, %s230
          %s232 = smul.u32 32, %s26
        $region24: #{self_attention_forward.3} parent=19 // pred_fallthru
          _
        // Predicated region
        $region25: #{self_attention_forward.3} parent=19 // pred_check
          %p233 = pneg %p87
        $region26: #{self_attention_forward.3} parent=19 // pred_check_branch
          %235 = sbr.rel (%p233) target = $region28
        $region27: #{self_attention_forward.3} parent=19 // pred_region
          %s236 = smul.u32 2, %s27
          %p237 = scmp.lt.s32.totalorder %s25, 1
          %s238 = scalar_select %p237, %s25, 1
          %p239 = scmp.lt.s32.totalorder %s236, 1
          %s240 = scalar_select %p239, %s236, 1
          %s241 = smul.addr %s238, 2
          %s242 = sadd.s32 %s240, %s241
          %s243 = smul.addr %s242, 4
          %s244 = scalar_lea.vmem %s1, %s243
          %s245 = smul.u32 2, %s27
        $region28: #{self_attention_forward.3} parent=19 // pred_fallthru
          _
        // Predicated region
        $region29: #{self_attention_forward.3} parent=19 // pred_check
          %p246 = pneg %p115
        $region30: #{self_attention_forward.3} parent=19 // pred_check_branch
          %248 = sbr.rel (%p246) target = $region32
        $region31: #{self_attention_forward.3} parent=19 // pred_region
          %s249 = smul.u32 32, %s27
          %p250 = scmp.lt.s32.totalorder %s25, 1
          %s251 = scalar_select %p250, %s25, 1
          %p252 = scmp.lt.s32.totalorder %s249, 31
          %s253 = scalar_select %p252, %s249, 31
          %s254 = smul.addr %s251, 32
          %s255 = sadd.s32 %s253, %s254
          %s256 = smul.addr %s255, 4
          %s257 = scalar_lea.vmem %s2, %s256
          %s258 = smul.u32 32, %s27
        $region32: #{self_attention_forward.3} parent=19 // pred_fallthru
          _
        // Predicated region
        $region33: #{self_attention_forward.3} parent=19 // pred_check
          %p259 = pneg %p143
        $region34: #{self_attention_forward.3} parent=19 // pred_check_branch
          %261 = sbr.rel (%p259) target = $region36
        $region35: #{self_attention_forward.3} parent=19 // pred_region
          %s262 = sand.u32 %s133, 1
          %s263 = scalar_lea.sflag [#allocation6], %s262
          %s264 = sand.u32 %s133, 1
          %s265 = smul.addr %s264, 256
          %s266 = scalar_lea.vmem [#allocation5], %s265
          %s267 = smul.u32 32, %s26
          %269 = vsyncadd %s263, 0
          %s270 = smul.addr %s25, 32
          %s271 = sadd.s32 %s267, %s270
          %s272 = smul.addr %s271, 8
          %s273 = scalar_lea.hbm %s3, %s272
          %s274 = sshll.u32 %s273, 4
          %s275 = int_to_ptr.hbm [resolvable:$true] %s274
          %s276 = sshll.u32 %s266, 4
          %s277 = int_to_ptr.vmem [resolvable:$true] %s276
          %282 = dma.hbm_to_vmem [thread:$0]  %s275, 4096, %s277, %s263, 128, 128, 8
        $region36: #{self_attention_forward.3} parent=19 // pred_fallthru
          _
      $region20: #{self_attention_forward.3} parent=5 // pred_fallthru
        _
      %p283 = scmp.le.s32.totalorder 1, %s18
      %p284 = scmp.lt.s32.totalorder %s18, 3
      %p285 = pnand %p283, %p284
      %p286 = pneg %p285
      // Predicated region
      $region37: #{self_attention_forward.3} parent=5 // pred_check
        _
      $region38: #{self_attention_forward.3} parent=5 // pred_check_branch
        %288 = sbr.rel (%p285) target = $region40
      $region39: #{self_attention_forward.3} parent=5 // pred_region
        %s289 = ssub.s32 %s18, 1
        %s290 = sand.u32 %s136, 1
        %s291 = scalar_lea.sflag [#allocation6], %s290
        %s292 = sand.u32 %s136, 1
        %s293 = smul.addr %s292, 256
        %s294 = scalar_lea.vmem [#allocation5], %s293
        // Predicated region
        $region41: #{self_attention_forward.3} parent=39 // pred_check
          %p295 = pneg %p149
        $region42: #{self_attention_forward.3} parent=39 // pred_check_branch
          %297 = sbr.rel (%p295) target = $region44
        $region43: #{self_attention_forward.3} parent=39 // pred_region
          %299 = dma.done %s291, 4096
        $region44: #{self_attention_forward.3} parent=39 // pred_fallthru
          _
        %s300 = smul.u32 32, %s29
        %p301 = scmp.lt.s32.totalorder %s28, 1
        %s302 = scalar_select %p301, %s28, 1
        %p303 = scmp.lt.s32.totalorder %s300, 31
        %s304 = scalar_select %p303, %s300, 31
        %s305 = smul.addr %s302, 32
        %s306 = sadd.s32 %s304, %s305
        %s307 = smul.addr %s306, 4
        %s308 = scalar_lea.vmem %s0, %s307
        %p309 = pneg %p65
        %p310 = pneg %p62
        %s311 = smul.u32 2, %s30
        %p312 = scmp.lt.s32.totalorder %s28, 1
        %s313 = scalar_select %p312, %s28, 1
        %p314 = scmp.lt.s32.totalorder %s311, 1
        %s315 = scalar_select %p314, %s311, 1
        %s316 = smul.addr %s313, 2
        %s317 = sadd.s32 %s315, %s316
        %s318 = smul.addr %s317, 4
        %s319 = scalar_lea.vmem %s1, %s318
        %p320 = pneg %p93
        %p321 = pneg %p90
        %s322 = smul.u32 32, %s30
        %p323 = scmp.lt.s32.totalorder %s28, 1
        %s324 = scalar_select %p323, %s28, 1
        %p325 = scmp.lt.s32.totalorder %s322, 31
        %s326 = scalar_select %p325, %s322, 31
        %s327 = smul.addr %s324, 32
        %s328 = sadd.s32 %s326, %s327
        %s329 = smul.addr %s328, 4
        %s330 = scalar_lea.vmem %s2, %s329
        %p331 = pneg %p121
        %p332 = pneg %p118
        %s333 = sand.u32 %s136, 1
        %s334 = scalar_lea.sflag [#allocation6], %s333
        %s335 = sand.u32 %s136, 1
        %s336 = smul.addr %s335, 256
        %s337 = scalar_lea.vmem [#allocation5], %s336
        %p338 = pneg %p149
        %p339 = pneg %p146
        %p340 = pneg %p170
        %p341 = pneg %p167
        %p342 = pneg %p198
        %p343 = pneg %p195
        %s344 = sand.u32 %s185, 1
        %s345 = scalar_lea.sflag [#allocation7], %s344
        %s346 = sand.u32 %s185, 1
        %s347 = smul.addr %s346, 256
        %s348 = scalar_lea.vmem [#allocation8], %s347
        %s349 = smul.u32 32, %s29
        %p350 = scmp.lt.s32.totalorder %s28, 1
        %s351 = scalar_select %p350, %s28, 1
        %p352 = scmp.lt.s32.totalorder %s349, 31
        %s353 = scalar_select %p352, %s349, 31
        %s354 = smul.addr %s351, 32
        %s355 = sadd.s32 %s353, %s354
        %s356 = smul.addr %s355, 4
        %s357 = scalar_lea.vmem %s0, %s356
        %s358 = smul.u32 32, %s29
        %s359 = smul.u32 2, %s30
        %p360 = scmp.lt.s32.totalorder %s28, 1
        %s361 = scalar_select %p360, %s28, 1
        %p362 = scmp.lt.s32.totalorder %s359, 1
        %s363 = scalar_select %p362, %s359, 1
        %s364 = smul.addr %s361, 2
        %s365 = sadd.s32 %s363, %s364
        %s366 = smul.addr %s365, 4
        %s367 = scalar_lea.vmem %s1, %s366
        %s368 = smul.u32 2, %s30
        %s369 = smul.u32 32, %s30
        %p370 = scmp.lt.s32.totalorder %s28, 1
        %s371 = scalar_select %p370, %s28, 1
        %p372 = scmp.lt.s32.totalorder %s369, 31
        %s373 = scalar_select %p372, %s369, 31
        %s374 = smul.addr %s371, 32
        %s375 = sadd.s32 %s373, %s374
        %s376 = smul.addr %s375, 4
        %s377 = scalar_lea.vmem %s2, %s376
        %s378 = smul.u32 32, %s30
        %s379 = smul.u32 32, %s29
        %s380 = smul.u32 32, %s29
        %p382 = scmp.eq.s32.totalorder %s30, 0
        // Predicated region
        $region45: #{self_attention_forward.3} parent=39 // pred_check
          %p383 = pneg %p382
        $region46: #{self_attention_forward.3} parent=39 // pred_check_branch
          %385 = sbr.rel (%p383) target = $region48
        $region47: #{self_attention_forward.3} parent=39 // pred_region
          %vm386 = vcmask 7168
          %387 = vst.msk [vmem:[#allocation2] sm:$0xff] %vm386, -inf
          %388 = vst.msk [vmem:[#allocation2 + $0x8] sm:$0xff] %vm386, -inf
          %389 = vst.msk [vmem:[#allocation2 + $0x10] sm:$0xff] %vm386, -inf
          %390 = vst.msk [vmem:[#allocation2 + $0x18] sm:$0xff] %vm386, -inf
          %391 = vst.msk [vmem:[#allocation2 + $0x20] sm:$0xff] %vm386, -inf
          %392 = vst.msk [vmem:[#allocation2 + $0x28] sm:$0xff] %vm386, -inf
          %393 = vst.msk [vmem:[#allocation2 + $0x30] sm:$0xff] %vm386, -inf
          %394 = vst.msk [vmem:[#allocation2 + $0x38] sm:$0xff] %vm386, -inf
          %395 = vst.msk [vmem:[#allocation2 + $0x40] sm:$0xff] %vm386, -inf
          %396 = vst.msk [vmem:[#allocation2 + $0x48] sm:$0xff] %vm386, -inf
          %397 = vst.msk [vmem:[#allocation2 + $0x50] sm:$0xff] %vm386, -inf
          %398 = vst.msk [vmem:[#allocation2 + $0x58] sm:$0xff] %vm386, -inf
          %399 = vst.msk [vmem:[#allocation2 + $0x60] sm:$0xff] %vm386, -inf
          %400 = vst.msk [vmem:[#allocation2 + $0x68] sm:$0xff] %vm386, -inf
          %401 = vst.msk [vmem:[#allocation2 + $0x70] sm:$0xff] %vm386, -inf
          %402 = vst.msk [vmem:[#allocation2 + $0x78] sm:$0xff] %vm386, -inf
          %403 = vst.msk [vmem:[#allocation2 + $0x80] sm:$0xff] %vm386, -inf
          %404 = vst.msk [vmem:[#allocation2 + $0x88] sm:$0xff] %vm386, -inf
          %405 = vst.msk [vmem:[#allocation2 + $0x90] sm:$0xff] %vm386, -inf
          %406 = vst.msk [vmem:[#allocation2 + $0x98] sm:$0xff] %vm386, -inf
          %407 = vst.msk [vmem:[#allocation2 + $0xa0] sm:$0xff] %vm386, -inf
          %408 = vst.msk [vmem:[#allocation2 + $0xa8] sm:$0xff] %vm386, -inf
          %409 = vst.msk [vmem:[#allocation2 + $0xb0] sm:$0xff] %vm386, -inf
          %410 = vst.msk [vmem:[#allocation2 + $0xb8] sm:$0xff] %vm386, -inf
          %411 = vst.msk [vmem:[#allocation2 + $0xc0] sm:$0xff] %vm386, -inf
          %412 = vst.msk [vmem:[#allocation2 + $0xc8] sm:$0xff] %vm386, -inf
          %413 = vst.msk [vmem:[#allocation2 + $0xd0] sm:$0xff] %vm386, -inf
          %414 = vst.msk [vmem:[#allocation2 + $0xd8] sm:$0xff] %vm386, -inf
          %415 = vst.msk [vmem:[#allocation2 + $0xe0] sm:$0xff] %vm386, -inf
          %416 = vst.msk [vmem:[#allocation2 + $0xe8] sm:$0xff] %vm386, -inf
          %417 = vst.msk [vmem:[#allocation2 + $0xf0] sm:$0xff] %vm386, -inf
          %418 = vst.msk [vmem:[#allocation2 + $0xf8] sm:$0xff] %vm386, -inf
          %419 = vst.msk [vmem:[#allocation3] sm:$0xff] %vm386, 0.0
          %420 = vst.msk [vmem:[#allocation3 + $0x8] sm:$0xff] %vm386, 0.0
          %421 = vst.msk [vmem:[#allocation3 + $0x10] sm:$0xff] %vm386, 0.0
          %422 = vst.msk [vmem:[#allocation3 + $0x18] sm:$0xff] %vm386, 0.0
          %423 = vst.msk [vmem:[#allocation3 + $0x20] sm:$0xff] %vm386, 0.0
          %424 = vst.msk [vmem:[#allocation3 + $0x28] sm:$0xff] %vm386, 0.0
          %425 = vst.msk [vmem:[#allocation3 + $0x30] sm:$0xff] %vm386, 0.0
          %426 = vst.msk [vmem:[#allocation3 + $0x38] sm:$0xff] %vm386, 0.0
          %427 = vst.msk [vmem:[#allocation3 + $0x40] sm:$0xff] %vm386, 0.0
          %428 = vst.msk [vmem:[#allocation3 + $0x48] sm:$0xff] %vm386, 0.0
          %429 = vst.msk [vmem:[#allocation3 + $0x50] sm:$0xff] %vm386, 0.0
          %430 = vst.msk [vmem:[#allocation3 + $0x58] sm:$0xff] %vm386, 0.0
          %431 = vst.msk [vmem:[#allocation3 + $0x60] sm:$0xff] %vm386, 0.0
          %432 = vst.msk [vmem:[#allocation3 + $0x68] sm:$0xff] %vm386, 0.0
          %433 = vst.msk [vmem:[#allocation3 + $0x70] sm:$0xff] %vm386, 0.0
          %434 = vst.msk [vmem:[#allocation3 + $0x78] sm:$0xff] %vm386, 0.0
          %435 = vst.msk [vmem:[#allocation3 + $0x80] sm:$0xff] %vm386, 0.0
          %436 = vst.msk [vmem:[#allocation3 + $0x88] sm:$0xff] %vm386, 0.0
          %437 = vst.msk [vmem:[#allocation3 + $0x90] sm:$0xff] %vm386, 0.0
          %438 = vst.msk [vmem:[#allocation3 + $0x98] sm:$0xff] %vm386, 0.0
          %439 = vst.msk [vmem:[#allocation3 + $0xa0] sm:$0xff] %vm386, 0.0
          %440 = vst.msk [vmem:[#allocation3 + $0xa8] sm:$0xff] %vm386, 0.0
          %441 = vst.msk [vmem:[#allocation3 + $0xb0] sm:$0xff] %vm386, 0.0
          %442 = vst.msk [vmem:[#allocation3 + $0xb8] sm:$0xff] %vm386, 0.0
          %443 = vst.msk [vmem:[#allocation3 + $0xc0] sm:$0xff] %vm386, 0.0
          %444 = vst.msk [vmem:[#allocation3 + $0xc8] sm:$0xff] %vm386, 0.0
          %445 = vst.msk [vmem:[#allocation3 + $0xd0] sm:$0xff] %vm386, 0.0
          %446 = vst.msk [vmem:[#allocation3 + $0xd8] sm:$0xff] %vm386, 0.0
          %447 = vst.msk [vmem:[#allocation3 + $0xe0] sm:$0xff] %vm386, 0.0
          %448 = vst.msk [vmem:[#allocation3 + $0xe8] sm:$0xff] %vm386, 0.0
          %449 = vst.msk [vmem:[#allocation3 + $0xf0] sm:$0xff] %vm386, 0.0
          %450 = vst.msk [vmem:[#allocation3 + $0xf8] sm:$0xff] %vm386, 0.0
          %vm451 = vcmask 523264
          %452 = vst.msk [vmem:[%s348] sm:$0xff] %vm451, 0.0
          %453 = vst.msk [vmem:[%s348 + $0x8] sm:$0xff] %vm451, 0.0
          %454 = vst.msk [vmem:[%s348 + $0x10] sm:$0xff] %vm451, 0.0
          %455 = vst.msk [vmem:[%s348 + $0x18] sm:$0xff] %vm451, 0.0
          %456 = vst.msk [vmem:[%s348 + $0x20] sm:$0xff] %vm451, 0.0
          %457 = vst.msk [vmem:[%s348 + $0x28] sm:$0xff] %vm451, 0.0
          %458 = vst.msk [vmem:[%s348 + $0x30] sm:$0xff] %vm451, 0.0
          %459 = vst.msk [vmem:[%s348 + $0x38] sm:$0xff] %vm451, 0.0
          %460 = vst.msk [vmem:[%s348 + $0x40] sm:$0xff] %vm451, 0.0
          %461 = vst.msk [vmem:[%s348 + $0x48] sm:$0xff] %vm451, 0.0
          %462 = vst.msk [vmem:[%s348 + $0x50] sm:$0xff] %vm451, 0.0
          %463 = vst.msk [vmem:[%s348 + $0x58] sm:$0xff] %vm451, 0.0
          %464 = vst.msk [vmem:[%s348 + $0x60] sm:$0xff] %vm451, 0.0
          %465 = vst.msk [vmem:[%s348 + $0x68] sm:$0xff] %vm451, 0.0
          %466 = vst.msk [vmem:[%s348 + $0x70] sm:$0xff] %vm451, 0.0
          %467 = vst.msk [vmem:[%s348 + $0x78] sm:$0xff] %vm451, 0.0
          %468 = vst.msk [vmem:[%s348 + $0x80] sm:$0xff] %vm451, 0.0
          %469 = vst.msk [vmem:[%s348 + $0x88] sm:$0xff] %vm451, 0.0
          %470 = vst.msk [vmem:[%s348 + $0x90] sm:$0xff] %vm451, 0.0
          %471 = vst.msk [vmem:[%s348 + $0x98] sm:$0xff] %vm451, 0.0
          %472 = vst.msk [vmem:[%s348 + $0xa0] sm:$0xff] %vm451, 0.0
          %473 = vst.msk [vmem:[%s348 + $0xa8] sm:$0xff] %vm451, 0.0
          %474 = vst.msk [vmem:[%s348 + $0xb0] sm:$0xff] %vm451, 0.0
          %475 = vst.msk [vmem:[%s348 + $0xb8] sm:$0xff] %vm451, 0.0
          %476 = vst.msk [vmem:[%s348 + $0xc0] sm:$0xff] %vm451, 0.0
          %477 = vst.msk [vmem:[%s348 + $0xc8] sm:$0xff] %vm451, 0.0
          %478 = vst.msk [vmem:[%s348 + $0xd0] sm:$0xff] %vm451, 0.0
          %479 = vst.msk [vmem:[%s348 + $0xd8] sm:$0xff] %vm451, 0.0
          %480 = vst.msk [vmem:[%s348 + $0xe0] sm:$0xff] %vm451, 0.0
          %481 = vst.msk [vmem:[%s348 + $0xe8] sm:$0xff] %vm451, 0.0
          %482 = vst.msk [vmem:[%s348 + $0xf0] sm:$0xff] %vm451, 0.0
          %483 = vst.msk [vmem:[%s348 + $0xf8] sm:$0xff] %vm451, 0.0
        $region48: #{self_attention_forward.3} parent=39 // pred_fallthru
          _
        %v484 = vld [vmem:[%s357] sm:$0xf]
        %v485 = vld [vmem:[%s357 + $0x4] sm:$0xf]
        %v486 = vld [vmem:[%s357 + $0x8] sm:$0xf]
        %v487 = vld [vmem:[%s357 + $0xc] sm:$0xf]
        %v488 = vld [vmem:[%s357 + $0x10] sm:$0xf]
        %v489 = vld [vmem:[%s357 + $0x14] sm:$0xf]
        %v490 = vld [vmem:[%s357 + $0x18] sm:$0xf]
        %v491 = vld [vmem:[%s357 + $0x1c] sm:$0xf]
        %v492 = vld [vmem:[%s357 + $0x20] sm:$0xf]
        %v493 = vld [vmem:[%s357 + $0x24] sm:$0xf]
        %v494 = vld [vmem:[%s357 + $0x28] sm:$0xf]
        %v495 = vld [vmem:[%s357 + $0x2c] sm:$0xf]
        %v496 = vld [vmem:[%s357 + $0x30] sm:$0xf]
        %v497 = vld [vmem:[%s357 + $0x34] sm:$0xf]
        %v498 = vld [vmem:[%s357 + $0x38] sm:$0xf]
        %v499 = vld [vmem:[%s357 + $0x3c] sm:$0xf]
        %v500 = vld [vmem:[%s357 + $0x40] sm:$0xf]
        %v501 = vld [vmem:[%s357 + $0x44] sm:$0xf]
        %v502 = vld [vmem:[%s357 + $0x48] sm:$0xf]
        %v503 = vld [vmem:[%s357 + $0x4c] sm:$0xf]
        %v504 = vld [vmem:[%s357 + $0x50] sm:$0xf]
        %v505 = vld [vmem:[%s357 + $0x54] sm:$0xf]
        %v506 = vld [vmem:[%s357 + $0x58] sm:$0xf]
        %v507 = vld [vmem:[%s357 + $0x5c] sm:$0xf]
        %v508 = vld [vmem:[%s357 + $0x60] sm:$0xf]
        %v509 = vld [vmem:[%s357 + $0x64] sm:$0xf]
        %v510 = vld [vmem:[%s357 + $0x68] sm:$0xf]
        %v511 = vld [vmem:[%s357 + $0x6c] sm:$0xf]
        %v512 = vld [vmem:[%s357 + $0x70] sm:$0xf]
        %v513 = vld [vmem:[%s357 + $0x74] sm:$0xf]
        %v514 = vld [vmem:[%s357 + $0x78] sm:$0xf]
        %v515 = vld [vmem:[%s357 + $0x7c] sm:$0xf]
        %v516 = vld [vmem:[%s367] sm:$0xff]
        %v517 = vld [vmem:[%s377] sm:$0xf]
        %v518 = vld [vmem:[%s377 + $0x4] sm:$0xf]
        %v519 = vld [vmem:[%s377 + $0x8] sm:$0xf]
        %v520 = vld [vmem:[%s377 + $0xc] sm:$0xf]
        %v521 = vld [vmem:[%s377 + $0x10] sm:$0xf]
        %v522 = vld [vmem:[%s377 + $0x14] sm:$0xf]
        %v523 = vld [vmem:[%s377 + $0x18] sm:$0xf]
        %v524 = vld [vmem:[%s377 + $0x1c] sm:$0xf]
        %v525 = vld [vmem:[%s377 + $0x20] sm:$0xf]
        %v526 = vld [vmem:[%s377 + $0x24] sm:$0xf]
        %v527 = vld [vmem:[%s377 + $0x28] sm:$0xf]
        %v528 = vld [vmem:[%s377 + $0x2c] sm:$0xf]
        %v529 = vld [vmem:[%s377 + $0x30] sm:$0xf]
        %v530 = vld [vmem:[%s377 + $0x34] sm:$0xf]
        %v531 = vld [vmem:[%s377 + $0x38] sm:$0xf]
        %v532 = vld [vmem:[%s377 + $0x3c] sm:$0xf]
        %v533 = vld [vmem:[%s377 + $0x40] sm:$0xf]
        %v534 = vld [vmem:[%s377 + $0x44] sm:$0xf]
        %v535 = vld [vmem:[%s377 + $0x48] sm:$0xf]
        %v536 = vld [vmem:[%s377 + $0x4c] sm:$0xf]
        %v537 = vld [vmem:[%s377 + $0x50] sm:$0xf]
        %v538 = vld [vmem:[%s377 + $0x54] sm:$0xf]
        %v539 = vld [vmem:[%s377 + $0x58] sm:$0xf]
        %v540 = vld [vmem:[%s377 + $0x5c] sm:$0xf]
        %v541 = vld [vmem:[%s377 + $0x60] sm:$0xf]
        %v542 = vld [vmem:[%s377 + $0x64] sm:$0xf]
        %v543 = vld [vmem:[%s377 + $0x68] sm:$0xf]
        %v544 = vld [vmem:[%s377 + $0x6c] sm:$0xf]
        %v545 = vld [vmem:[%s377 + $0x70] sm:$0xf]
        %v546 = vld [vmem:[%s377 + $0x74] sm:$0xf]
        %v547 = vld [vmem:[%s377 + $0x78] sm:$0xf]
        %v548 = vld [vmem:[%s377 + $0x7c] sm:$0xf]
        %v581 = vunpack.c.l.b16 %v484
        %v582 = vunpack.c.l.b16 %v485
        %v583 = vunpack.c.l.b16 %v486
        %v584 = vunpack.c.l.b16 %v487
        %v585 = vunpack.c.l.b16 %v488
        %v586 = vunpack.c.l.b16 %v489
        %v587 = vunpack.c.l.b16 %v490
        %v588 = vunpack.c.l.b16 %v491
        %v589 = vunpack.c.l.b16 %v492
        %v590 = vunpack.c.l.b16 %v493
        %v591 = vunpack.c.l.b16 %v494
        %v592 = vunpack.c.l.b16 %v495
        %v593 = vunpack.c.l.b16 %v496
        %v594 = vunpack.c.l.b16 %v497
        %v595 = vunpack.c.l.b16 %v498
        %v596 = vunpack.c.l.b16 %v499
        %v597 = vunpack.c.l.b16 %v500
        %v598 = vunpack.c.l.b16 %v501
        %v599 = vunpack.c.l.b16 %v502
        %v600 = vunpack.c.l.b16 %v503
        %v601 = vunpack.c.l.b16 %v504
        %v602 = vunpack.c.l.b16 %v505
        %v603 = vunpack.c.l.b16 %v506
        %v604 = vunpack.c.l.b16 %v507
        %v605 = vunpack.c.l.b16 %v508
        %v606 = vunpack.c.l.b16 %v509
        %v607 = vunpack.c.l.b16 %v510
        %v608 = vunpack.c.l.b16 %v511
        %v609 = vunpack.c.l.b16 %v512
        %v610 = vunpack.c.l.b16 %v513
        %v611 = vunpack.c.l.b16 %v514
        %v612 = vunpack.c.l.b16 %v515
        %v613 = vpack.c.b16 %v582, %v581
        %v614 = vpack.c.b16 %v584, %v583
        %v615 = vpack.c.b16 %v586, %v585
        %v616 = vpack.c.b16 %v588, %v587
        %v617 = vpack.c.b16 %v590, %v589
        %v618 = vpack.c.b16 %v592, %v591
        %v619 = vpack.c.b16 %v594, %v593
        %v620 = vpack.c.b16 %v596, %v595
        %v621 = vpack.c.b16 %v598, %v597
        %v622 = vpack.c.b16 %v600, %v599
        %v623 = vpack.c.b16 %v602, %v601
        %v624 = vpack.c.b16 %v604, %v603
        %v625 = vpack.c.b16 %v606, %v605
        %v626 = vpack.c.b16 %v608, %v607
        %v627 = vpack.c.b16 %v610, %v609
        %v628 = vpack.c.b16 %v612, %v611
        %v630 = vunpack.c.l.b16 %v516
        %v631 = vunpack.c.h.b16 %v516
        %v632 = vpack.c.b16 %v630, %v630
        %v633 = vpack.c.b16 %v631, %v631
        %vm634 = vcmask 64512
        %v636 = vsel %vm634, %v613, 0
        %v639 = vsel %vm634, %v614, 0
        %v642 = vsel %vm634, %v615, 0
        %v645 = vsel %vm634, %v616, 0
        %v648 = vsel %vm634, %v617, 0
        %v651 = vsel %vm634, %v618, 0
        %v654 = vsel %vm634, %v619, 0
        %v657 = vsel %vm634, %v620, 0
        %v660 = vsel %vm634, %v621, 0
        %v663 = vsel %vm634, %v622, 0
        %v666 = vsel %vm634, %v623, 0
        %v669 = vsel %vm634, %v624, 0
        %v672 = vsel %vm634, %v625, 0
        %v675 = vsel %vm634, %v626, 0
        %v678 = vsel %vm634, %v627, 0
        %v681 = vsel %vm634, %v628, 0
        %vm683 = vcmask 1043456
        %v685 = vsel %vm683, %v632, 0
        %v688 = vsel %vm683, %v633, 0
        %690 = vmatpush.bf16.msra.mxu0 0
        %691 = vmatpush.bf16.msra.mxu0 0
        %692 = vmatpush.bf16.msra.mxu0 0
        %693 = vmatpush.bf16.msra.mxu0 0
        %694 = vmatpush.bf16.msra.mxu0 0
        %695 = vmatpush.bf16.msra.mxu0 0
        %696 = vmatpush.bf16.msra.mxu0 0
        %697 = vmatpush.bf16.msra.mxu0 %v685
        %698 = vmatmul.bf16.gmra.mxu0 %v636
        %v699 = vpop.f32.mrf.mxu0
        %v700 = vadd.f32 0.0, %v699
        %v701 = vpop.f32.mrf.mxu0
        %v702 = vadd.f32 0.0, %v701
        %703 = vmatmul.bf16.gmra.mxu0 %v639
        %v704 = vpop.f32.mrf.mxu0
        %v705 = vadd.f32 0.0, %v704
        %v706 = vpop.f32.mrf.mxu0
        %v707 = vadd.f32 0.0, %v706
        %708 = vmatmul.bf16.gmra.mxu0 %v642
        %v709 = vpop.f32.mrf.mxu0
        %v710 = vadd.f32 0.0, %v709
        %v711 = vpop.f32.mrf.mxu0
        %v712 = vadd.f32 0.0, %v711
        %713 = vmatmul.bf16.gmra.mxu0 %v645
        %v714 = vpop.f32.mrf.mxu0
        %v715 = vadd.f32 0.0, %v714
        %v716 = vpop.f32.mrf.mxu0
        %v717 = vadd.f32 0.0, %v716
        %718 = vmatmul.bf16.gmra.mxu0 %v648
        %v719 = vpop.f32.mrf.mxu0
        %v720 = vadd.f32 0.0, %v719
        %v721 = vpop.f32.mrf.mxu0
        %v722 = vadd.f32 0.0, %v721
        %723 = vmatmul.bf16.gmra.mxu0 %v651
        %v724 = vpop.f32.mrf.mxu0
        %v725 = vadd.f32 0.0, %v724
        %v726 = vpop.f32.mrf.mxu0
        %v727 = vadd.f32 0.0, %v726
        %728 = vmatmul.bf16.gmra.mxu0 %v654
        %v729 = vpop.f32.mrf.mxu0
        %v730 = vadd.f32 0.0, %v729
        %v731 = vpop.f32.mrf.mxu0
        %v732 = vadd.f32 0.0, %v731
        %733 = vmatmul.bf16.gmra.mxu0 %v657
        %v734 = vpop.f32.mrf.mxu0
        %v735 = vadd.f32 0.0, %v734
        %v736 = vpop.f32.mrf.mxu0
        %v737 = vadd.f32 0.0, %v736
        %738 = vmatmul.bf16.gmra.mxu0 %v660
        %v739 = vpop.f32.mrf.mxu0
        %v740 = vadd.f32 0.0, %v739
        %v741 = vpop.f32.mrf.mxu0
        %v742 = vadd.f32 0.0, %v741
        %743 = vmatmul.bf16.gmra.mxu0 %v663
        %v744 = vpop.f32.mrf.mxu0
        %v745 = vadd.f32 0.0, %v744
        %v746 = vpop.f32.mrf.mxu0
        %v747 = vadd.f32 0.0, %v746
        %748 = vmatmul.bf16.gmra.mxu0 %v666
        %v749 = vpop.f32.mrf.mxu0
        %v750 = vadd.f32 0.0, %v749
        %v751 = vpop.f32.mrf.mxu0
        %v752 = vadd.f32 0.0, %v751
        %753 = vmatmul.bf16.gmra.mxu0 %v669
        %v754 = vpop.f32.mrf.mxu0
        %v755 = vadd.f32 0.0, %v754
        %v756 = vpop.f32.mrf.mxu0
        %v757 = vadd.f32 0.0, %v756
        %758 = vmatmul.bf16.gmra.mxu0 %v672
        %v759 = vpop.f32.mrf.mxu0
        %v760 = vadd.f32 0.0, %v759
        %v761 = vpop.f32.mrf.mxu0
        %v762 = vadd.f32 0.0, %v761
        %763 = vmatmul.bf16.gmra.mxu0 %v675
        %v764 = vpop.f32.mrf.mxu0
        %v765 = vadd.f32 0.0, %v764
        %v766 = vpop.f32.mrf.mxu0
        %v767 = vadd.f32 0.0, %v766
        %768 = vmatmul.bf16.gmra.mxu0 %v678
        %v769 = vpop.f32.mrf.mxu0
        %v770 = vadd.f32 0.0, %v769
        %v771 = vpop.f32.mrf.mxu0
        %v772 = vadd.f32 0.0, %v771
        %773 = vmatmul.bf16.gmra.mxu0 %v681
        %v774 = vpop.f32.mrf.mxu0
        %v775 = vadd.f32 0.0, %v774
        %v776 = vpop.f32.mrf.mxu0
        %v777 = vadd.f32 0.0, %v776
        %778 = vdwg.mxu0
        %779 = vmatpush.bf16.msra.mxu0 0
        %780 = vmatpush.bf16.msra.mxu0 0
        %781 = vmatpush.bf16.msra.mxu0 0
        %782 = vmatpush.bf16.msra.mxu0 0
        %783 = vmatpush.bf16.msra.mxu0 0
        %784 = vmatpush.bf16.msra.mxu0 0
        %785 = vmatpush.bf16.msra.mxu0 0
        %786 = vmatpush.bf16.msra.mxu0 %v688
        %787 = vmatmul.bf16.gmra.mxu0 %v636
        %v788 = vpop.f32.mrf.mxu0
        %v789 = vadd.f32 0.0, %v788
        %v790 = vpop.f32.mrf.mxu0
        %v791 = vadd.f32 0.0, %v790
        %792 = vmatmul.bf16.gmra.mxu0 %v639
        %v793 = vpop.f32.mrf.mxu0
        %v794 = vadd.f32 0.0, %v793
        %v795 = vpop.f32.mrf.mxu0
        %v796 = vadd.f32 0.0, %v795
        %797 = vmatmul.bf16.gmra.mxu0 %v642
        %v798 = vpop.f32.mrf.mxu0
        %v799 = vadd.f32 0.0, %v798
        %v800 = vpop.f32.mrf.mxu0
        %v801 = vadd.f32 0.0, %v800
        %802 = vmatmul.bf16.gmra.mxu0 %v645
        %v803 = vpop.f32.mrf.mxu0
        %v804 = vadd.f32 0.0, %v803
        %v805 = vpop.f32.mrf.mxu0
        %v806 = vadd.f32 0.0, %v805
        %807 = vmatmul.bf16.gmra.mxu0 %v648
        %v808 = vpop.f32.mrf.mxu0
        %v809 = vadd.f32 0.0, %v808
        %v810 = vpop.f32.mrf.mxu0
        %v811 = vadd.f32 0.0, %v810
        %812 = vmatmul.bf16.gmra.mxu0 %v651
        %v813 = vpop.f32.mrf.mxu0
        %v814 = vadd.f32 0.0, %v813
        %v815 = vpop.f32.mrf.mxu0
        %v816 = vadd.f32 0.0, %v815
        %817 = vmatmul.bf16.gmra.mxu0 %v654
        %v818 = vpop.f32.mrf.mxu0
        %v819 = vadd.f32 0.0, %v818
        %v820 = vpop.f32.mrf.mxu0
        %v821 = vadd.f32 0.0, %v820
        %822 = vmatmul.bf16.gmra.mxu0 %v657
        %v823 = vpop.f32.mrf.mxu0
        %v824 = vadd.f32 0.0, %v823
        %v825 = vpop.f32.mrf.mxu0
        %v826 = vadd.f32 0.0, %v825
        %827 = vmatmul.bf16.gmra.mxu0 %v660
        %v828 = vpop.f32.mrf.mxu0
        %v829 = vadd.f32 0.0, %v828
        %v830 = vpop.f32.mrf.mxu0
        %v831 = vadd.f32 0.0, %v830
        %832 = vmatmul.bf16.gmra.mxu0 %v663
        %v833 = vpop.f32.mrf.mxu0
        %v834 = vadd.f32 0.0, %v833
        %v835 = vpop.f32.mrf.mxu0
        %v836 = vadd.f32 0.0, %v835
        %837 = vmatmul.bf16.gmra.mxu0 %v666
        %v838 = vpop.f32.mrf.mxu0
        %v839 = vadd.f32 0.0, %v838
        %v840 = vpop.f32.mrf.mxu0
        %v841 = vadd.f32 0.0, %v840
        %842 = vmatmul.bf16.gmra.mxu0 %v669
        %v843 = vpop.f32.mrf.mxu0
        %v844 = vadd.f32 0.0, %v843
        %v845 = vpop.f32.mrf.mxu0
        %v846 = vadd.f32 0.0, %v845
        %847 = vmatmul.bf16.gmra.mxu0 %v672
        %v848 = vpop.f32.mrf.mxu0
        %v849 = vadd.f32 0.0, %v848
        %v850 = vpop.f32.mrf.mxu0
        %v851 = vadd.f32 0.0, %v850
        %852 = vmatmul.bf16.gmra.mxu0 %v675
        %v853 = vpop.f32.mrf.mxu0
        %v854 = vadd.f32 0.0, %v853
        %v855 = vpop.f32.mrf.mxu0
        %v856 = vadd.f32 0.0, %v855
        %857 = vmatmul.bf16.gmra.mxu0 %v678
        %v858 = vpop.f32.mrf.mxu0
        %v859 = vadd.f32 0.0, %v858
        %v860 = vpop.f32.mrf.mxu0
        %v861 = vadd.f32 0.0, %v860
        %862 = vmatmul.bf16.gmra.mxu0 %v681
        %v863 = vpop.f32.mrf.mxu0
        %v864 = vadd.f32 0.0, %v863
        %v865 = vpop.f32.mrf.mxu0
        %v866 = vadd.f32 0.0, %v865
        %867 = vdwg.mxu0
        %v868 = vld [vmem:[#allocation2] sm:$0xff]
        %v869 = vld [vmem:[#allocation2 + $0x8] sm:$0xff]
        %v870 = vld [vmem:[#allocation2 + $0x10] sm:$0xff]
        %v871 = vld [vmem:[#allocation2 + $0x18] sm:$0xff]
        %v872 = vld [vmem:[#allocation2 + $0x20] sm:$0xff]
        %v873 = vld [vmem:[#allocation2 + $0x28] sm:$0xff]
        %v874 = vld [vmem:[#allocation2 + $0x30] sm:$0xff]
        %v875 = vld [vmem:[#allocation2 + $0x38] sm:$0xff]
        %v876 = vld [vmem:[#allocation2 + $0x40] sm:$0xff]
        %v877 = vld [vmem:[#allocation2 + $0x48] sm:$0xff]
        %v878 = vld [vmem:[#allocation2 + $0x50] sm:$0xff]
        %v879 = vld [vmem:[#allocation2 + $0x58] sm:$0xff]
        %v880 = vld [vmem:[#allocation2 + $0x60] sm:$0xff]
        %v881 = vld [vmem:[#allocation2 + $0x68] sm:$0xff]
        %v882 = vld [vmem:[#allocation2 + $0x70] sm:$0xff]
        %v883 = vld [vmem:[#allocation2 + $0x78] sm:$0xff]
        %v884 = vld [vmem:[#allocation2 + $0x80] sm:$0xff]
        %v885 = vld [vmem:[#allocation2 + $0x88] sm:$0xff]
        %v886 = vld [vmem:[#allocation2 + $0x90] sm:$0xff]
        %v887 = vld [vmem:[#allocation2 + $0x98] sm:$0xff]
        %v888 = vld [vmem:[#allocation2 + $0xa0] sm:$0xff]
        %v889 = vld [vmem:[#allocation2 + $0xa8] sm:$0xff]
        %v890 = vld [vmem:[#allocation2 + $0xb0] sm:$0xff]
        %v891 = vld [vmem:[#allocation2 + $0xb8] sm:$0xff]
        %v892 = vld [vmem:[#allocation2 + $0xc0] sm:$0xff]
        %v893 = vld [vmem:[#allocation2 + $0xc8] sm:$0xff]
        %v894 = vld [vmem:[#allocation2 + $0xd0] sm:$0xff]
        %v895 = vld [vmem:[#allocation2 + $0xd8] sm:$0xff]
        %v896 = vld [vmem:[#allocation2 + $0xe0] sm:$0xff]
        %v897 = vld [vmem:[#allocation2 + $0xe8] sm:$0xff]
        %v898 = vld [vmem:[#allocation2 + $0xf0] sm:$0xff]
        %v899 = vld [vmem:[#allocation2 + $0xf8] sm:$0xff]
        %v900 = vmax.f32 %v700, %v789
        %901 = vmax.xlane.f32.xlu0 %v900
        %v902 = vpop.xlane.xlu0 %901
        %v903 = vmax.f32 %v702, %v791
        %904 = vmax.xlane.f32.xlu0 %v903
        %v905 = vpop.xlane.xlu0 %904
        %v906 = vmax.f32 %v705, %v794
        %907 = vmax.xlane.f32.xlu0 %v906
        %v908 = vpop.xlane.xlu0 %907
        %v909 = vmax.f32 %v707, %v796
        %910 = vmax.xlane.f32.xlu0 %v909
        %v911 = vpop.xlane.xlu0 %910
        %v912 = vmax.f32 %v710, %v799
        %913 = vmax.xlane.f32.xlu0 %v912
        %v914 = vpop.xlane.xlu0 %913
        %v915 = vmax.f32 %v712, %v801
        %916 = vmax.xlane.f32.xlu0 %v915
        %v917 = vpop.xlane.xlu0 %916
        %v918 = vmax.f32 %v715, %v804
        %919 = vmax.xlane.f32.xlu0 %v918
        %v920 = vpop.xlane.xlu0 %919
        %v921 = vmax.f32 %v717, %v806
        %922 = vmax.xlane.f32.xlu0 %v921
        %v923 = vpop.xlane.xlu0 %922
        %v924 = vmax.f32 %v720, %v809
        %925 = vmax.xlane.f32.xlu0 %v924
        %v926 = vpop.xlane.xlu0 %925
        %v927 = vmax.f32 %v722, %v811
        %928 = vmax.xlane.f32.xlu0 %v927
        %v929 = vpop.xlane.xlu0 %928
        %v930 = vmax.f32 %v725, %v814
        %931 = vmax.xlane.f32.xlu0 %v930
        %v932 = vpop.xlane.xlu0 %931
        %v933 = vmax.f32 %v727, %v816
        %934 = vmax.xlane.f32.xlu0 %v933
        %v935 = vpop.xlane.xlu0 %934
        %v936 = vmax.f32 %v730, %v819
        %937 = vmax.xlane.f32.xlu0 %v936
        %v938 = vpop.xlane.xlu0 %937
        %v939 = vmax.f32 %v732, %v821
        %940 = vmax.xlane.f32.xlu0 %v939
        %v941 = vpop.xlane.xlu0 %940
        %v942 = vmax.f32 %v735, %v824
        %943 = vmax.xlane.f32.xlu0 %v942
        %v944 = vpop.xlane.xlu0 %943
        %v945 = vmax.f32 %v737, %v826
        %946 = vmax.xlane.f32.xlu0 %v945
        %v947 = vpop.xlane.xlu0 %946
        %v948 = vmax.f32 %v740, %v829
        %949 = vmax.xlane.f32.xlu0 %v948
        %v950 = vpop.xlane.xlu0 %949
        %v951 = vmax.f32 %v742, %v831
        %952 = vmax.xlane.f32.xlu0 %v951
        %v953 = vpop.xlane.xlu0 %952
        %v954 = vmax.f32 %v745, %v834
        %955 = vmax.xlane.f32.xlu0 %v954
        %v956 = vpop.xlane.xlu0 %955
        %v957 = vmax.f32 %v747, %v836
        %958 = vmax.xlane.f32.xlu0 %v957
        %v959 = vpop.xlane.xlu0 %958
        %v960 = vmax.f32 %v750, %v839
        %961 = vmax.xlane.f32.xlu0 %v960
        %v962 = vpop.xlane.xlu0 %961
        %v963 = vmax.f32 %v752, %v841
        %964 = vmax.xlane.f32.xlu0 %v963
        %v965 = vpop.xlane.xlu0 %964
        %v966 = vmax.f32 %v755, %v844
        %967 = vmax.xlane.f32.xlu0 %v966
        %v968 = vpop.xlane.xlu0 %967
        %v969 = vmax.f32 %v757, %v846
        %970 = vmax.xlane.f32.xlu0 %v969
        %v971 = vpop.xlane.xlu0 %970
        %v972 = vmax.f32 %v760, %v849
        %973 = vmax.xlane.f32.xlu0 %v972
        %v974 = vpop.xlane.xlu0 %973
        %v975 = vmax.f32 %v762, %v851
        %976 = vmax.xlane.f32.xlu0 %v975
        %v977 = vpop.xlane.xlu0 %976
        %v978 = vmax.f32 %v765, %v854
        %979 = vmax.xlane.f32.xlu0 %v978
        %v980 = vpop.xlane.xlu0 %979
        %v981 = vmax.f32 %v767, %v856
        %982 = vmax.xlane.f32.xlu0 %v981
        %v983 = vpop.xlane.xlu0 %982
        %v984 = vmax.f32 %v770, %v859
        %985 = vmax.xlane.f32.xlu0 %v984
        %v986 = vpop.xlane.xlu0 %985
        %v987 = vmax.f32 %v772, %v861
        %988 = vmax.xlane.f32.xlu0 %v987
        %v989 = vpop.xlane.xlu0 %988
        %v990 = vmax.f32 %v775, %v864
        %991 = vmax.xlane.f32.xlu0 %v990
        %v992 = vpop.xlane.xlu0 %991
        %v993 = vmax.f32 %v777, %v866
        %994 = vmax.xlane.f32.xlu0 %v993
        %v995 = vpop.xlane.xlu0 %994
        %v996 = vmax.f32 %v868, %v902
        %v997 = vmax.f32 %v869, %v905
        %v998 = vmax.f32 %v870, %v908
        %v999 = vmax.f32 %v871, %v911
        %v1000 = vmax.f32 %v872, %v914
        %v1001 = vmax.f32 %v873, %v917
        %v1002 = vmax.f32 %v874, %v920
        %v1003 = vmax.f32 %v875, %v923
        %v1004 = vmax.f32 %v876, %v926
        %v1005 = vmax.f32 %v877, %v929
        %v1006 = vmax.f32 %v878, %v932
        %v1007 = vmax.f32 %v879, %v935
        %v1008 = vmax.f32 %v880, %v938
        %v1009 = vmax.f32 %v881, %v941
        %v1010 = vmax.f32 %v882, %v944
        %v1011 = vmax.f32 %v883, %v947
        %v1012 = vmax.f32 %v884, %v950
        %v1013 = vmax.f32 %v885, %v953
        %v1014 = vmax.f32 %v886, %v956
        %v1015 = vmax.f32 %v887, %v959
        %v1016 = vmax.f32 %v888, %v962
        %v1017 = vmax.f32 %v889, %v965
        %v1018 = vmax.f32 %v890, %v968
        %v1019 = vmax.f32 %v891, %v971
        %v1020 = vmax.f32 %v892, %v974
        %v1021 = vmax.f32 %v893, %v977
        %v1022 = vmax.f32 %v894, %v980
        %v1023 = vmax.f32 %v895, %v983
        %v1024 = vmax.f32 %v896, %v986
        %v1025 = vmax.f32 %v897, %v989
        %v1026 = vmax.f32 %v898, %v992
        %v1027 = vmax.f32 %v899, %v995
        %v1028 = vsub.f32 %v868, %v996
        %v1029 = vsub.f32 %v869, %v997
        %v1030 = vsub.f32 %v870, %v998
        %v1031 = vsub.f32 %v871, %v999
        %v1032 = vsub.f32 %v872, %v1000
        %v1033 = vsub.f32 %v873, %v1001
        %v1034 = vsub.f32 %v874, %v1002
        %v1035 = vsub.f32 %v875, %v1003
        %v1036 = vsub.f32 %v876, %v1004
        %v1037 = vsub.f32 %v877, %v1005
        %v1038 = vsub.f32 %v878, %v1006
        %v1039 = vsub.f32 %v879, %v1007
        %v1040 = vsub.f32 %v880, %v1008
        %v1041 = vsub.f32 %v881, %v1009
        %v1042 = vsub.f32 %v882, %v1010
        %v1043 = vsub.f32 %v883, %v1011
        %v1044 = vsub.f32 %v884, %v1012
        %v1045 = vsub.f32 %v885, %v1013
        %v1046 = vsub.f32 %v886, %v1014
        %v1047 = vsub.f32 %v887, %v1015
        %v1048 = vsub.f32 %v888, %v1016
        %v1049 = vsub.f32 %v889, %v1017
        %v1050 = vsub.f32 %v890, %v1018
        %v1051 = vsub.f32 %v891, %v1019
        %v1052 = vsub.f32 %v892, %v1020
        %v1053 = vsub.f32 %v893, %v1021
        %v1054 = vsub.f32 %v894, %v1022
        %v1055 = vsub.f32 %v895, %v1023
        %v1056 = vsub.f32 %v896, %v1024
        %v1057 = vsub.f32 %v897, %v1025
        %v1058 = vsub.f32 %v898, %v1026
        %v1059 = vsub.f32 %v899, %v1027
        %v1060 = vmul.f32 %v1028, 1.442695
        %v1061 = vpow.pop %v1060
        %v1062 = vmul.f32 %v1029, 1.442695
        %v1063 = vpow.pop %v1062
        %v1064 = vmul.f32 %v1030, 1.442695
        %v1065 = vpow.pop %v1064
        %v1066 = vmul.f32 %v1031, 1.442695
        %v1067 = vpow.pop %v1066
        %v1068 = vmul.f32 %v1032, 1.442695
        %v1069 = vpow.pop %v1068
        %v1070 = vmul.f32 %v1033, 1.442695
        %v1071 = vpow.pop %v1070
        %v1072 = vmul.f32 %v1034, 1.442695
        %v1073 = vpow.pop %v1072
        %v1074 = vmul.f32 %v1035, 1.442695
        %v1075 = vpow.pop %v1074
        %v1076 = vmul.f32 %v1036, 1.442695
        %v1077 = vpow.pop %v1076
        %v1078 = vmul.f32 %v1037, 1.442695
        %v1079 = vpow.pop %v1078
        %v1080 = vmul.f32 %v1038, 1.442695
        %v1081 = vpow.pop %v1080
        %v1082 = vmul.f32 %v1039, 1.442695
        %v1083 = vpow.pop %v1082
        %v1084 = vmul.f32 %v1040, 1.442695
        %v1085 = vpow.pop %v1084
        %v1086 = vmul.f32 %v1041, 1.442695
        %v1087 = vpow.pop %v1086
        %v1088 = vmul.f32 %v1042, 1.442695
        %v1089 = vpow.pop %v1088
        %v1090 = vmul.f32 %v1043, 1.442695
        %v1091 = vpow.pop %v1090
        %v1092 = vmul.f32 %v1044, 1.442695
        %v1093 = vpow.pop %v1092
        %v1094 = vmul.f32 %v1045, 1.442695
        %v1095 = vpow.pop %v1094
        %v1096 = vmul.f32 %v1046, 1.442695
        %v1097 = vpow.pop %v1096
        %v1098 = vmul.f32 %v1047, 1.442695
        %v1099 = vpow.pop %v1098
        %v1100 = vmul.f32 %v1048, 1.442695
        %v1101 = vpow.pop %v1100
        %v1102 = vmul.f32 %v1049, 1.442695
        %v1103 = vpow.pop %v1102
        %v1104 = vmul.f32 %v1050, 1.442695
        %v1105 = vpow.pop %v1104
        %v1106 = vmul.f32 %v1051, 1.442695
        %v1107 = vpow.pop %v1106
        %v1108 = vmul.f32 %v1052, 1.442695
        %v1109 = vpow.pop %v1108
        %v1110 = vmul.f32 %v1053, 1.442695
        %v1111 = vpow.pop %v1110
        %v1112 = vmul.f32 %v1054, 1.442695
        %v1113 = vpow.pop %v1112
        %v1114 = vmul.f32 %v1055, 1.442695
        %v1115 = vpow.pop %v1114
        %v1116 = vmul.f32 %v1056, 1.442695
        %v1117 = vpow.pop %v1116
        %v1118 = vmul.f32 %v1057, 1.442695
        %v1119 = vpow.pop %v1118
        %v1120 = vmul.f32 %v1058, 1.442695
        %v1121 = vpow.pop %v1120
        %v1122 = vmul.f32 %v1059, 1.442695
        %v1123 = vpow.pop %v1122
        %1125 = vset.pattern.permute.xlu0 0
        %1126 = vperm.xlu0 %1125, %v996
        %v1127 = vpop.permute.xlu0 %1126
        %1130 = vset.pattern.permute.xlu0 0
        %1131 = vperm.xlu0 %1130, %v997
        %v1132 = vpop.permute.xlu0 %1131
        %1135 = vset.pattern.permute.xlu0 0
        %1136 = vperm.xlu0 %1135, %v998
        %v1137 = vpop.permute.xlu0 %1136
        %1140 = vset.pattern.permute.xlu0 0
        %1141 = vperm.xlu0 %1140, %v999
        %v1142 = vpop.permute.xlu0 %1141
        %1145 = vset.pattern.permute.xlu0 0
        %1146 = vperm.xlu0 %1145, %v1000
        %v1147 = vpop.permute.xlu0 %1146
        %1150 = vset.pattern.permute.xlu0 0
        %1151 = vperm.xlu0 %1150, %v1001
        %v1152 = vpop.permute.xlu0 %1151
        %1155 = vset.pattern.permute.xlu0 0
        %1156 = vperm.xlu0 %1155, %v1002
        %v1157 = vpop.permute.xlu0 %1156
        %1160 = vset.pattern.permute.xlu0 0
        %1161 = vperm.xlu0 %1160, %v1003
        %v1162 = vpop.permute.xlu0 %1161
        %1165 = vset.pattern.permute.xlu0 0
        %1166 = vperm.xlu0 %1165, %v1004
        %v1167 = vpop.permute.xlu0 %1166
        %1170 = vset.pattern.permute.xlu0 0
        %1171 = vperm.xlu0 %1170, %v1005
        %v1172 = vpop.permute.xlu0 %1171
        %1175 = vset.pattern.permute.xlu0 0
        %1176 = vperm.xlu0 %1175, %v1006
        %v1177 = vpop.permute.xlu0 %1176
        %1180 = vset.pattern.permute.xlu0 0
        %1181 = vperm.xlu0 %1180, %v1007
        %v1182 = vpop.permute.xlu0 %1181
        %1185 = vset.pattern.permute.xlu0 0
        %1186 = vperm.xlu0 %1185, %v1008
        %v1187 = vpop.permute.xlu0 %1186
        %1190 = vset.pattern.permute.xlu0 0
        %1191 = vperm.xlu0 %1190, %v1009
        %v1192 = vpop.permute.xlu0 %1191
        %1195 = vset.pattern.permute.xlu0 0
        %1196 = vperm.xlu0 %1195, %v1010
        %v1197 = vpop.permute.xlu0 %1196
        %1200 = vset.pattern.permute.xlu0 0
        %1201 = vperm.xlu0 %1200, %v1011
        %v1202 = vpop.permute.xlu0 %1201
        %1205 = vset.pattern.permute.xlu0 0
        %1206 = vperm.xlu0 %1205, %v1012
        %v1207 = vpop.permute.xlu0 %1206
        %1210 = vset.pattern.permute.xlu0 0
        %1211 = vperm.xlu0 %1210, %v1013
        %v1212 = vpop.permute.xlu0 %1211
        %1215 = vset.pattern.permute.xlu0 0
        %1216 = vperm.xlu0 %1215, %v1014
        %v1217 = vpop.permute.xlu0 %1216
        %1220 = vset.pattern.permute.xlu0 0
        %1221 = vperm.xlu0 %1220, %v1015
        %v1222 = vpop.permute.xlu0 %1221
        %1225 = vset.pattern.permute.xlu0 0
        %1226 = vperm.xlu0 %1225, %v1016
        %v1227 = vpop.permute.xlu0 %1226
        %1230 = vset.pattern.permute.xlu0 0
        %1231 = vperm.xlu0 %1230, %v1017
        %v1232 = vpop.permute.xlu0 %1231
        %1235 = vset.pattern.permute.xlu0 0
        %1236 = vperm.xlu0 %1235, %v1018
        %v1237 = vpop.permute.xlu0 %1236
        %1240 = vset.pattern.permute.xlu0 0
        %1241 = vperm.xlu0 %1240, %v1019
        %v1242 = vpop.permute.xlu0 %1241
        %1245 = vset.pattern.permute.xlu0 0
        %1246 = vperm.xlu0 %1245, %v1020
        %v1247 = vpop.permute.xlu0 %1246
        %1250 = vset.pattern.permute.xlu0 0
        %1251 = vperm.xlu0 %1250, %v1021
        %v1252 = vpop.permute.xlu0 %1251
        %1255 = vset.pattern.permute.xlu0 0
        %1256 = vperm.xlu0 %1255, %v1022
        %v1257 = vpop.permute.xlu0 %1256
        %1260 = vset.pattern.permute.xlu0 0
        %1261 = vperm.xlu0 %1260, %v1023
        %v1262 = vpop.permute.xlu0 %1261
        %1265 = vset.pattern.permute.xlu0 0
        %1266 = vperm.xlu0 %1265, %v1024
        %v1267 = vpop.permute.xlu0 %1266
        %1270 = vset.pattern.permute.xlu0 0
        %1271 = vperm.xlu0 %1270, %v1025
        %v1272 = vpop.permute.xlu0 %1271
        %1275 = vset.pattern.permute.xlu0 0
        %1276 = vperm.xlu0 %1275, %v1026
        %v1277 = vpop.permute.xlu0 %1276
        %1280 = vset.pattern.permute.xlu0 0
        %1281 = vperm.xlu0 %1280, %v1027
        %v1282 = vpop.permute.xlu0 %1281
        %v1284 = vsub.f32 %v700, %v1127
        %v1285 = vsub.f32 %v789, %v1127
        %v1286 = vsub.f32 %v702, %v1132
        %v1287 = vsub.f32 %v791, %v1132
        %v1288 = vsub.f32 %v705, %v1137
        %v1289 = vsub.f32 %v794, %v1137
        %v1290 = vsub.f32 %v707, %v1142
        %v1291 = vsub.f32 %v796, %v1142
        %v1292 = vsub.f32 %v710, %v1147
        %v1293 = vsub.f32 %v799, %v1147
        %v1294 = vsub.f32 %v712, %v1152
        %v1295 = vsub.f32 %v801, %v1152
        %v1296 = vsub.f32 %v715, %v1157
        %v1297 = vsub.f32 %v804, %v1157
        %v1298 = vsub.f32 %v717, %v1162
        %v1299 = vsub.f32 %v806, %v1162
        %v1300 = vsub.f32 %v720, %v1167
        %v1301 = vsub.f32 %v809, %v1167
        %v1302 = vsub.f32 %v722, %v1172
        %v1303 = vsub.f32 %v811, %v1172
        %v1304 = vsub.f32 %v725, %v1177
        %v1305 = vsub.f32 %v814, %v1177
        %v1306 = vsub.f32 %v727, %v1182
        %v1307 = vsub.f32 %v816, %v1182
        %v1308 = vsub.f32 %v730, %v1187
        %v1309 = vsub.f32 %v819, %v1187
        %v1310 = vsub.f32 %v732, %v1192
        %v1311 = vsub.f32 %v821, %v1192
        %v1312 = vsub.f32 %v735, %v1197
        %v1313 = vsub.f32 %v824, %v1197
        %v1314 = vsub.f32 %v737, %v1202
        %v1315 = vsub.f32 %v826, %v1202
        %v1316 = vsub.f32 %v740, %v1207
        %v1317 = vsub.f32 %v829, %v1207
        %v1318 = vsub.f32 %v742, %v1212
        %v1319 = vsub.f32 %v831, %v1212
        %v1320 = vsub.f32 %v745, %v1217
        %v1321 = vsub.f32 %v834, %v1217
        %v1322 = vsub.f32 %v747, %v1222
        %v1323 = vsub.f32 %v836, %v1222
        %v1324 = vsub.f32 %v750, %v1227
        %v1325 = vsub.f32 %v839, %v1227
        %v1326 = vsub.f32 %v752, %v1232
        %v1327 = vsub.f32 %v841, %v1232
        %v1328 = vsub.f32 %v755, %v1237
        %v1329 = vsub.f32 %v844, %v1237
        %v1330 = vsub.f32 %v757, %v1242
        %v1331 = vsub.f32 %v846, %v1242
        %v1332 = vsub.f32 %v760, %v1247
        %v1333 = vsub.f32 %v849, %v1247
        %v1334 = vsub.f32 %v762, %v1252
        %v1335 = vsub.f32 %v851, %v1252
        %v1336 = vsub.f32 %v765, %v1257
        %v1337 = vsub.f32 %v854, %v1257
        %v1338 = vsub.f32 %v767, %v1262
        %v1339 = vsub.f32 %v856, %v1262
        %v1340 = vsub.f32 %v770, %v1267
        %v1341 = vsub.f32 %v859, %v1267
        %v1342 = vsub.f32 %v772, %v1272
        %v1343 = vsub.f32 %v861, %v1272
        %v1344 = vsub.f32 %v775, %v1277
        %v1345 = vsub.f32 %v864, %v1277
        %v1346 = vsub.f32 %v777, %v1282
        %v1347 = vsub.f32 %v866, %v1282
        %v1348 = vmul.f32 %v1284, 1.442695
        %v1349 = vpow.pop %v1348
        %v1350 = vmul.f32 %v1285, 1.442695
        %v1351 = vpow.pop %v1350
        %v1352 = vmul.f32 %v1286, 1.442695
        %v1353 = vpow.pop %v1352
        %v1354 = vmul.f32 %v1287, 1.442695
        %v1355 = vpow.pop %v1354
        %v1356 = vmul.f32 %v1288, 1.442695
        %v1357 = vpow.pop %v1356
        %v1358 = vmul.f32 %v1289, 1.442695
        %v1359 = vpow.pop %v1358
        %v1360 = vmul.f32 %v1290, 1.442695
        %v1361 = vpow.pop %v1360
        %v1362 = vmul.f32 %v1291, 1.442695
        %v1363 = vpow.pop %v1362
        %v1364 = vmul.f32 %v1292, 1.442695
        %v1365 = vpow.pop %v1364
        %v1366 = vmul.f32 %v1293, 1.442695
        %v1367 = vpow.pop %v1366
        %v1368 = vmul.f32 %v1294, 1.442695
        %v1369 = vpow.pop %v1368
        %v1370 = vmul.f32 %v1295, 1.442695
        %v1371 = vpow.pop %v1370
        %v1372 = vmul.f32 %v1296, 1.442695
        %v1373 = vpow.pop %v1372
        %v1374 = vmul.f32 %v1297, 1.442695
        %v1375 = vpow.pop %v1374
        %v1376 = vmul.f32 %v1298, 1.442695
        %v1377 = vpow.pop %v1376
        %v1378 = vmul.f32 %v1299, 1.442695
        %v1379 = vpow.pop %v1378
        %v1380 = vmul.f32 %v1300, 1.442695
        %v1381 = vpow.pop %v1380
        %v1382 = vmul.f32 %v1301, 1.442695
        %v1383 = vpow.pop %v1382
        %v1384 = vmul.f32 %v1302, 1.442695
        %v1385 = vpow.pop %v1384
        %v1386 = vmul.f32 %v1303, 1.442695
        %v1387 = vpow.pop %v1386
        %v1388 = vmul.f32 %v1304, 1.442695
        %v1389 = vpow.pop %v1388
        %v1390 = vmul.f32 %v1305, 1.442695
        %v1391 = vpow.pop %v1390
        %v1392 = vmul.f32 %v1306, 1.442695
        %v1393 = vpow.pop %v1392
        %v1394 = vmul.f32 %v1307, 1.442695
        %v1395 = vpow.pop %v1394
        %v1396 = vmul.f32 %v1308, 1.442695
        %v1397 = vpow.pop %v1396
        %v1398 = vmul.f32 %v1309, 1.442695
        %v1399 = vpow.pop %v1398
        %v1400 = vmul.f32 %v1310, 1.442695
        %v1401 = vpow.pop %v1400
        %v1402 = vmul.f32 %v1311, 1.442695
        %v1403 = vpow.pop %v1402
        %v1404 = vmul.f32 %v1312, 1.442695
        %v1405 = vpow.pop %v1404
        %v1406 = vmul.f32 %v1313, 1.442695
        %v1407 = vpow.pop %v1406
        %v1408 = vmul.f32 %v1314, 1.442695
        %v1409 = vpow.pop %v1408
        %v1410 = vmul.f32 %v1315, 1.442695
        %v1411 = vpow.pop %v1410
        %v1412 = vmul.f32 %v1316, 1.442695
        %v1413 = vpow.pop %v1412
        %v1414 = vmul.f32 %v1317, 1.442695
        %v1415 = vpow.pop %v1414
        %v1416 = vmul.f32 %v1318, 1.442695
        %v1417 = vpow.pop %v1416
        %v1418 = vmul.f32 %v1319, 1.442695
        %v1419 = vpow.pop %v1418
        %v1420 = vmul.f32 %v1320, 1.442695
        %v1421 = vpow.pop %v1420
        %v1422 = vmul.f32 %v1321, 1.442695
        %v1423 = vpow.pop %v1422
        %v1424 = vmul.f32 %v1322, 1.442695
        %v1425 = vpow.pop %v1424
        %v1426 = vmul.f32 %v1323, 1.442695
        %v1427 = vpow.pop %v1426
        %v1428 = vmul.f32 %v1324, 1.442695
        %v1429 = vpow.pop %v1428
        %v1430 = vmul.f32 %v1325, 1.442695
        %v1431 = vpow.pop %v1430
        %v1432 = vmul.f32 %v1326, 1.442695
        %v1433 = vpow.pop %v1432
        %v1434 = vmul.f32 %v1327, 1.442695
        %v1435 = vpow.pop %v1434
        %v1436 = vmul.f32 %v1328, 1.442695
        %v1437 = vpow.pop %v1436
        %v1438 = vmul.f32 %v1329, 1.442695
        %v1439 = vpow.pop %v1438
        %v1440 = vmul.f32 %v1330, 1.442695
        %v1441 = vpow.pop %v1440
        %v1442 = vmul.f32 %v1331, 1.442695
        %v1443 = vpow.pop %v1442
        %v1444 = vmul.f32 %v1332, 1.442695
        %v1445 = vpow.pop %v1444
        %v1446 = vmul.f32 %v1333, 1.442695
        %v1447 = vpow.pop %v1446
        %v1448 = vmul.f32 %v1334, 1.442695
        %v1449 = vpow.pop %v1448
        %v1450 = vmul.f32 %v1335, 1.442695
        %v1451 = vpow.pop %v1450
        %v1452 = vmul.f32 %v1336, 1.442695
        %v1453 = vpow.pop %v1452
        %v1454 = vmul.f32 %v1337, 1.442695
        %v1455 = vpow.pop %v1454
        %v1456 = vmul.f32 %v1338, 1.442695
        %v1457 = vpow.pop %v1456
        %v1458 = vmul.f32 %v1339, 1.442695
        %v1459 = vpow.pop %v1458
        %v1460 = vmul.f32 %v1340, 1.442695
        %v1461 = vpow.pop %v1460
        %v1462 = vmul.f32 %v1341, 1.442695
        %v1463 = vpow.pop %v1462
        %v1464 = vmul.f32 %v1342, 1.442695
        %v1465 = vpow.pop %v1464
        %v1466 = vmul.f32 %v1343, 1.442695
        %v1467 = vpow.pop %v1466
        %v1468 = vmul.f32 %v1344, 1.442695
        %v1469 = vpow.pop %v1468
        %v1470 = vmul.f32 %v1345, 1.442695
        %v1471 = vpow.pop %v1470
        %v1472 = vmul.f32 %v1346, 1.442695
        %v1473 = vpow.pop %v1472
        %v1474 = vmul.f32 %v1347, 1.442695
        %v1475 = vpow.pop %v1474
        %v1476 = vld [vmem:[#allocation3] sm:$0xff]
        %v1477 = vld [vmem:[#allocation3 + $0x8] sm:$0xff]
        %v1478 = vld [vmem:[#allocation3 + $0x10] sm:$0xff]
        %v1479 = vld [vmem:[#allocation3 + $0x18] sm:$0xff]
        %v1480 = vld [vmem:[#allocation3 + $0x20] sm:$0xff]
        %v1481 = vld [vmem:[#allocation3 + $0x28] sm:$0xff]
        %v1482 = vld [vmem:[#allocation3 + $0x30] sm:$0xff]
        %v1483 = vld [vmem:[#allocation3 + $0x38] sm:$0xff]
        %v1484 = vld [vmem:[#allocation3 + $0x40] sm:$0xff]
        %v1485 = vld [vmem:[#allocation3 + $0x48] sm:$0xff]
        %v1486 = vld [vmem:[#allocation3 + $0x50] sm:$0xff]
        %v1487 = vld [vmem:[#allocation3 + $0x58] sm:$0xff]
        %v1488 = vld [vmem:[#allocation3 + $0x60] sm:$0xff]
        %v1489 = vld [vmem:[#allocation3 + $0x68] sm:$0xff]
        %v1490 = vld [vmem:[#allocation3 + $0x70] sm:$0xff]
        %v1491 = vld [vmem:[#allocation3 + $0x78] sm:$0xff]
        %v1492 = vld [vmem:[#allocation3 + $0x80] sm:$0xff]
        %v1493 = vld [vmem:[#allocation3 + $0x88] sm:$0xff]
        %v1494 = vld [vmem:[#allocation3 + $0x90] sm:$0xff]
        %v1495 = vld [vmem:[#allocation3 + $0x98] sm:$0xff]
        %v1496 = vld [vmem:[#allocation3 + $0xa0] sm:$0xff]
        %v1497 = vld [vmem:[#allocation3 + $0xa8] sm:$0xff]
        %v1498 = vld [vmem:[#allocation3 + $0xb0] sm:$0xff]
        %v1499 = vld [vmem:[#allocation3 + $0xb8] sm:$0xff]
        %v1500 = vld [vmem:[#allocation3 + $0xc0] sm:$0xff]
        %v1501 = vld [vmem:[#allocation3 + $0xc8] sm:$0xff]
        %v1502 = vld [vmem:[#allocation3 + $0xd0] sm:$0xff]
        %v1503 = vld [vmem:[#allocation3 + $0xd8] sm:$0xff]
        %v1504 = vld [vmem:[#allocation3 + $0xe0] sm:$0xff]
        %v1505 = vld [vmem:[#allocation3 + $0xe8] sm:$0xff]
        %v1506 = vld [vmem:[#allocation3 + $0xf0] sm:$0xff]
        %v1507 = vld [vmem:[#allocation3 + $0xf8] sm:$0xff]
        %v1508 = vmul.f32 %v1061, %v1476
        %v1509 = vmul.f32 %v1063, %v1477
        %v1510 = vmul.f32 %v1065, %v1478
        %v1511 = vmul.f32 %v1067, %v1479
        %v1512 = vmul.f32 %v1069, %v1480
        %v1513 = vmul.f32 %v1071, %v1481
        %v1514 = vmul.f32 %v1073, %v1482
        %v1515 = vmul.f32 %v1075, %v1483
        %v1516 = vmul.f32 %v1077, %v1484
        %v1517 = vmul.f32 %v1079, %v1485
        %v1518 = vmul.f32 %v1081, %v1486
        %v1519 = vmul.f32 %v1083, %v1487
        %v1520 = vmul.f32 %v1085, %v1488
        %v1521 = vmul.f32 %v1087, %v1489
        %v1522 = vmul.f32 %v1089, %v1490
        %v1523 = vmul.f32 %v1091, %v1491
        %v1524 = vmul.f32 %v1093, %v1492
        %v1525 = vmul.f32 %v1095, %v1493
        %v1526 = vmul.f32 %v1097, %v1494
        %v1527 = vmul.f32 %v1099, %v1495
        %v1528 = vmul.f32 %v1101, %v1496
        %v1529 = vmul.f32 %v1103, %v1497
        %v1530 = vmul.f32 %v1105, %v1498
        %v1531 = vmul.f32 %v1107, %v1499
        %v1532 = vmul.f32 %v1109, %v1500
        %v1533 = vmul.f32 %v1111, %v1501
        %v1534 = vmul.f32 %v1113, %v1502
        %v1535 = vmul.f32 %v1115, %v1503
        %v1536 = vmul.f32 %v1117, %v1504
        %v1537 = vmul.f32 %v1119, %v1505
        %v1538 = vmul.f32 %v1121, %v1506
        %v1539 = vmul.f32 %v1123, %v1507
        %v1540 = vadd.f32 %v1349, %v1351
        %1541 = vadd.xlane.f32.xlu0 %v1540
        %v1542 = vpop.xlane.xlu0 %1541
        %v1543 = vadd.f32 %v1353, %v1355
        %1544 = vadd.xlane.f32.xlu0 %v1543
        %v1545 = vpop.xlane.xlu0 %1544
        %v1546 = vadd.f32 %v1357, %v1359
        %1547 = vadd.xlane.f32.xlu0 %v1546
        %v1548 = vpop.xlane.xlu0 %1547
        %v1549 = vadd.f32 %v1361, %v1363
        %1550 = vadd.xlane.f32.xlu0 %v1549
        %v1551 = vpop.xlane.xlu0 %1550
        %v1552 = vadd.f32 %v1365, %v1367
        %1553 = vadd.xlane.f32.xlu0 %v1552
        %v1554 = vpop.xlane.xlu0 %1553
        %v1555 = vadd.f32 %v1369, %v1371
        %1556 = vadd.xlane.f32.xlu0 %v1555
        %v1557 = vpop.xlane.xlu0 %1556
        %v1558 = vadd.f32 %v1373, %v1375
        %1559 = vadd.xlane.f32.xlu0 %v1558
        %v1560 = vpop.xlane.xlu0 %1559
        %v1561 = vadd.f32 %v1377, %v1379
        %1562 = vadd.xlane.f32.xlu0 %v1561
        %v1563 = vpop.xlane.xlu0 %1562
        %v1564 = vadd.f32 %v1381, %v1383
        %1565 = vadd.xlane.f32.xlu0 %v1564
        %v1566 = vpop.xlane.xlu0 %1565
        %v1567 = vadd.f32 %v1385, %v1387
        %1568 = vadd.xlane.f32.xlu0 %v1567
        %v1569 = vpop.xlane.xlu0 %1568
        %v1570 = vadd.f32 %v1389, %v1391
        %1571 = vadd.xlane.f32.xlu0 %v1570
        %v1572 = vpop.xlane.xlu0 %1571
        %v1573 = vadd.f32 %v1393, %v1395
        %1574 = vadd.xlane.f32.xlu0 %v1573
        %v1575 = vpop.xlane.xlu0 %1574
        %v1576 = vadd.f32 %v1397, %v1399
        %1577 = vadd.xlane.f32.xlu0 %v1576
        %v1578 = vpop.xlane.xlu0 %1577
        %v1579 = vadd.f32 %v1401, %v1403
        %1580 = vadd.xlane.f32.xlu0 %v1579
        %v1581 = vpop.xlane.xlu0 %1580
        %v1582 = vadd.f32 %v1405, %v1407
        %1583 = vadd.xlane.f32.xlu0 %v1582
        %v1584 = vpop.xlane.xlu0 %1583
        %v1585 = vadd.f32 %v1409, %v1411
        %1586 = vadd.xlane.f32.xlu0 %v1585
        %v1587 = vpop.xlane.xlu0 %1586
        %v1588 = vadd.f32 %v1413, %v1415
        %1589 = vadd.xlane.f32.xlu0 %v1588
        %v1590 = vpop.xlane.xlu0 %1589
        %v1591 = vadd.f32 %v1417, %v1419
        %1592 = vadd.xlane.f32.xlu0 %v1591
        %v1593 = vpop.xlane.xlu0 %1592
        %v1594 = vadd.f32 %v1421, %v1423
        %1595 = vadd.xlane.f32.xlu0 %v1594
        %v1596 = vpop.xlane.xlu0 %1595
        %v1597 = vadd.f32 %v1425, %v1427
        %1598 = vadd.xlane.f32.xlu0 %v1597
        %v1599 = vpop.xlane.xlu0 %1598
        %v1600 = vadd.f32 %v1429, %v1431
        %1601 = vadd.xlane.f32.xlu0 %v1600
        %v1602 = vpop.xlane.xlu0 %1601
        %v1603 = vadd.f32 %v1433, %v1435
        %1604 = vadd.xlane.f32.xlu0 %v1603
        %v1605 = vpop.xlane.xlu0 %1604
        %v1606 = vadd.f32 %v1437, %v1439
        %1607 = vadd.xlane.f32.xlu0 %v1606
        %v1608 = vpop.xlane.xlu0 %1607
        %v1609 = vadd.f32 %v1441, %v1443
        %1610 = vadd.xlane.f32.xlu0 %v1609
        %v1611 = vpop.xlane.xlu0 %1610
        %v1612 = vadd.f32 %v1445, %v1447
        %1613 = vadd.xlane.f32.xlu0 %v1612
        %v1614 = vpop.xlane.xlu0 %1613
        %v1615 = vadd.f32 %v1449, %v1451
        %1616 = vadd.xlane.f32.xlu0 %v1615
        %v1617 = vpop.xlane.xlu0 %1616
        %v1618 = vadd.f32 %v1453, %v1455
        %1619 = vadd.xlane.f32.xlu0 %v1618
        %v1620 = vpop.xlane.xlu0 %1619
        %v1621 = vadd.f32 %v1457, %v1459
        %1622 = vadd.xlane.f32.xlu0 %v1621
        %v1623 = vpop.xlane.xlu0 %1622
        %v1624 = vadd.f32 %v1461, %v1463
        %1625 = vadd.xlane.f32.xlu0 %v1624
        %v1626 = vpop.xlane.xlu0 %1625
        %v1627 = vadd.f32 %v1465, %v1467
        %1628 = vadd.xlane.f32.xlu0 %v1627
        %v1629 = vpop.xlane.xlu0 %1628
        %v1630 = vadd.f32 %v1469, %v1471
        %1631 = vadd.xlane.f32.xlu0 %v1630
        %v1632 = vpop.xlane.xlu0 %1631
        %v1633 = vadd.f32 %v1473, %v1475
        %1634 = vadd.xlane.f32.xlu0 %v1633
        %v1635 = vpop.xlane.xlu0 %1634
        %v1636 = vadd.f32 %v1508, %v1542
        %v1637 = vadd.f32 %v1509, %v1545
        %v1638 = vadd.f32 %v1510, %v1548
        %v1639 = vadd.f32 %v1511, %v1551
        %v1640 = vadd.f32 %v1512, %v1554
        %v1641 = vadd.f32 %v1513, %v1557
        %v1642 = vadd.f32 %v1514, %v1560
        %v1643 = vadd.f32 %v1515, %v1563
        %v1644 = vadd.f32 %v1516, %v1566
        %v1645 = vadd.f32 %v1517, %v1569
        %v1646 = vadd.f32 %v1518, %v1572
        %v1647 = vadd.f32 %v1519, %v1575
        %v1648 = vadd.f32 %v1520, %v1578
        %v1649 = vadd.f32 %v1521, %v1581
        %v1650 = vadd.f32 %v1522, %v1584
        %v1651 = vadd.f32 %v1523, %v1587
        %v1652 = vadd.f32 %v1524, %v1590
        %v1653 = vadd.f32 %v1525, %v1593
        %v1654 = vadd.f32 %v1526, %v1596
        %v1655 = vadd.f32 %v1527, %v1599
        %v1656 = vadd.f32 %v1528, %v1602
        %v1657 = vadd.f32 %v1529, %v1605
        %v1658 = vadd.f32 %v1530, %v1608
        %v1659 = vadd.f32 %v1531, %v1611
        %v1660 = vadd.f32 %v1532, %v1614
        %v1661 = vadd.f32 %v1533, %v1617
        %v1662 = vadd.f32 %v1534, %v1620
        %v1663 = vadd.f32 %v1535, %v1623
        %v1664 = vadd.f32 %v1536, %v1626
        %v1665 = vadd.f32 %v1537, %v1629
        %v1666 = vadd.f32 %v1538, %v1632
        %v1667 = vadd.f32 %v1539, %v1635
        %vm1668 = vcmask 7168
        %1669 = vst.msk [vmem:[#allocation3] sm:$0xff] %vm1668, %v1636
        %1670 = vst.msk [vmem:[#allocation3 + $0x8] sm:$0xff] %vm1668, %v1637
        %1671 = vst.msk [vmem:[#allocation3 + $0x10] sm:$0xff] %vm1668, %v1638
        %1672 = vst.msk [vmem:[#allocation3 + $0x18] sm:$0xff] %vm1668, %v1639
        %1673 = vst.msk [vmem:[#allocation3 + $0x20] sm:$0xff] %vm1668, %v1640
        %1674 = vst.msk [vmem:[#allocation3 + $0x28] sm:$0xff] %vm1668, %v1641
        %1675 = vst.msk [vmem:[#allocation3 + $0x30] sm:$0xff] %vm1668, %v1642
        %1676 = vst.msk [vmem:[#allocation3 + $0x38] sm:$0xff] %vm1668, %v1643
        %1677 = vst.msk [vmem:[#allocation3 + $0x40] sm:$0xff] %vm1668, %v1644
        %1678 = vst.msk [vmem:[#allocation3 + $0x48] sm:$0xff] %vm1668, %v1645
        %1679 = vst.msk [vmem:[#allocation3 + $0x50] sm:$0xff] %vm1668, %v1646
        %1680 = vst.msk [vmem:[#allocation3 + $0x58] sm:$0xff] %vm1668, %v1647
        %1681 = vst.msk [vmem:[#allocation3 + $0x60] sm:$0xff] %vm1668, %v1648
        %1682 = vst.msk [vmem:[#allocation3 + $0x68] sm:$0xff] %vm1668, %v1649
        %1683 = vst.msk [vmem:[#allocation3 + $0x70] sm:$0xff] %vm1668, %v1650
        %1684 = vst.msk [vmem:[#allocation3 + $0x78] sm:$0xff] %vm1668, %v1651
        %1685 = vst.msk [vmem:[#allocation3 + $0x80] sm:$0xff] %vm1668, %v1652
        %1686 = vst.msk [vmem:[#allocation3 + $0x88] sm:$0xff] %vm1668, %v1653
        %1687 = vst.msk [vmem:[#allocation3 + $0x90] sm:$0xff] %vm1668, %v1654
        %1688 = vst.msk [vmem:[#allocation3 + $0x98] sm:$0xff] %vm1668, %v1655
        %1689 = vst.msk [vmem:[#allocation3 + $0xa0] sm:$0xff] %vm1668, %v1656
        %1690 = vst.msk [vmem:[#allocation3 + $0xa8] sm:$0xff] %vm1668, %v1657
        %1691 = vst.msk [vmem:[#allocation3 + $0xb0] sm:$0xff] %vm1668, %v1658
        %1692 = vst.msk [vmem:[#allocation3 + $0xb8] sm:$0xff] %vm1668, %v1659
        %1693 = vst.msk [vmem:[#allocation3 + $0xc0] sm:$0xff] %vm1668, %v1660
        %1694 = vst.msk [vmem:[#allocation3 + $0xc8] sm:$0xff] %vm1668, %v1661
        %1695 = vst.msk [vmem:[#allocation3 + $0xd0] sm:$0xff] %vm1668, %v1662
        %1696 = vst.msk [vmem:[#allocation3 + $0xd8] sm:$0xff] %vm1668, %v1663
        %1697 = vst.msk [vmem:[#allocation3 + $0xe0] sm:$0xff] %vm1668, %v1664
        %1698 = vst.msk [vmem:[#allocation3 + $0xe8] sm:$0xff] %vm1668, %v1665
        %1699 = vst.msk [vmem:[#allocation3 + $0xf0] sm:$0xff] %vm1668, %v1666
        %1700 = vst.msk [vmem:[#allocation3 + $0xf8] sm:$0xff] %vm1668, %v1667
        %v1701 = vld [vmem:[%s348] sm:$0xff]
        %v1702 = vld [vmem:[%s348 + $0x8] sm:$0xff]
        %v1703 = vld [vmem:[%s348 + $0x10] sm:$0xff]
        %v1704 = vld [vmem:[%s348 + $0x18] sm:$0xff]
        %v1705 = vld [vmem:[%s348 + $0x20] sm:$0xff]
        %v1706 = vld [vmem:[%s348 + $0x28] sm:$0xff]
        %v1707 = vld [vmem:[%s348 + $0x30] sm:$0xff]
        %v1708 = vld [vmem:[%s348 + $0x38] sm:$0xff]
        %v1709 = vld [vmem:[%s348 + $0x40] sm:$0xff]
        %v1710 = vld [vmem:[%s348 + $0x48] sm:$0xff]
        %v1711 = vld [vmem:[%s348 + $0x50] sm:$0xff]
        %v1712 = vld [vmem:[%s348 + $0x58] sm:$0xff]
        %v1713 = vld [vmem:[%s348 + $0x60] sm:$0xff]
        %v1714 = vld [vmem:[%s348 + $0x68] sm:$0xff]
        %v1715 = vld [vmem:[%s348 + $0x70] sm:$0xff]
        %v1716 = vld [vmem:[%s348 + $0x78] sm:$0xff]
        %v1717 = vld [vmem:[%s348 + $0x80] sm:$0xff]
        %v1718 = vld [vmem:[%s348 + $0x88] sm:$0xff]
        %v1719 = vld [vmem:[%s348 + $0x90] sm:$0xff]
        %v1720 = vld [vmem:[%s348 + $0x98] sm:$0xff]
        %v1721 = vld [vmem:[%s348 + $0xa0] sm:$0xff]
        %v1722 = vld [vmem:[%s348 + $0xa8] sm:$0xff]
        %v1723 = vld [vmem:[%s348 + $0xb0] sm:$0xff]
        %v1724 = vld [vmem:[%s348 + $0xb8] sm:$0xff]
        %v1725 = vld [vmem:[%s348 + $0xc0] sm:$0xff]
        %v1726 = vld [vmem:[%s348 + $0xc8] sm:$0xff]
        %v1727 = vld [vmem:[%s348 + $0xd0] sm:$0xff]
        %v1728 = vld [vmem:[%s348 + $0xd8] sm:$0xff]
        %v1729 = vld [vmem:[%s348 + $0xe0] sm:$0xff]
        %v1730 = vld [vmem:[%s348 + $0xe8] sm:$0xff]
        %v1731 = vld [vmem:[%s348 + $0xf0] sm:$0xff]
        %v1732 = vld [vmem:[%s348 + $0xf8] sm:$0xff]
        %1734 = vset.pattern.permute.xlu0 0
        %1735 = vperm.xlu0 %1734, %v1061
        %v1736 = vpop.permute.xlu0 %1735
        %1739 = vset.pattern.permute.xlu0 0
        %1740 = vperm.xlu0 %1739, %v1063
        %v1741 = vpop.permute.xlu0 %1740
        %1744 = vset.pattern.permute.xlu0 0
        %1745 = vperm.xlu0 %1744, %v1065
        %v1746 = vpop.permute.xlu0 %1745
        %1749 = vset.pattern.permute.xlu0 0
        %1750 = vperm.xlu0 %1749, %v1067
        %v1751 = vpop.permute.xlu0 %1750
        %1754 = vset.pattern.permute.xlu0 0
        %1755 = vperm.xlu0 %1754, %v1069
        %v1756 = vpop.permute.xlu0 %1755
        %1759 = vset.pattern.permute.xlu0 0
        %1760 = vperm.xlu0 %1759, %v1071
        %v1761 = vpop.permute.xlu0 %1760
        %1764 = vset.pattern.permute.xlu0 0
        %1765 = vperm.xlu0 %1764, %v1073
        %v1766 = vpop.permute.xlu0 %1765
        %1769 = vset.pattern.permute.xlu0 0
        %1770 = vperm.xlu0 %1769, %v1075
        %v1771 = vpop.permute.xlu0 %1770
        %1774 = vset.pattern.permute.xlu0 0
        %1775 = vperm.xlu0 %1774, %v1077
        %v1776 = vpop.permute.xlu0 %1775
        %1779 = vset.pattern.permute.xlu0 0
        %1780 = vperm.xlu0 %1779, %v1079
        %v1781 = vpop.permute.xlu0 %1780
        %1784 = vset.pattern.permute.xlu0 0
        %1785 = vperm.xlu0 %1784, %v1081
        %v1786 = vpop.permute.xlu0 %1785
        %1789 = vset.pattern.permute.xlu0 0
        %1790 = vperm.xlu0 %1789, %v1083
        %v1791 = vpop.permute.xlu0 %1790
        %1794 = vset.pattern.permute.xlu0 0
        %1795 = vperm.xlu0 %1794, %v1085
        %v1796 = vpop.permute.xlu0 %1795
        %1799 = vset.pattern.permute.xlu0 0
        %1800 = vperm.xlu0 %1799, %v1087
        %v1801 = vpop.permute.xlu0 %1800
        %1804 = vset.pattern.permute.xlu0 0
        %1805 = vperm.xlu0 %1804, %v1089
        %v1806 = vpop.permute.xlu0 %1805
        %1809 = vset.pattern.permute.xlu0 0
        %1810 = vperm.xlu0 %1809, %v1091
        %v1811 = vpop.permute.xlu0 %1810
        %1814 = vset.pattern.permute.xlu0 0
        %1815 = vperm.xlu0 %1814, %v1093
        %v1816 = vpop.permute.xlu0 %1815
        %1819 = vset.pattern.permute.xlu0 0
        %1820 = vperm.xlu0 %1819, %v1095
        %v1821 = vpop.permute.xlu0 %1820
        %1824 = vset.pattern.permute.xlu0 0
        %1825 = vperm.xlu0 %1824, %v1097
        %v1826 = vpop.permute.xlu0 %1825
        %1829 = vset.pattern.permute.xlu0 0
        %1830 = vperm.xlu0 %1829, %v1099
        %v1831 = vpop.permute.xlu0 %1830
        %1834 = vset.pattern.permute.xlu0 0
        %1835 = vperm.xlu0 %1834, %v1101
        %v1836 = vpop.permute.xlu0 %1835
        %1839 = vset.pattern.permute.xlu0 0
        %1840 = vperm.xlu0 %1839, %v1103
        %v1841 = vpop.permute.xlu0 %1840
        %1844 = vset.pattern.permute.xlu0 0
        %1845 = vperm.xlu0 %1844, %v1105
        %v1846 = vpop.permute.xlu0 %1845
        %1849 = vset.pattern.permute.xlu0 0
        %1850 = vperm.xlu0 %1849, %v1107
        %v1851 = vpop.permute.xlu0 %1850
        %1854 = vset.pattern.permute.xlu0 0
        %1855 = vperm.xlu0 %1854, %v1109
        %v1856 = vpop.permute.xlu0 %1855
        %1859 = vset.pattern.permute.xlu0 0
        %1860 = vperm.xlu0 %1859, %v1111
        %v1861 = vpop.permute.xlu0 %1860
        %1864 = vset.pattern.permute.xlu0 0
        %1865 = vperm.xlu0 %1864, %v1113
        %v1866 = vpop.permute.xlu0 %1865
        %1869 = vset.pattern.permute.xlu0 0
        %1870 = vperm.xlu0 %1869, %v1115
        %v1871 = vpop.permute.xlu0 %1870
        %1874 = vset.pattern.permute.xlu0 0
        %1875 = vperm.xlu0 %1874, %v1117
        %v1876 = vpop.permute.xlu0 %1875
        %1879 = vset.pattern.permute.xlu0 0
        %1880 = vperm.xlu0 %1879, %v1119
        %v1881 = vpop.permute.xlu0 %1880
        %1884 = vset.pattern.permute.xlu0 0
        %1885 = vperm.xlu0 %1884, %v1121
        %v1886 = vpop.permute.xlu0 %1885
        %1889 = vset.pattern.permute.xlu0 0
        %1890 = vperm.xlu0 %1889, %v1123
        %v1891 = vpop.permute.xlu0 %1890
        %v1893 = vmul.f32 %v1736, %v1701
        %v1894 = vmul.f32 %v1741, %v1702
        %v1895 = vmul.f32 %v1746, %v1703
        %v1896 = vmul.f32 %v1751, %v1704
        %v1897 = vmul.f32 %v1756, %v1705
        %v1898 = vmul.f32 %v1761, %v1706
        %v1899 = vmul.f32 %v1766, %v1707
        %v1900 = vmul.f32 %v1771, %v1708
        %v1901 = vmul.f32 %v1776, %v1709
        %v1902 = vmul.f32 %v1781, %v1710
        %v1903 = vmul.f32 %v1786, %v1711
        %v1904 = vmul.f32 %v1791, %v1712
        %v1905 = vmul.f32 %v1796, %v1713
        %v1906 = vmul.f32 %v1801, %v1714
        %v1907 = vmul.f32 %v1806, %v1715
        %v1908 = vmul.f32 %v1811, %v1716
        %v1909 = vmul.f32 %v1816, %v1717
        %v1910 = vmul.f32 %v1821, %v1718
        %v1911 = vmul.f32 %v1826, %v1719
        %v1912 = vmul.f32 %v1831, %v1720
        %v1913 = vmul.f32 %v1836, %v1721
        %v1914 = vmul.f32 %v1841, %v1722
        %v1915 = vmul.f32 %v1846, %v1723
        %v1916 = vmul.f32 %v1851, %v1724
        %v1917 = vmul.f32 %v1856, %v1725
        %v1918 = vmul.f32 %v1861, %v1726
        %v1919 = vmul.f32 %v1866, %v1727
        %v1920 = vmul.f32 %v1871, %v1728
        %v1921 = vmul.f32 %v1876, %v1729
        %v1922 = vmul.f32 %v1881, %v1730
        %v1923 = vmul.f32 %v1886, %v1731
        %v1924 = vmul.f32 %v1891, %v1732
        %v1925 = vpack.c.bf16 %v1353, %v1349
        %v1926 = vpack.c.bf16 %v1355, %v1351
        %v1927 = vpack.c.bf16 %v1361, %v1357
        %v1928 = vpack.c.bf16 %v1363, %v1359
        %v1929 = vpack.c.bf16 %v1369, %v1365
        %v1930 = vpack.c.bf16 %v1371, %v1367
        %v1931 = vpack.c.bf16 %v1377, %v1373
        %v1932 = vpack.c.bf16 %v1379, %v1375
        %v1933 = vpack.c.bf16 %v1385, %v1381
        %v1934 = vpack.c.bf16 %v1387, %v1383
        %v1935 = vpack.c.bf16 %v1393, %v1389
        %v1936 = vpack.c.bf16 %v1395, %v1391
        %v1937 = vpack.c.bf16 %v1401, %v1397
        %v1938 = vpack.c.bf16 %v1403, %v1399
        %v1939 = vpack.c.bf16 %v1409, %v1405
        %v1940 = vpack.c.bf16 %v1411, %v1407
        %v1941 = vpack.c.bf16 %v1417, %v1413
        %v1942 = vpack.c.bf16 %v1419, %v1415
        %v1943 = vpack.c.bf16 %v1425, %v1421
        %v1944 = vpack.c.bf16 %v1427, %v1423
        %v1945 = vpack.c.bf16 %v1433, %v1429
        %v1946 = vpack.c.bf16 %v1435, %v1431
        %v1947 = vpack.c.bf16 %v1441, %v1437
        %v1948 = vpack.c.bf16 %v1443, %v1439
        %v1949 = vpack.c.bf16 %v1449, %v1445
        %v1950 = vpack.c.bf16 %v1451, %v1447
        %v1951 = vpack.c.bf16 %v1457, %v1453
        %v1952 = vpack.c.bf16 %v1459, %v1455
        %v1953 = vpack.c.bf16 %v1465, %v1461
        %v1954 = vpack.c.bf16 %v1467, %v1463
        %v1955 = vpack.c.bf16 %v1473, %v1469
        %v1956 = vpack.c.bf16 %v1475, %v1471
        %v1989 = vunpack.c.l.b16 %v517
        %v1990 = vunpack.c.l.b16 %v518
        %v1991 = vunpack.c.l.b16 %v519
        %v1992 = vunpack.c.l.b16 %v520
        %v1993 = vunpack.c.l.b16 %v521
        %v1994 = vunpack.c.l.b16 %v522
        %v1995 = vunpack.c.l.b16 %v523
        %v1996 = vunpack.c.l.b16 %v524
        %v1997 = vunpack.c.l.b16 %v525
        %v1998 = vunpack.c.l.b16 %v526
        %v1999 = vunpack.c.l.b16 %v527
        %v2000 = vunpack.c.l.b16 %v528
        %v2001 = vunpack.c.l.b16 %v529
        %v2002 = vunpack.c.l.b16 %v530
        %v2003 = vunpack.c.l.b16 %v531
        %v2004 = vunpack.c.l.b16 %v532
        %v2005 = vunpack.c.l.b16 %v533
        %v2006 = vunpack.c.l.b16 %v534
        %v2007 = vunpack.c.l.b16 %v535
        %v2008 = vunpack.c.l.b16 %v536
        %v2009 = vunpack.c.l.b16 %v537
        %v2010 = vunpack.c.l.b16 %v538
        %v2011 = vunpack.c.l.b16 %v539
        %v2012 = vunpack.c.l.b16 %v540
        %v2013 = vunpack.c.l.b16 %v541
        %v2014 = vunpack.c.l.b16 %v542
        %v2015 = vunpack.c.l.b16 %v543
        %v2016 = vunpack.c.l.b16 %v544
        %v2017 = vunpack.c.l.b16 %v545
        %v2018 = vunpack.c.l.b16 %v546
        %v2019 = vunpack.c.l.b16 %v547
        %v2020 = vunpack.c.l.b16 %v548
        %v2021 = vpack.c.b16 %v1990, %v1989
        %v2022 = vpack.c.b16 %v1992, %v1991
        %v2023 = vpack.c.b16 %v1994, %v1993
        %v2024 = vpack.c.b16 %v1996, %v1995
        %v2025 = vpack.c.b16 %v1998, %v1997
        %v2026 = vpack.c.b16 %v2000, %v1999
        %v2027 = vpack.c.b16 %v2002, %v2001
        %v2028 = vpack.c.b16 %v2004, %v2003
        %v2029 = vpack.c.b16 %v2006, %v2005
        %v2030 = vpack.c.b16 %v2008, %v2007
        %v2031 = vpack.c.b16 %v2010, %v2009
        %v2032 = vpack.c.b16 %v2012, %v2011
        %v2033 = vpack.c.b16 %v2014, %v2013
        %v2034 = vpack.c.b16 %v2016, %v2015
        %v2035 = vpack.c.b16 %v2018, %v2017
        %v2036 = vpack.c.b16 %v2020, %v2019
        %2053 = vmatpush.bf16.msra.mxu0 %v2028
        %2054 = vmatpush.bf16.msra.mxu0 %v2027
        %2055 = vmatpush.bf16.msra.mxu0 %v2026
        %2056 = vmatpush.bf16.msra.mxu0 %v2025
        %2057 = vmatpush.bf16.msra.mxu0 %v2024
        %2058 = vmatpush.bf16.msra.mxu0 %v2023
        %2059 = vmatpush.bf16.msra.mxu0 %v2022
        %2060 = vmatpush.bf16.msra.mxu0 %v2021
        %2061 = vmatmul.bf16.gmra.mxu0 %v1925
        %v2062 = vpop.f32.mrf.mxu0
        %v2063 = vadd.f32 0.0, %v2062
        %v2064 = vpop.f32.mrf.mxu0
        %v2065 = vadd.f32 0.0, %v2064
        %2066 = vmatmul.bf16.gmra.mxu0 %v1927
        %v2067 = vpop.f32.mrf.mxu0
        %v2068 = vadd.f32 0.0, %v2067
        %v2069 = vpop.f32.mrf.mxu0
        %v2070 = vadd.f32 0.0, %v2069
        %2071 = vmatmul.bf16.gmra.mxu0 %v1929
        %v2072 = vpop.f32.mrf.mxu0
        %v2073 = vadd.f32 0.0, %v2072
        %v2074 = vpop.f32.mrf.mxu0
        %v2075 = vadd.f32 0.0, %v2074
        %2076 = vmatmul.bf16.gmra.mxu0 %v1931
        %v2077 = vpop.f32.mrf.mxu0
        %v2078 = vadd.f32 0.0, %v2077
        %v2079 = vpop.f32.mrf.mxu0
        %v2080 = vadd.f32 0.0, %v2079
        %2081 = vmatmul.bf16.gmra.mxu0 %v1933
        %v2082 = vpop.f32.mrf.mxu0
        %v2083 = vadd.f32 0.0, %v2082
        %v2084 = vpop.f32.mrf.mxu0
        %v2085 = vadd.f32 0.0, %v2084
        %2086 = vmatmul.bf16.gmra.mxu0 %v1935
        %v2087 = vpop.f32.mrf.mxu0
        %v2088 = vadd.f32 0.0, %v2087
        %v2089 = vpop.f32.mrf.mxu0
        %v2090 = vadd.f32 0.0, %v2089
        %2091 = vmatmul.bf16.gmra.mxu0 %v1937
        %v2092 = vpop.f32.mrf.mxu0
        %v2093 = vadd.f32 0.0, %v2092
        %v2094 = vpop.f32.mrf.mxu0
        %v2095 = vadd.f32 0.0, %v2094
        %2096 = vmatmul.bf16.gmra.mxu0 %v1939
        %v2097 = vpop.f32.mrf.mxu0
        %v2098 = vadd.f32 0.0, %v2097
        %v2099 = vpop.f32.mrf.mxu0
        %v2100 = vadd.f32 0.0, %v2099
        %2101 = vmatmul.bf16.gmra.mxu0 %v1941
        %v2102 = vpop.f32.mrf.mxu0
        %v2103 = vadd.f32 0.0, %v2102
        %v2104 = vpop.f32.mrf.mxu0
        %v2105 = vadd.f32 0.0, %v2104
        %2106 = vmatmul.bf16.gmra.mxu0 %v1943
        %v2107 = vpop.f32.mrf.mxu0
        %v2108 = vadd.f32 0.0, %v2107
        %v2109 = vpop.f32.mrf.mxu0
        %v2110 = vadd.f32 0.0, %v2109
        %2111 = vmatmul.bf16.gmra.mxu0 %v1945
        %v2112 = vpop.f32.mrf.mxu0
        %v2113 = vadd.f32 0.0, %v2112
        %v2114 = vpop.f32.mrf.mxu0
        %v2115 = vadd.f32 0.0, %v2114
        %2116 = vmatmul.bf16.gmra.mxu0 %v1947
        %v2117 = vpop.f32.mrf.mxu0
        %v2118 = vadd.f32 0.0, %v2117
        %v2119 = vpop.f32.mrf.mxu0
        %v2120 = vadd.f32 0.0, %v2119
        %2121 = vmatmul.bf16.gmra.mxu0 %v1949
        %v2122 = vpop.f32.mrf.mxu0
        %v2123 = vadd.f32 0.0, %v2122
        %v2124 = vpop.f32.mrf.mxu0
        %v2125 = vadd.f32 0.0, %v2124
        %2126 = vmatmul.bf16.gmra.mxu0 %v1951
        %v2127 = vpop.f32.mrf.mxu0
        %v2128 = vadd.f32 0.0, %v2127
        %v2129 = vpop.f32.mrf.mxu0
        %v2130 = vadd.f32 0.0, %v2129
        %2131 = vmatmul.bf16.gmra.mxu0 %v1953
        %v2132 = vpop.f32.mrf.mxu0
        %v2133 = vadd.f32 0.0, %v2132
        %v2134 = vpop.f32.mrf.mxu0
        %v2135 = vadd.f32 0.0, %v2134
        %2136 = vmatmul.bf16.gmra.mxu0 %v1955
        %v2137 = vpop.f32.mrf.mxu0
        %v2138 = vadd.f32 0.0, %v2137
        %v2139 = vpop.f32.mrf.mxu0
        %v2140 = vadd.f32 0.0, %v2139
        %2141 = vdwg.mxu0
        %2142 = vmatpush.bf16.msra.mxu0 %v2036
        %2143 = vmatpush.bf16.msra.mxu0 %v2035
        %2144 = vmatpush.bf16.msra.mxu0 %v2034
        %2145 = vmatpush.bf16.msra.mxu0 %v2033
        %2146 = vmatpush.bf16.msra.mxu0 %v2032
        %2147 = vmatpush.bf16.msra.mxu0 %v2031
        %2148 = vmatpush.bf16.msra.mxu0 %v2030
        %2149 = vmatpush.bf16.msra.mxu0 %v2029
        %2150 = vmatmul.bf16.gmra.mxu0 %v1926
        %v2151 = vpop.f32.mrf.mxu0
        %v2152 = vadd.f32 %v2063, %v2151
        %v2153 = vpop.f32.mrf.mxu0
        %v2154 = vadd.f32 %v2065, %v2153
        %2155 = vmatmul.bf16.gmra.mxu0 %v1928
        %v2156 = vpop.f32.mrf.mxu0
        %v2157 = vadd.f32 %v2068, %v2156
        %v2158 = vpop.f32.mrf.mxu0
        %v2159 = vadd.f32 %v2070, %v2158
        %2160 = vmatmul.bf16.gmra.mxu0 %v1930
        %v2161 = vpop.f32.mrf.mxu0
        %v2162 = vadd.f32 %v2073, %v2161
        %v2163 = vpop.f32.mrf.mxu0
        %v2164 = vadd.f32 %v2075, %v2163
        %2165 = vmatmul.bf16.gmra.mxu0 %v1932
        %v2166 = vpop.f32.mrf.mxu0
        %v2167 = vadd.f32 %v2078, %v2166
        %v2168 = vpop.f32.mrf.mxu0
        %v2169 = vadd.f32 %v2080, %v2168
        %2170 = vmatmul.bf16.gmra.mxu0 %v1934
        %v2171 = vpop.f32.mrf.mxu0
        %v2172 = vadd.f32 %v2083, %v2171
        %v2173 = vpop.f32.mrf.mxu0
        %v2174 = vadd.f32 %v2085, %v2173
        %2175 = vmatmul.bf16.gmra.mxu0 %v1936
        %v2176 = vpop.f32.mrf.mxu0
        %v2177 = vadd.f32 %v2088, %v2176
        %v2178 = vpop.f32.mrf.mxu0
        %v2179 = vadd.f32 %v2090, %v2178
        %2180 = vmatmul.bf16.gmra.mxu0 %v1938
        %v2181 = vpop.f32.mrf.mxu0
        %v2182 = vadd.f32 %v2093, %v2181
        %v2183 = vpop.f32.mrf.mxu0
        %v2184 = vadd.f32 %v2095, %v2183
        %2185 = vmatmul.bf16.gmra.mxu0 %v1940
        %v2186 = vpop.f32.mrf.mxu0
        %v2187 = vadd.f32 %v2098, %v2186
        %v2188 = vpop.f32.mrf.mxu0
        %v2189 = vadd.f32 %v2100, %v2188
        %2190 = vmatmul.bf16.gmra.mxu0 %v1942
        %v2191 = vpop.f32.mrf.mxu0
        %v2192 = vadd.f32 %v2103, %v2191
        %v2193 = vpop.f32.mrf.mxu0
        %v2194 = vadd.f32 %v2105, %v2193
        %2195 = vmatmul.bf16.gmra.mxu0 %v1944
        %v2196 = vpop.f32.mrf.mxu0
        %v2197 = vadd.f32 %v2108, %v2196
        %v2198 = vpop.f32.mrf.mxu0
        %v2199 = vadd.f32 %v2110, %v2198
        %2200 = vmatmul.bf16.gmra.mxu0 %v1946
        %v2201 = vpop.f32.mrf.mxu0
        %v2202 = vadd.f32 %v2113, %v2201
        %v2203 = vpop.f32.mrf.mxu0
        %v2204 = vadd.f32 %v2115, %v2203
        %2205 = vmatmul.bf16.gmra.mxu0 %v1948
        %v2206 = vpop.f32.mrf.mxu0
        %v2207 = vadd.f32 %v2118, %v2206
        %v2208 = vpop.f32.mrf.mxu0
        %v2209 = vadd.f32 %v2120, %v2208
        %2210 = vmatmul.bf16.gmra.mxu0 %v1950
        %v2211 = vpop.f32.mrf.mxu0
        %v2212 = vadd.f32 %v2123, %v2211
        %v2213 = vpop.f32.mrf.mxu0
        %v2214 = vadd.f32 %v2125, %v2213
        %2215 = vmatmul.bf16.gmra.mxu0 %v1952
        %v2216 = vpop.f32.mrf.mxu0
        %v2217 = vadd.f32 %v2128, %v2216
        %v2218 = vpop.f32.mrf.mxu0
        %v2219 = vadd.f32 %v2130, %v2218
        %2220 = vmatmul.bf16.gmra.mxu0 %v1954
        %v2221 = vpop.f32.mrf.mxu0
        %v2222 = vadd.f32 %v2133, %v2221
        %v2223 = vpop.f32.mrf.mxu0
        %v2224 = vadd.f32 %v2135, %v2223
        %2225 = vmatmul.bf16.gmra.mxu0 %v1956
        %v2226 = vpop.f32.mrf.mxu0
        %v2227 = vadd.f32 %v2138, %v2226
        %v2228 = vpop.f32.mrf.mxu0
        %v2229 = vadd.f32 %v2140, %v2228
        %2230 = vdwg.mxu0
        %v2231 = vadd.f32 %v1893, %v2152
        %v2232 = vadd.f32 %v1894, %v2154
        %v2233 = vadd.f32 %v1895, %v2157
        %v2234 = vadd.f32 %v1896, %v2159
        %v2235 = vadd.f32 %v1897, %v2162
        %v2236 = vadd.f32 %v1898, %v2164
        %v2237 = vadd.f32 %v1899, %v2167
        %v2238 = vadd.f32 %v1900, %v2169
        %v2239 = vadd.f32 %v1901, %v2172
        %v2240 = vadd.f32 %v1902, %v2174
        %v2241 = vadd.f32 %v1903, %v2177
        %v2242 = vadd.f32 %v1904, %v2179
        %v2243 = vadd.f32 %v1905, %v2182
        %v2244 = vadd.f32 %v1906, %v2184
        %v2245 = vadd.f32 %v1907, %v2187
        %v2246 = vadd.f32 %v1908, %v2189
        %v2247 = vadd.f32 %v1909, %v2192
        %v2248 = vadd.f32 %v1910, %v2194
        %v2249 = vadd.f32 %v1911, %v2197
        %v2250 = vadd.f32 %v1912, %v2199
        %v2251 = vadd.f32 %v1913, %v2202
        %v2252 = vadd.f32 %v1914, %v2204
        %v2253 = vadd.f32 %v1915, %v2207
        %v2254 = vadd.f32 %v1916, %v2209
        %v2255 = vadd.f32 %v1917, %v2212
        %v2256 = vadd.f32 %v1918, %v2214
        %v2257 = vadd.f32 %v1919, %v2217
        %v2258 = vadd.f32 %v1920, %v2219
        %v2259 = vadd.f32 %v1921, %v2222
        %v2260 = vadd.f32 %v1922, %v2224
        %v2261 = vadd.f32 %v1923, %v2227
        %v2262 = vadd.f32 %v1924, %v2229
        %vm2263 = vcmask 523264
        %2264 = vst.msk [vmem:[%s348] sm:$0xff] %vm2263, %v2231
        %2265 = vst.msk [vmem:[%s348 + $0x8] sm:$0xff] %vm2263, %v2232
        %2266 = vst.msk [vmem:[%s348 + $0x10] sm:$0xff] %vm2263, %v2233
        %2267 = vst.msk [vmem:[%s348 + $0x18] sm:$0xff] %vm2263, %v2234
        %2268 = vst.msk [vmem:[%s348 + $0x20] sm:$0xff] %vm2263, %v2235
        %2269 = vst.msk [vmem:[%s348 + $0x28] sm:$0xff] %vm2263, %v2236
        %2270 = vst.msk [vmem:[%s348 + $0x30] sm:$0xff] %vm2263, %v2237
        %2271 = vst.msk [vmem:[%s348 + $0x38] sm:$0xff] %vm2263, %v2238
        %2272 = vst.msk [vmem:[%s348 + $0x40] sm:$0xff] %vm2263, %v2239
        %2273 = vst.msk [vmem:[%s348 + $0x48] sm:$0xff] %vm2263, %v2240
        %2274 = vst.msk [vmem:[%s348 + $0x50] sm:$0xff] %vm2263, %v2241
        %2275 = vst.msk [vmem:[%s348 + $0x58] sm:$0xff] %vm2263, %v2242
        %2276 = vst.msk [vmem:[%s348 + $0x60] sm:$0xff] %vm2263, %v2243
        %2277 = vst.msk [vmem:[%s348 + $0x68] sm:$0xff] %vm2263, %v2244
        %2278 = vst.msk [vmem:[%s348 + $0x70] sm:$0xff] %vm2263, %v2245
        %2279 = vst.msk [vmem:[%s348 + $0x78] sm:$0xff] %vm2263, %v2246
        %2280 = vst.msk [vmem:[%s348 + $0x80] sm:$0xff] %vm2263, %v2247
        %2281 = vst.msk [vmem:[%s348 + $0x88] sm:$0xff] %vm2263, %v2248
        %2282 = vst.msk [vmem:[%s348 + $0x90] sm:$0xff] %vm2263, %v2249
        %2283 = vst.msk [vmem:[%s348 + $0x98] sm:$0xff] %vm2263, %v2250
        %2284 = vst.msk [vmem:[%s348 + $0xa0] sm:$0xff] %vm2263, %v2251
        %2285 = vst.msk [vmem:[%s348 + $0xa8] sm:$0xff] %vm2263, %v2252
        %2286 = vst.msk [vmem:[%s348 + $0xb0] sm:$0xff] %vm2263, %v2253
        %2287 = vst.msk [vmem:[%s348 + $0xb8] sm:$0xff] %vm2263, %v2254
        %2288 = vst.msk [vmem:[%s348 + $0xc0] sm:$0xff] %vm2263, %v2255
        %2289 = vst.msk [vmem:[%s348 + $0xc8] sm:$0xff] %vm2263, %v2256
        %2290 = vst.msk [vmem:[%s348 + $0xd0] sm:$0xff] %vm2263, %v2257
        %2291 = vst.msk [vmem:[%s348 + $0xd8] sm:$0xff] %vm2263, %v2258
        %2292 = vst.msk [vmem:[%s348 + $0xe0] sm:$0xff] %vm2263, %v2259
        %2293 = vst.msk [vmem:[%s348 + $0xe8] sm:$0xff] %vm2263, %v2260
        %2294 = vst.msk [vmem:[%s348 + $0xf0] sm:$0xff] %vm2263, %v2261
        %2295 = vst.msk [vmem:[%s348 + $0xf8] sm:$0xff] %vm2263, %v2262
        %2296 = vst.msk [vmem:[#allocation2] sm:$0xff] %vm1668, %v996
        %2297 = vst.msk [vmem:[#allocation2 + $0x8] sm:$0xff] %vm1668, %v997
        %2298 = vst.msk [vmem:[#allocation2 + $0x10] sm:$0xff] %vm1668, %v998
        %2299 = vst.msk [vmem:[#allocation2 + $0x18] sm:$0xff] %vm1668, %v999
        %2300 = vst.msk [vmem:[#allocation2 + $0x20] sm:$0xff] %vm1668, %v1000
        %2301 = vst.msk [vmem:[#allocation2 + $0x28] sm:$0xff] %vm1668, %v1001
        %2302 = vst.msk [vmem:[#allocation2 + $0x30] sm:$0xff] %vm1668, %v1002
        %2303 = vst.msk [vmem:[#allocation2 + $0x38] sm:$0xff] %vm1668, %v1003
        %2304 = vst.msk [vmem:[#allocation2 + $0x40] sm:$0xff] %vm1668, %v1004
        %2305 = vst.msk [vmem:[#allocation2 + $0x48] sm:$0xff] %vm1668, %v1005
        %2306 = vst.msk [vmem:[#allocation2 + $0x50] sm:$0xff] %vm1668, %v1006
        %2307 = vst.msk [vmem:[#allocation2 + $0x58] sm:$0xff] %vm1668, %v1007
        %2308 = vst.msk [vmem:[#allocation2 + $0x60] sm:$0xff] %vm1668, %v1008
        %2309 = vst.msk [vmem:[#allocation2 + $0x68] sm:$0xff] %vm1668, %v1009
        %2310 = vst.msk [vmem:[#allocation2 + $0x70] sm:$0xff] %vm1668, %v1010
        %2311 = vst.msk [vmem:[#allocation2 + $0x78] sm:$0xff] %vm1668, %v1011
        %2312 = vst.msk [vmem:[#allocation2 + $0x80] sm:$0xff] %vm1668, %v1012
        %2313 = vst.msk [vmem:[#allocation2 + $0x88] sm:$0xff] %vm1668, %v1013
        %2314 = vst.msk [vmem:[#allocation2 + $0x90] sm:$0xff] %vm1668, %v1014
        %2315 = vst.msk [vmem:[#allocation2 + $0x98] sm:$0xff] %vm1668, %v1015
        %2316 = vst.msk [vmem:[#allocation2 + $0xa0] sm:$0xff] %vm1668, %v1016
        %2317 = vst.msk [vmem:[#allocation2 + $0xa8] sm:$0xff] %vm1668, %v1017
        %2318 = vst.msk [vmem:[#allocation2 + $0xb0] sm:$0xff] %vm1668, %v1018
        %2319 = vst.msk [vmem:[#allocation2 + $0xb8] sm:$0xff] %vm1668, %v1019
        %2320 = vst.msk [vmem:[#allocation2 + $0xc0] sm:$0xff] %vm1668, %v1020
        %2321 = vst.msk [vmem:[#allocation2 + $0xc8] sm:$0xff] %vm1668, %v1021
        %2322 = vst.msk [vmem:[#allocation2 + $0xd0] sm:$0xff] %vm1668, %v1022
        %2323 = vst.msk [vmem:[#allocation2 + $0xd8] sm:$0xff] %vm1668, %v1023
        %2324 = vst.msk [vmem:[#allocation2 + $0xe0] sm:$0xff] %vm1668, %v1024
        %2325 = vst.msk [vmem:[#allocation2 + $0xe8] sm:$0xff] %vm1668, %v1025
        %2326 = vst.msk [vmem:[#allocation2 + $0xf0] sm:$0xff] %vm1668, %v1026
        %2327 = vst.msk [vmem:[#allocation2 + $0xf8] sm:$0xff] %vm1668, %v1027
        // Predicated region
        $region49: #{self_attention_forward.3} parent=39 // pred_check
          %p2328 = pneg %p382
        $region50: #{self_attention_forward.3} parent=39 // pred_check_branch
          %2330 = sbr.rel (%p2328) target = $region52
        $region51: #{self_attention_forward.3} parent=39 // pred_region
          %v2331 = vld [vmem:[#allocation3] sm:$0xff]
          %v2332 = vld [vmem:[#allocation3 + $0x8] sm:$0xff]
          %v2333 = vld [vmem:[#allocation3 + $0x10] sm:$0xff]
          %v2334 = vld [vmem:[#allocation3 + $0x18] sm:$0xff]
          %v2335 = vld [vmem:[#allocation3 + $0x20] sm:$0xff]
          %v2336 = vld [vmem:[#allocation3 + $0x28] sm:$0xff]
          %v2337 = vld [vmem:[#allocation3 + $0x30] sm:$0xff]
          %v2338 = vld [vmem:[#allocation3 + $0x38] sm:$0xff]
          %v2339 = vld [vmem:[#allocation3 + $0x40] sm:$0xff]
          %v2340 = vld [vmem:[#allocation3 + $0x48] sm:$0xff]
          %v2341 = vld [vmem:[#allocation3 + $0x50] sm:$0xff]
          %v2342 = vld [vmem:[#allocation3 + $0x58] sm:$0xff]
          %v2343 = vld [vmem:[#allocation3 + $0x60] sm:$0xff]
          %v2344 = vld [vmem:[#allocation3 + $0x68] sm:$0xff]
          %v2345 = vld [vmem:[#allocation3 + $0x70] sm:$0xff]
          %v2346 = vld [vmem:[#allocation3 + $0x78] sm:$0xff]
          %v2347 = vld [vmem:[#allocation3 + $0x80] sm:$0xff]
          %v2348 = vld [vmem:[#allocation3 + $0x88] sm:$0xff]
          %v2349 = vld [vmem:[#allocation3 + $0x90] sm:$0xff]
          %v2350 = vld [vmem:[#allocation3 + $0x98] sm:$0xff]
          %v2351 = vld [vmem:[#allocation3 + $0xa0] sm:$0xff]
          %v2352 = vld [vmem:[#allocation3 + $0xa8] sm:$0xff]
          %v2353 = vld [vmem:[#allocation3 + $0xb0] sm:$0xff]
          %v2354 = vld [vmem:[#allocation3 + $0xb8] sm:$0xff]
          %v2355 = vld [vmem:[#allocation3 + $0xc0] sm:$0xff]
          %v2356 = vld [vmem:[#allocation3 + $0xc8] sm:$0xff]
          %v2357 = vld [vmem:[#allocation3 + $0xd0] sm:$0xff]
          %v2358 = vld [vmem:[#allocation3 + $0xd8] sm:$0xff]
          %v2359 = vld [vmem:[#allocation3 + $0xe0] sm:$0xff]
          %v2360 = vld [vmem:[#allocation3 + $0xe8] sm:$0xff]
          %v2361 = vld [vmem:[#allocation3 + $0xf0] sm:$0xff]
          %v2362 = vld [vmem:[#allocation3 + $0xf8] sm:$0xff]
          %v2363 = vrcp.pop %v2331
          %v2364 = vrcp.pop %v2332
          %v2365 = vrcp.pop %v2333
          %v2366 = vrcp.pop %v2334
          %v2367 = vrcp.pop %v2335
          %v2368 = vrcp.pop %v2336
          %v2369 = vrcp.pop %v2337
          %v2370 = vrcp.pop %v2338
          %v2371 = vrcp.pop %v2339
          %v2372 = vrcp.pop %v2340
          %v2373 = vrcp.pop %v2341
          %v2374 = vrcp.pop %v2342
          %v2375 = vrcp.pop %v2343
          %v2376 = vrcp.pop %v2344
          %v2377 = vrcp.pop %v2345
          %v2378 = vrcp.pop %v2346
          %v2379 = vrcp.pop %v2347
          %v2380 = vrcp.pop %v2348
          %v2381 = vrcp.pop %v2349
          %v2382 = vrcp.pop %v2350
          %v2383 = vrcp.pop %v2351
          %v2384 = vrcp.pop %v2352
          %v2385 = vrcp.pop %v2353
          %v2386 = vrcp.pop %v2354
          %v2387 = vrcp.pop %v2355
          %v2388 = vrcp.pop %v2356
          %v2389 = vrcp.pop %v2357
          %v2390 = vrcp.pop %v2358
          %v2391 = vrcp.pop %v2359
          %v2392 = vrcp.pop %v2360
          %v2393 = vrcp.pop %v2361
          %v2394 = vrcp.pop %v2362
          %s2395 = sld [smem:[#allocation4]]
          %v2396 = vld [vmem:[%s348] sm:$0xff]
          %v2397 = vld [vmem:[%s348 + $0x8] sm:$0xff]
          %v2398 = vld [vmem:[%s348 + $0x10] sm:$0xff]
          %v2399 = vld [vmem:[%s348 + $0x18] sm:$0xff]
          %v2400 = vld [vmem:[%s348 + $0x20] sm:$0xff]
          %v2401 = vld [vmem:[%s348 + $0x28] sm:$0xff]
          %v2402 = vld [vmem:[%s348 + $0x30] sm:$0xff]
          %v2403 = vld [vmem:[%s348 + $0x38] sm:$0xff]
          %v2404 = vld [vmem:[%s348 + $0x40] sm:$0xff]
          %v2405 = vld [vmem:[%s348 + $0x48] sm:$0xff]
          %v2406 = vld [vmem:[%s348 + $0x50] sm:$0xff]
          %v2407 = vld [vmem:[%s348 + $0x58] sm:$0xff]
          %v2408 = vld [vmem:[%s348 + $0x60] sm:$0xff]
          %v2409 = vld [vmem:[%s348 + $0x68] sm:$0xff]
          %v2410 = vld [vmem:[%s348 + $0x70] sm:$0xff]
          %v2411 = vld [vmem:[%s348 + $0x78] sm:$0xff]
          %v2412 = vld [vmem:[%s348 + $0x80] sm:$0xff]
          %v2413 = vld [vmem:[%s348 + $0x88] sm:$0xff]
          %v2414 = vld [vmem:[%s348 + $0x90] sm:$0xff]
          %v2415 = vld [vmem:[%s348 + $0x98] sm:$0xff]
          %v2416 = vld [vmem:[%s348 + $0xa0] sm:$0xff]
          %v2417 = vld [vmem:[%s348 + $0xa8] sm:$0xff]
          %v2418 = vld [vmem:[%s348 + $0xb0] sm:$0xff]
          %v2419 = vld [vmem:[%s348 + $0xb8] sm:$0xff]
          %v2420 = vld [vmem:[%s348 + $0xc0] sm:$0xff]
          %v2421 = vld [vmem:[%s348 + $0xc8] sm:$0xff]
          %v2422 = vld [vmem:[%s348 + $0xd0] sm:$0xff]
          %v2423 = vld [vmem:[%s348 + $0xd8] sm:$0xff]
          %v2424 = vld [vmem:[%s348 + $0xe0] sm:$0xff]
          %v2425 = vld [vmem:[%s348 + $0xe8] sm:$0xff]
          %v2426 = vld [vmem:[%s348 + $0xf0] sm:$0xff]
          %v2427 = vld [vmem:[%s348 + $0xf8] sm:$0xff]
          %2429 = vset.pattern.permute.xlu0 0
          %2430 = vperm.xlu0 %2429, %v2363
          %v2431 = vpop.permute.xlu0 %2430
          %2434 = vset.pattern.permute.xlu0 0
          %2435 = vperm.xlu0 %2434, %v2364
          %v2436 = vpop.permute.xlu0 %2435
          %2439 = vset.pattern.permute.xlu0 0
          %2440 = vperm.xlu0 %2439, %v2365
          %v2441 = vpop.permute.xlu0 %2440
          %2444 = vset.pattern.permute.xlu0 0
          %2445 = vperm.xlu0 %2444, %v2366
          %v2446 = vpop.permute.xlu0 %2445
          %2449 = vset.pattern.permute.xlu0 0
          %2450 = vperm.xlu0 %2449, %v2367
          %v2451 = vpop.permute.xlu0 %2450
          %2454 = vset.pattern.permute.xlu0 0
          %2455 = vperm.xlu0 %2454, %v2368
          %v2456 = vpop.permute.xlu0 %2455
          %2459 = vset.pattern.permute.xlu0 0
          %2460 = vperm.xlu0 %2459, %v2369
          %v2461 = vpop.permute.xlu0 %2460
          %2464 = vset.pattern.permute.xlu0 0
          %2465 = vperm.xlu0 %2464, %v2370
          %v2466 = vpop.permute.xlu0 %2465
          %2469 = vset.pattern.permute.xlu0 0
          %2470 = vperm.xlu0 %2469, %v2371
          %v2471 = vpop.permute.xlu0 %2470
          %2474 = vset.pattern.permute.xlu0 0
          %2475 = vperm.xlu0 %2474, %v2372
          %v2476 = vpop.permute.xlu0 %2475
          %2479 = vset.pattern.permute.xlu0 0
          %2480 = vperm.xlu0 %2479, %v2373
          %v2481 = vpop.permute.xlu0 %2480
          %2484 = vset.pattern.permute.xlu0 0
          %2485 = vperm.xlu0 %2484, %v2374
          %v2486 = vpop.permute.xlu0 %2485
          %2489 = vset.pattern.permute.xlu0 0
          %2490 = vperm.xlu0 %2489, %v2375
          %v2491 = vpop.permute.xlu0 %2490
          %2494 = vset.pattern.permute.xlu0 0
          %2495 = vperm.xlu0 %2494, %v2376
          %v2496 = vpop.permute.xlu0 %2495
          %2499 = vset.pattern.permute.xlu0 0
          %2500 = vperm.xlu0 %2499, %v2377
          %v2501 = vpop.permute.xlu0 %2500
          %2504 = vset.pattern.permute.xlu0 0
          %2505 = vperm.xlu0 %2504, %v2378
          %v2506 = vpop.permute.xlu0 %2505
          %2509 = vset.pattern.permute.xlu0 0
          %2510 = vperm.xlu0 %2509, %v2379
          %v2511 = vpop.permute.xlu0 %2510
          %2514 = vset.pattern.permute.xlu0 0
          %2515 = vperm.xlu0 %2514, %v2380
          %v2516 = vpop.permute.xlu0 %2515
          %2519 = vset.pattern.permute.xlu0 0
          %2520 = vperm.xlu0 %2519, %v2381
          %v2521 = vpop.permute.xlu0 %2520
          %2524 = vset.pattern.permute.xlu0 0
          %2525 = vperm.xlu0 %2524, %v2382
          %v2526 = vpop.permute.xlu0 %2525
          %2529 = vset.pattern.permute.xlu0 0
          %2530 = vperm.xlu0 %2529, %v2383
          %v2531 = vpop.permute.xlu0 %2530
          %2534 = vset.pattern.permute.xlu0 0
          %2535 = vperm.xlu0 %2534, %v2384
          %v2536 = vpop.permute.xlu0 %2535
          %2539 = vset.pattern.permute.xlu0 0
          %2540 = vperm.xlu0 %2539, %v2385
          %v2541 = vpop.permute.xlu0 %2540
          %2544 = vset.pattern.permute.xlu0 0
          %2545 = vperm.xlu0 %2544, %v2386
          %v2546 = vpop.permute.xlu0 %2545
          %2549 = vset.pattern.permute.xlu0 0
          %2550 = vperm.xlu0 %2549, %v2387
          %v2551 = vpop.permute.xlu0 %2550
          %2554 = vset.pattern.permute.xlu0 0
          %2555 = vperm.xlu0 %2554, %v2388
          %v2556 = vpop.permute.xlu0 %2555
          %2559 = vset.pattern.permute.xlu0 0
          %2560 = vperm.xlu0 %2559, %v2389
          %v2561 = vpop.permute.xlu0 %2560
          %2564 = vset.pattern.permute.xlu0 0
          %2565 = vperm.xlu0 %2564, %v2390
          %v2566 = vpop.permute.xlu0 %2565
          %2569 = vset.pattern.permute.xlu0 0
          %2570 = vperm.xlu0 %2569, %v2391
          %v2571 = vpop.permute.xlu0 %2570
          %2574 = vset.pattern.permute.xlu0 0
          %2575 = vperm.xlu0 %2574, %v2392
          %v2576 = vpop.permute.xlu0 %2575
          %2579 = vset.pattern.permute.xlu0 0
          %2580 = vperm.xlu0 %2579, %v2393
          %v2581 = vpop.permute.xlu0 %2580
          %2584 = vset.pattern.permute.xlu0 0
          %2585 = vperm.xlu0 %2584, %v2394
          %v2586 = vpop.permute.xlu0 %2585
          %v2588 = vmul.f32 %v2396, %v2431
          %v2589 = vmul.f32 %v2397, %v2436
          %v2590 = vmul.f32 %v2398, %v2441
          %v2591 = vmul.f32 %v2399, %v2446
          %v2592 = vmul.f32 %v2400, %v2451
          %v2593 = vmul.f32 %v2401, %v2456
          %v2594 = vmul.f32 %v2402, %v2461
          %v2595 = vmul.f32 %v2403, %v2466
          %v2596 = vmul.f32 %v2404, %v2471
          %v2597 = vmul.f32 %v2405, %v2476
          %v2598 = vmul.f32 %v2406, %v2481
          %v2599 = vmul.f32 %v2407, %v2486
          %v2600 = vmul.f32 %v2408, %v2491
          %v2601 = vmul.f32 %v2409, %v2496
          %v2602 = vmul.f32 %v2410, %v2501
          %v2603 = vmul.f32 %v2411, %v2506
          %v2604 = vmul.f32 %v2412, %v2511
          %v2605 = vmul.f32 %v2413, %v2516
          %v2606 = vmul.f32 %v2414, %v2521
          %v2607 = vmul.f32 %v2415, %v2526
          %v2608 = vmul.f32 %v2416, %v2531
          %v2609 = vmul.f32 %v2417, %v2536
          %v2610 = vmul.f32 %v2418, %v2541
          %v2611 = vmul.f32 %v2419, %v2546
          %v2612 = vmul.f32 %v2420, %v2551
          %v2613 = vmul.f32 %v2421, %v2556
          %v2614 = vmul.f32 %v2422, %v2561
          %v2615 = vmul.f32 %v2423, %v2566
          %v2616 = vmul.f32 %v2424, %v2571
          %v2617 = vmul.f32 %v2425, %v2576
          %v2618 = vmul.f32 %v2426, %v2581
          %v2619 = vmul.f32 %v2427, %v2586
          %v2620 = vstv %s2395
          %v2621 = vmul.f32 %v2620, %v2588
          %v2622 = vmul.f32 %v2620, %v2589
          %v2623 = vmul.f32 %v2620, %v2590
          %v2624 = vmul.f32 %v2620, %v2591
          %v2625 = vmul.f32 %v2620, %v2592
          %v2626 = vmul.f32 %v2620, %v2593
          %v2627 = vmul.f32 %v2620, %v2594
          %v2628 = vmul.f32 %v2620, %v2595
          %v2629 = vmul.f32 %v2620, %v2596
          %v2630 = vmul.f32 %v2620, %v2597
          %v2631 = vmul.f32 %v2620, %v2598
          %v2632 = vmul.f32 %v2620, %v2599
          %v2633 = vmul.f32 %v2620, %v2600
          %v2634 = vmul.f32 %v2620, %v2601
          %v2635 = vmul.f32 %v2620, %v2602
          %v2636 = vmul.f32 %v2620, %v2603
          %v2637 = vmul.f32 %v2620, %v2604
          %v2638 = vmul.f32 %v2620, %v2605
          %v2639 = vmul.f32 %v2620, %v2606
          %v2640 = vmul.f32 %v2620, %v2607
          %v2641 = vmul.f32 %v2620, %v2608
          %v2642 = vmul.f32 %v2620, %v2609
          %v2643 = vmul.f32 %v2620, %v2610
          %v2644 = vmul.f32 %v2620, %v2611
          %v2645 = vmul.f32 %v2620, %v2612
          %v2646 = vmul.f32 %v2620, %v2613
          %v2647 = vmul.f32 %v2620, %v2614
          %v2648 = vmul.f32 %v2620, %v2615
          %v2649 = vmul.f32 %v2620, %v2616
          %v2650 = vmul.f32 %v2620, %v2617
          %v2651 = vmul.f32 %v2620, %v2618
          %v2652 = vmul.f32 %v2620, %v2619
          %v2653 = vld [vmem:[%s294] sm:$0xff]
          %v2654 = vld [vmem:[%s294 + $0x8] sm:$0xff]
          %v2655 = vld [vmem:[%s294 + $0x10] sm:$0xff]
          %v2656 = vld [vmem:[%s294 + $0x18] sm:$0xff]
          %v2657 = vld [vmem:[%s294 + $0x20] sm:$0xff]
          %v2658 = vld [vmem:[%s294 + $0x28] sm:$0xff]
          %v2659 = vld [vmem:[%s294 + $0x30] sm:$0xff]
          %v2660 = vld [vmem:[%s294 + $0x38] sm:$0xff]
          %v2661 = vld [vmem:[%s294 + $0x40] sm:$0xff]
          %v2662 = vld [vmem:[%s294 + $0x48] sm:$0xff]
          %v2663 = vld [vmem:[%s294 + $0x50] sm:$0xff]
          %v2664 = vld [vmem:[%s294 + $0x58] sm:$0xff]
          %v2665 = vld [vmem:[%s294 + $0x60] sm:$0xff]
          %v2666 = vld [vmem:[%s294 + $0x68] sm:$0xff]
          %v2667 = vld [vmem:[%s294 + $0x70] sm:$0xff]
          %v2668 = vld [vmem:[%s294 + $0x78] sm:$0xff]
          %v2669 = vld [vmem:[%s294 + $0x80] sm:$0xff]
          %v2670 = vld [vmem:[%s294 + $0x88] sm:$0xff]
          %v2671 = vld [vmem:[%s294 + $0x90] sm:$0xff]
          %v2672 = vld [vmem:[%s294 + $0x98] sm:$0xff]
          %v2673 = vld [vmem:[%s294 + $0xa0] sm:$0xff]
          %v2674 = vld [vmem:[%s294 + $0xa8] sm:$0xff]
          %v2675 = vld [vmem:[%s294 + $0xb0] sm:$0xff]
          %v2676 = vld [vmem:[%s294 + $0xb8] sm:$0xff]
          %v2677 = vld [vmem:[%s294 + $0xc0] sm:$0xff]
          %v2678 = vld [vmem:[%s294 + $0xc8] sm:$0xff]
          %v2679 = vld [vmem:[%s294 + $0xd0] sm:$0xff]
          %v2680 = vld [vmem:[%s294 + $0xd8] sm:$0xff]
          %v2681 = vld [vmem:[%s294 + $0xe0] sm:$0xff]
          %v2682 = vld [vmem:[%s294 + $0xe8] sm:$0xff]
          %v2683 = vld [vmem:[%s294 + $0xf0] sm:$0xff]
          %v2684 = vld [vmem:[%s294 + $0xf8] sm:$0xff]
          %v2685 = vadd.f32 %v2621, %v2653
          %v2686 = vadd.f32 %v2622, %v2654
          %v2687 = vadd.f32 %v2623, %v2655
          %v2688 = vadd.f32 %v2624, %v2656
          %v2689 = vadd.f32 %v2625, %v2657
          %v2690 = vadd.f32 %v2626, %v2658
          %v2691 = vadd.f32 %v2627, %v2659
          %v2692 = vadd.f32 %v2628, %v2660
          %v2693 = vadd.f32 %v2629, %v2661
          %v2694 = vadd.f32 %v2630, %v2662
          %v2695 = vadd.f32 %v2631, %v2663
          %v2696 = vadd.f32 %v2632, %v2664
          %v2697 = vadd.f32 %v2633, %v2665
          %v2698 = vadd.f32 %v2634, %v2666
          %v2699 = vadd.f32 %v2635, %v2667
          %v2700 = vadd.f32 %v2636, %v2668
          %v2701 = vadd.f32 %v2637, %v2669
          %v2702 = vadd.f32 %v2638, %v2670
          %v2703 = vadd.f32 %v2639, %v2671
          %v2704 = vadd.f32 %v2640, %v2672
          %v2705 = vadd.f32 %v2641, %v2673
          %v2706 = vadd.f32 %v2642, %v2674
          %v2707 = vadd.f32 %v2643, %v2675
          %v2708 = vadd.f32 %v2644, %v2676
          %v2709 = vadd.f32 %v2645, %v2677
          %v2710 = vadd.f32 %v2646, %v2678
          %v2711 = vadd.f32 %v2647, %v2679
          %v2712 = vadd.f32 %v2648, %v2680
          %v2713 = vadd.f32 %v2649, %v2681
          %v2714 = vadd.f32 %v2650, %v2682
          %v2715 = vadd.f32 %v2651, %v2683
          %v2716 = vadd.f32 %v2652, %v2684
          %2717 = vst.msk [vmem:[%s348] sm:$0xff] %vm2263, %v2685
          %2718 = vst.msk [vmem:[%s348 + $0x8] sm:$0xff] %vm2263, %v2686
          %2719 = vst.msk [vmem:[%s348 + $0x10] sm:$0xff] %vm2263, %v2687
          %2720 = vst.msk [vmem:[%s348 + $0x18] sm:$0xff] %vm2263, %v2688
          %2721 = vst.msk [vmem:[%s348 + $0x20] sm:$0xff] %vm2263, %v2689
          %2722 = vst.msk [vmem:[%s348 + $0x28] sm:$0xff] %vm2263, %v2690
          %2723 = vst.msk [vmem:[%s348 + $0x30] sm:$0xff] %vm2263, %v2691
          %2724 = vst.msk [vmem:[%s348 + $0x38] sm:$0xff] %vm2263, %v2692
          %2725 = vst.msk [vmem:[%s348 + $0x40] sm:$0xff] %vm2263, %v2693
          %2726 = vst.msk [vmem:[%s348 + $0x48] sm:$0xff] %vm2263, %v2694
          %2727 = vst.msk [vmem:[%s348 + $0x50] sm:$0xff] %vm2263, %v2695
          %2728 = vst.msk [vmem:[%s348 + $0x58] sm:$0xff] %vm2263, %v2696
          %2729 = vst.msk [vmem:[%s348 + $0x60] sm:$0xff] %vm2263, %v2697
          %2730 = vst.msk [vmem:[%s348 + $0x68] sm:$0xff] %vm2263, %v2698
          %2731 = vst.msk [vmem:[%s348 + $0x70] sm:$0xff] %vm2263, %v2699
          %2732 = vst.msk [vmem:[%s348 + $0x78] sm:$0xff] %vm2263, %v2700
          %2733 = vst.msk [vmem:[%s348 + $0x80] sm:$0xff] %vm2263, %v2701
          %2734 = vst.msk [vmem:[%s348 + $0x88] sm:$0xff] %vm2263, %v2702
          %2735 = vst.msk [vmem:[%s348 + $0x90] sm:$0xff] %vm2263, %v2703
          %2736 = vst.msk [vmem:[%s348 + $0x98] sm:$0xff] %vm2263, %v2704
          %2737 = vst.msk [vmem:[%s348 + $0xa0] sm:$0xff] %vm2263, %v2705
          %2738 = vst.msk [vmem:[%s348 + $0xa8] sm:$0xff] %vm2263, %v2706
          %2739 = vst.msk [vmem:[%s348 + $0xb0] sm:$0xff] %vm2263, %v2707
          %2740 = vst.msk [vmem:[%s348 + $0xb8] sm:$0xff] %vm2263, %v2708
          %2741 = vst.msk [vmem:[%s348 + $0xc0] sm:$0xff] %vm2263, %v2709
          %2742 = vst.msk [vmem:[%s348 + $0xc8] sm:$0xff] %vm2263, %v2710
          %2743 = vst.msk [vmem:[%s348 + $0xd0] sm:$0xff] %vm2263, %v2711
          %2744 = vst.msk [vmem:[%s348 + $0xd8] sm:$0xff] %vm2263, %v2712
          %2745 = vst.msk [vmem:[%s348 + $0xe0] sm:$0xff] %vm2263, %v2713
          %2746 = vst.msk [vmem:[%s348 + $0xe8] sm:$0xff] %vm2263, %v2714
          %2747 = vst.msk [vmem:[%s348 + $0xf0] sm:$0xff] %vm2263, %v2715
          %2748 = vst.msk [vmem:[%s348 + $0xf8] sm:$0xff] %vm2263, %v2716
        $region52: #{self_attention_forward.3} parent=39 // pred_fallthru
          _
        %s2749 = sand.u32 %s185, 1
        %s2750 = scalar_lea.sflag [#allocation7], %s2749
        %s2751 = sand.u32 %s185, 1
        %s2752 = smul.addr %s2751, 256
        %s2753 = scalar_lea.vmem [#allocation8], %s2752
        // Predicated region
        $region53: #{self_attention_forward.3} parent=39 // pred_check
          %p2754 = pneg %p195
        $region54: #{self_attention_forward.3} parent=39 // pred_check_branch
          %2756 = sbr.rel (%p2754) target = $region56
        $region55: #{self_attention_forward.3} parent=39 // pred_region
          %s2757 = smul.u32 32, %s29
          %2759 = vsyncadd %s2750, 0
          %s2760 = smul.addr %s28, 32
          %s2761 = sadd.s32 %s2757, %s2760
          %s2762 = smul.addr %s2761, 8
          %s2763 = scalar_lea.hbm %s5, %s2762
          %s2764 = sshll.u32 %s2753, 4
          %s2765 = int_to_ptr.vmem [resolvable:$true] %s2764
          %s2766 = sshll.u32 %s2763, 4
          %s2767 = int_to_ptr.hbm [resolvable:$true] %s2766
          %2772 = dma.vmem_to_hbm [thread:$0]  %s2765, 4096, %s2767, %s2750, 128, 128, 8
        $region56: #{self_attention_forward.3} parent=39 // pred_fallthru
          _
      $region40: #{self_attention_forward.3} parent=5 // pred_fallthru
        _
      %p2773 = scmp.le.s32.totalorder 2, %s18
      // Predicated region
      $region57: #{self_attention_forward.3} parent=5 // pred_check
        %p2774 = pneg %p2773
      $region58: #{self_attention_forward.3} parent=5 // pred_check_branch
        %2776 = sbr.rel (%p2774) target = $region60
      $region59: #{self_attention_forward.3} parent=5 // pred_region
        %s2777 = ssub.s32 %s18, 2
        // Predicated region
        $region61: #{self_attention_forward.3} parent=59 // pred_check
          %p2778 = pneg %p201
        $region62: #{self_attention_forward.3} parent=59 // pred_check_branch
          %2780 = sbr.rel (%p2778) target = $region64
        $region63: #{self_attention_forward.3} parent=59 // pred_region
          %s2781 = sand.u32 %s186, 1
          %s2782 = scalar_lea.sflag [#allocation7], %s2781
          %s2783 = sand.u32 %s186, 1
          %s2784 = smul.addr %s2783, 256
          %s2785 = scalar_lea.vmem [#allocation8], %s2784
          %2787 = dma.done %s2782, 4096
        $region64: #{self_attention_forward.3} parent=59 // pred_fallthru
          _
      $region60: #{self_attention_forward.3} parent=5 // pred_fallthru
        _
    $region6: #{self_attention_forward.3} parent=1 // loop_footer
      %s22 = sadd.s32 1, %s18
    $region7: #{self_attention_forward.3} parent=1 // loop_footer_branch
      %17 = sbr.rel target = $region3
    $region8: #{self_attention_forward.3} parent=1 // loop_exit
      _
    %2788 = vsyncpa [#allocation6], 1
    %s2789 = scalar_lea.sflag [#allocation6], 1
    %2790 = vsyncpa %s2789, 1
    %2791 = vsyncpa [#allocation7], 1
    %s2792 = scalar_lea.sflag [#allocation7], 1
    %2793 = vsyncpa %s2792, 1

</llo_original>
